<compile_context>
chip_gen: v6e
topology: v6e:2x2x1
jax: 0.10.0
libtpu: 0.0.40
codegen_flags: <defaults>
</compile_context>

<pallas_src>
import functools

import jax
import jax.numpy as jnp
from jax import lax
from jax.experimental import pallas as pl
from jax.experimental.pallas import tpu as pltpu

# ---------------- synthetic (small) model dimensions ----------------
VOCAB = 33                 # ESM alphabet size
VOCAB_PAD = 48             # embedding table rows padded to a sublane multiple
EMBED_DIM = 32             # lm.embed_dim (synthetic)
HIDDEN_DIM = 32            # MunisModel hidden_dim
NODE_DIM = 16              # MunisModel node_dim
FFN_DIM = 4 * EMBED_DIM    # 128
H_HALF = HIDDEN_DIM // 2   # LSTM hidden size per direction (16)
GATES = 4 * H_HALF         # 64 gate lanes per direction per model
LSTM_IN = EMBED_DIM + NODE_DIM      # 48
FEATS_DIM = EMBED_DIM + HIDDEN_DIM  # 64 (use_flanks=True)
NUM_MODELS = 2
PAD_ID = 0

B = 2   # batch
S = 8   # epitope sequence length (pos 0 = CLS)
T = 8   # flank sequence length

# fused (ensemble-folded) widths
M = NUM_MODELS
ME = M * EMBED_DIM           # 64   lane-concat embeddings
MNODE = M * NODE_DIM         # 32
MFFN = M * FFN_DIM           # 256
MHID = M * HIDDEN_DIM        # 64
MFEATS = M * FEATS_DIM       # 128
MHH = M * H_HALF             # 32   fused LSTM state width per direction
GW = M * GATES               # 128  fused gate lanes per direction
SLAB_W = 256                 # parameter slab lane width (max fused width)
OUT_W = 256                  # lane-dense output slab width

# ---------------------------------------------------------------------------
# Single packed parameter slab: (SLAB_ROWS, 256) f32, one DMA for everything.
# Each fused parameter occupies a static, 8-row-aligned row range.
# ---------------------------------------------------------------------------
PARAM_DEFS = (
    ('embed_cat', VOCAB_PAD, ME),
    ('wq', ME, ME), ('bq', 1, ME),
    ('wk', ME, ME), ('bk', 1, ME),
    ('wv', ME, ME), ('bv', 1, ME),
    ('wo', ME, ME), ('bo', 1, ME),
    ('ln1_g', 1, ME), ('ln1_b', 1, ME),
    ('ln2_g', 1, ME), ('ln2_b', 1, ME),
    ('lnf_g', 1, ME), ('lnf_b', 1, ME),
    ('w_ffn1', ME, MFFN), ('b_ffn1', 1, MFFN),
    ('w_ffn2', MFFN, ME), ('b_ffn2', 1, ME),
    ('type_emb', 2, MNODE),
    ('wih_all', M * LSTM_IN, 2 * GW), ('b_lstm', 1, 2 * GW),
    ('whh_all', MHID, 2 * GW),
    ('fc_w1', MFEATS, MHID), ('fc_b1', 1, MHID),
    ('fc_w2', MHID, M), ('fc_b2', 1, M),
    ('blk_ones', ME, ME), ('blk_avg', ME, ME),
)


def _round8(n):
    return ((n + 7) // 8) * 8


def _build_layout():
    layout, row = {}, 0
    for name, r, _c in PARAM_DEFS:
        layout[name] = (row, r, _c)
        row += _round8(r)
    return layout, _round8(row)


LAYOUT, SLAB_ROWS = _build_layout()   # SLAB_ROWS = 1232 -> ~1.26 MiB f32


# ---------------------------------------------------------------------------
# Fused kernel: one grid step computes the whole ensemble forward.
#   refs = [ids (B*S + 2*T*B, 1) i32, slab (SLAB_ROWS, 256) f32,
#           out (B, OUT_W) f32]
#   ids rows: [seq (batch-major, B*S) | prot (time-major, T*B) | prot_type]
# ---------------------------------------------------------------------------
def fused_ensemble_kernel(ids_ref, slab_ref, out_ref):
    E = EMBED_DIM
    HH = H_HALF

    def ld(name):
        r0, nr, nc = LAYOUT[name]
        return slab_ref[r0:r0 + nr, 0:nc]

    blk_ones = ld('blk_ones')            # (ME, ME) per-model lane-block mask
    blk_avg = ld('blk_avg')              # blk_ones / E

    def block_layer_norm(v, gname, bname):
        # per-model-block mean/var broadcast via block-mask matmuls (MXU)
        mu = jnp.dot(v, blk_avg, preferred_element_type=jnp.float32)
        xc = v - mu
        var = jnp.dot(xc * xc, blk_avg, preferred_element_type=jnp.float32)
        return xc * lax.rsqrt(var + 1e-5) * ld(gname) + ld(bname)

    def proj(v, wname, bname):
        return jnp.dot(v, ld(wname), preferred_element_type=jnp.float32) + ld(bname)

    # ---- one fused embedding lookup for LM + flank tokens (both models) ----
    n_tok = B * S + T * B
    tok_ids = ids_ref[0:n_tok, :]                                   # (32, 1)
    onehot = (tok_ids ==
              lax.broadcasted_iota(jnp.int32, (n_tok, VOCAB_PAD), 1)
              ).astype(jnp.float32)
    emb_all = jnp.dot(onehot, ld('embed_cat'),
                      preferred_element_type=jnp.float32)           # (32, ME)
    x2 = emb_all[0:B * S, :]                                        # (B*S, ME)
    prot_emb = emb_all[B * S:n_tok, :]                              # (T*B, ME)
    prot_ids = tok_ids[B * S:n_tok, :]                              # (T*B, 1)

    # ---------------- LM branch (pre-LN layer, CLS-only tail) ----------------
    # TODO(synk): stand-in for the 6-layer multi-head ESM-2 stack; no padding
    # attention mask, tanh-GELU instead of exact-erf GELU.
    h2d = block_layer_norm(x2, 'ln1_g', 'ln1_b')                    # (B*S, ME)
    k3 = proj(h2d, 'wk', 'bk').reshape(B, S, ME)
    v3 = proj(h2d, 'wv', 'bv').reshape(B, S, ME)
    h_cls = h2d.reshape(B, S, ME)[:, 0, :]                          # (B, ME)
    x_cls = x2.reshape(B, S, ME)[:, 0, :]
    q_cls = proj(h_cls, 'wq', 'bq')                                 # (B, ME)

    # per-model CLS attention: q.k reduced within each model's E lanes via a
    # block-mask matmul (MXU) -> scores constant across each model block.
    prod = q_cls[:, None, :] * k3                                   # (B, S, ME)
    scores = jnp.dot(prod.reshape(B * S, ME), blk_ones,
                     preferred_element_type=jnp.float32
                     ).reshape(B, S, ME) * (E ** -0.5)
    scores = scores - jnp.max(scores, axis=1, keepdims=True)
    pexp = jnp.exp(scores)
    probs = pexp / jnp.sum(pexp, axis=1, keepdims=True)             # exact div
    attn = jnp.sum(probs * v3, axis=1)                              # (B, ME)

    x_cls = x_cls + proj(attn, 'wo', 'bo')
    hmid = block_layer_norm(x_cls, 'ln2_g', 'ln2_b')
    ff = jax.nn.gelu(proj(hmid, 'w_ffn1', 'b_ffn1'), approximate=True)
    x_cls = x_cls + proj(ff, 'w_ffn2', 'b_ffn2')
    lm_feats = block_layer_norm(x_cls, 'lnf_g', 'lnf_b')            # (B, ME)

    # ---------------- flank branch: fused masked BiLSTM + mean pooling -------
    tsel = ids_ref[n_tok:n_tok + T * B, :].astype(jnp.float32)      # (T*B, 1)
    type_tbl = ld('type_emb')                                       # (2, MNODE)
    type_emb = tsel * type_tbl[1:2, :] + (1.0 - tsel) * type_tbl[0:1, :]

    feats = jnp.concatenate([prot_emb, type_emb], axis=-1)          # (T*B, 96)
    mask = (prot_ids != PAD_ID).astype(jnp.float32)                 # (T*B, 1)

    # hoisted input projection for both models AND both directions:
    # lanes [0:GW] = fwd gates, [GW:2GW] = bwd gates (gate-major, model-minor)
    xproj = (jnp.dot(feats, ld('wih_all'), preferred_element_type=jnp.float32)
             + ld('b_lstm'))                                        # (T*B, 256)
    whh = ld('whh_all')                                             # (MHID, 256)

    def lstm_step(gates, c_prev):
        # gate lanes: [i | f | g | o], each MHH wide.  2 EUP issues (sigmoid +
        # tanh over the full 128-lane gate vector), then static lane selects.
        sig = jax.nn.sigmoid(gates)
        th = jnp.tanh(gates)
        i_g = sig[:, 0 * MHH:1 * MHH]
        f_g = sig[:, 1 * MHH:2 * MHH]
        g_g = th[:, 2 * MHH:3 * MHH]
        o_g = sig[:, 3 * MHH:4 * MHH]
        c_new = f_g * c_prev + i_g * g_g
        h_new = o_g * jnp.tanh(c_new)
        return h_new, c_new

    zeros_h = jnp.zeros((B, MHH), jnp.float32)
    h_f = c_f = h_b = c_b = zeros_h
    acc_f = acc_b = zeros_h
    lens = jnp.zeros((B, 1), jnp.float32)

    # pack_padded_sequence semantics: fwd over the valid prefix; bwd starts at
    # the last valid token (state frozen at zero on trailing padding); padded
    # positions contribute nothing to the pooled sum.  T=8 -> fully unrolled.
    # TODO(synk): whh could be held in MXU weight regs across the 8 steps via
    # pltpu.matmul_push_rhs/matmul_acc_lhs; left to Mosaic's scheduler here.
    for i in range(T):
        tf, tb = i, T - 1 - i
        m_f = mask[tf * B:(tf + 1) * B, :]
        m_b = mask[tb * B:(tb + 1) * B, :]

        rec = jnp.dot(jnp.concatenate([h_f, h_b], axis=-1), whh,
                      preferred_element_type=jnp.float32)           # (B, 256)
        gates_f = xproj[tf * B:(tf + 1) * B, 0:GW] + rec[:, 0:GW]
        gates_b = xproj[tb * B:(tb + 1) * B, GW:2 * GW] + rec[:, GW:2 * GW]

        h_new, c_new = lstm_step(gates_f, c_f)
        acc_f = acc_f + h_new * m_f
        h_f = jnp.where(m_f > 0, h_new, h_f)
        c_f = jnp.where(m_f > 0, c_new, c_f)

        h_new, c_new = lstm_step(gates_b, c_b)
        acc_b = acc_b + h_new * m_b
        h_b = jnp.where(m_b > 0, h_new, h_b)
        c_b = jnp.where(m_b > 0, c_new, c_b)

        lens = lens + m_f

    inv_len = 1.0 / jnp.maximum(lens, 1.0)                          # exact div
    pool_f = acc_f * inv_len                                        # (B, MHH)
    pool_b = acc_b * inv_len

    # ---------------- per-model feature assembly + fused fc_el head ----------
    parts = []
    for m in range(M):
        parts += [lm_feats[:, m * E:(m + 1) * E],
                  pool_f[:, m * HH:(m + 1) * HH],
                  pool_b[:, m * HH:(m + 1) * HH]]
    full = jnp.concatenate(parts, axis=-1)                          # (B, MFEATS)

    hd = jnp.maximum(proj(full, 'fc_w1', 'fc_b1'), 0.0)             # (B, MHID)
    logits = proj(hd, 'fc_w2', 'fc_b2')                             # (B, M)

    pad = jnp.zeros((B, OUT_W - MFEATS - M), jnp.float32)
    out_ref[...] = jnp.concatenate([full, logits, pad], axis=-1)


# ---------------------------------------------------------------------------
# Ensemble forward: one fused pallas_call (no per-model grid).
# ---------------------------------------------------------------------------
def ensemble_forward(param_slab, seq, prot, prot_type, return_feats=False):
    Bb, Sq = seq.shape
    Tt = prot.shape[1]

    # Tiny int-id glue: batch-major flatten for LM tokens, time-major for the
    # flank tokens (contiguous per-timestep rows in the recurrence); all three
    # id streams merged into a single input column.
    seq_col = seq.reshape(Bb * Sq, 1).astype(jnp.int32)
    prot_col = jnp.transpose(prot, (1, 0)).reshape(Tt * Bb, 1).astype(jnp.int32)
    ptype_col = jnp.transpose(prot_type, (1, 0)).reshape(Tt * Bb, 1).astype(jnp.int32)
    ids = jnp.concatenate([seq_col, prot_col, ptype_col], axis=0)

    slab = pl.pallas_call(
        fused_ensemble_kernel,
        out_shape=jax.ShapeDtypeStruct((Bb, OUT_W), jnp.float32),
        grid=(1,),
        in_specs=[pl.BlockSpec(ids.shape, lambda i: (0, 0)),
                  pl.BlockSpec(param_slab.shape, lambda i: (0, 0))],
        out_specs=pl.BlockSpec((Bb, OUT_W), lambda i: (0, 0)),
        compiler_params=pltpu.CompilerParams(
            dimension_semantics=("arbitrary",)),
        cost_estimate=pl.CostEstimate(
            flops=2_500_000, transcendentals=20_000,
            bytes_accessed=SLAB_ROWS * SLAB_W * 4 + ids.size * 4 + Bb * OUT_W * 4),
    )(ids, param_slab)

    # host-side layout plumbing only (tiny)
    all_feats = jnp.transpose(
        slab[:, :M * FEATS_DIM].reshape(Bb, M, FEATS_DIM), (1, 0, 2))   # (M,B,64)
    all_logits = jnp.transpose(
        slab[:, M * FEATS_DIM:M * FEATS_DIM + M], (1, 0))[:, :, None]   # (M,B,1)
    if return_feats:
        return all_logits, all_feats
    return all_logits


# ---------------------------------------------------------------------------
# Parameter init (deterministic, synthetic; shapes follow MunisModel.__init__)
# ---------------------------------------------------------------------------
def init_munis_params(key):
    ks = list(jax.random.split(key, 16))

    def nrm(k, shape, scale=0.05):
        return scale * jax.random.normal(k, shape, dtype=jnp.float32)

    E, FF, HH, IN, F, H = (EMBED_DIM, FFN_DIM, H_HALF, LSTM_IN,
                           FEATS_DIM, HIDDEN_DIM)
    embed = jnp.zeros((VOCAB_PAD, E), jnp.float32).at[:VOCAB].set(
        nrm(ks[0], (VOCAB, E)))
    return {
        'embed_tokens': embed,
        'wq': nrm(ks[1], (E, E)), 'bq': jnp.zeros((1, E), jnp.float32),
        'wk': nrm(ks[2], (E, E)), 'bk': jnp.zeros((1, E), jnp.float32),
        'wv': nrm(ks[3], (E, E)), 'bv': jnp.zeros((1, E), jnp.float32),
        'wo': nrm(ks[4], (E, E)), 'bo': jnp.zeros((1, E), jnp.float32),
        'ln1_g': jnp.ones((1, E), jnp.float32), 'ln1_b': jnp.zeros((1, E), jnp.float32),
        'ln2_g': jnp.ones((1, E), jnp.float32), 'ln2_b': jnp.zeros((1, E), jnp.float32),
        'lnf_g': jnp.ones((1, E), jnp.float32), 'lnf_b': jnp.zeros((1, E), jnp.float32),
        'w_ffn1': nrm(ks[5], (E, FF)), 'b_ffn1': jnp.zeros((1, FF), jnp.float32),
        'w_ffn2': nrm(ks[6], (FF, E)), 'b_ffn2': jnp.zeros((1, E), jnp.float32),
        'prot_type_emb': nrm(ks[7], (2, NODE_DIM)),
        # LSTM weights stored pre-transposed: (In, 4H) / (H, 4H), cols i,f,g,o;
        # bias = b_ih + b_hh folded.
        'wih_f': nrm(ks[8], (IN, 4 * HH)), 'whh_f': nrm(ks[9], (HH, 4 * HH)),
        'b_f': nrm(ks[10], (1, 4 * HH)),
        'wih_b': nrm(ks[11], (IN, 4 * HH)), 'whh_b': nrm(ks[12], (HH, 4 * HH)),
        'b_b': nrm(ks[13], (1, 4 * HH)),
        'fc_w1': nrm(ks[14], (F, H)), 'fc_b1': jnp.zeros((1, H), jnp.float32),
        'fc_w2': nrm(ks[15], (H, 1)), 'fc_b2': jnp.zeros((1, 1), jnp.float32),
    }


def _block_matrices():
    ri = jnp.arange(ME)[:, None] // EMBED_DIM
    ci = jnp.arange(ME)[None, :] // EMBED_DIM
    ones = (ri == ci).astype(jnp.float32)
    return ones, ones / EMBED_DIM


def pack_ensemble_slab(per_model):
    """Fuse per-model params (lane-concat / block-diag) into one (R, 256) slab."""
    assert len(per_model) == NUM_MODELS

    def lane_cat(key):
        return jnp.concatenate([pm[key] for pm in per_model], axis=-1)

    def block_diag(key):
        mats = [pm[key] for pm in per_model]
        r, c = mats[0].shape
        out = jnp.zeros((M * r, M * c), jnp.float32)
        for m, w in enumerate(mats):
            out = out.at[m * r:(m + 1) * r, m * c:(m + 1) * c].set(w)
        return out

    blk_ones, blk_avg = _block_matrices()
    fused = {
        'embed_cat': lane_cat('embed_tokens'),
        'wq': block_diag('wq'), 'bq': lane_cat('bq'),
        'wk': block_diag('wk'), 'bk': lane_cat('bk'),
        'wv': block_diag('wv'), 'bv': lane_cat('bv'),
        'wo': block_diag('wo'), 'bo': lane_cat('bo'),
        'ln1_g': lane_cat('ln1_g'), 'ln1_b': lane_cat('ln1_b'),
        'ln2_g': lane_cat('ln2_g'), 'ln2_b': lane_cat('ln2_b'),
        'lnf_g': lane_cat('lnf_g'), 'lnf_b': lane_cat('lnf_b'),
        'w_ffn1': block_diag('w_ffn1'), 'b_ffn1': lane_cat('b_ffn1'),
        'w_ffn2': block_diag('w_ffn2'), 'b_ffn2': lane_cat('b_ffn2'),
        'type_emb': lane_cat('prot_type_emb'),
        'fc_w1': block_diag('fc_w1'), 'fc_b1': lane_cat('fc_b1'),
        'fc_w2': block_diag('fc_w2'), 'fc_b2': lane_cat('fc_b2'),
        'blk_ones': blk_ones, 'blk_avg': blk_avg,
    }

    # Fused BiLSTM weights.
    #   input rows  : [m0 emb(32), m1 emb(32), m0 type(16), m1 type(16)]
    #   h-state rows: [m0 h_f(16), m1 h_f(16), m0 h_b(16), m1 h_b(16)]
    #   gate lanes  : [fwd: i_m0,i_m1,f_m0,f_m1,g_m0,g_m1,o_m0,o_m1 | bwd: same]
    HH = H_HALF
    wih_all = jnp.zeros((M * LSTM_IN, 2 * GW), jnp.float32)
    whh_all = jnp.zeros((MHID, 2 * GW), jnp.float32)
    b_lstm = jnp.zeros((1, 2 * GW), jnp.float32)
    for m, pm in enumerate(per_model):
        for d, sfx in enumerate(('f', 'b')):
            wih, whh, bias = pm['wih_' + sfx], pm['whh_' + sfx], pm['b_' + sfx]
            for t in range(4):                      # PyTorch gate order i,f,g,o
                dc = d * GW + t * MHH + m * HH
                sc = t * HH
                wih_all = wih_all.at[m * EMBED_DIM:(m + 1) * EMBED_DIM,
                                     dc:dc + HH].set(wih[0:EMBED_DIM, sc:sc + HH])
                r0 = M * EMBED_DIM + m * NODE_DIM
                wih_all = wih_all.at[r0:r0 + NODE_DIM,
                                     dc:dc + HH].set(wih[EMBED_DIM:LSTM_IN, sc:sc + HH])
                hr = d * MHH + m * HH
                whh_all = whh_all.at[hr:hr + HH, dc:dc + HH].set(whh[:, sc:sc + HH])
                b_lstm = b_lstm.at[:, dc:dc + HH].set(bias[:, sc:sc + HH])
    fused['wih_all'] = wih_all
    fused['whh_all'] = whh_all
    fused['b_lstm'] = b_lstm

    slab = jnp.zeros((SLAB_ROWS, SLAB_W), jnp.float32)
    for name, nr, nc in PARAM_DEFS:
        r0, _, _ = LAYOUT[name]
        arr = fused[name]
        assert arr.shape == (nr, nc), (name, arr.shape, (nr, nc))
        slab = slab.at[r0:r0 + nr, 0:nc].set(arr)
    return slab


# ---------------------------------------------------------------------------
if __name__ == "__main__":
    key = jax.random.PRNGKey(0)
    k_seq, k_prot, k_type = jax.random.split(key, 3)

    seq = jax.random.randint(k_seq, (B, S), 1, VOCAB, dtype=jnp.int32)
    prot = jax.random.randint(k_prot, (B, T), 1, VOCAB, dtype=jnp.int32)
    flank_lens = jnp.array([T, 5], dtype=jnp.int32)      # second flank is padded
    pos = jnp.arange(T, dtype=jnp.int32)[None, :]
    prot = jnp.where(pos < flank_lens[:, None], prot, PAD_ID)
    prot_type = (jax.random.uniform(k_type, (B, T)) > 0.5).astype(jnp.int32)

    model_keys = jax.random.split(jax.random.PRNGKey(42), NUM_MODELS)
    per_model = [init_munis_params(k) for k in model_keys]
    param_slab = pack_ensemble_slab(per_model)

    fwd = jax.jit(functools.partial(ensemble_forward, return_feats=True))
    all_logits, all_feats = fwd(param_slab, seq, prot, prot_type)
    jax.block_until_ready((all_logits, all_feats))

    assert all_logits.shape == (NUM_MODELS, B, 1), all_logits.shape
    assert all_feats.shape == (NUM_MODELS, B, FEATS_DIM), all_feats.shape
    assert bool(jnp.all(jnp.isfinite(all_logits)))
    assert bool(jnp.all(jnp.isfinite(all_feats)))
    print("KERNEL_OK")
</pallas_src>

<mosaic_0001>
module attributes {stable_mosaic.version = 11 : i64} {
  func.func @fused_ensemble_kernel(%arg0: i32, %arg1: memref<48x1xi32, #tpu.memory_space<vmem>>, %arg2: memref<1232x256xf32, #tpu.memory_space<vmem>>, %arg3: memref<2x256xf32, #tpu.memory_space<vmem>>) attributes {dimension_semantics = [#tpu.dimension_semantics<arbitrary>], iteration_bounds = array<i64: 1>, scalar_prefetch = 0 : i64, scratch_operands = 0 : i64, tpu.core_type = #tpu.core_type<tc>, window_params = [{pipeline_mode = #tpu.pipeline_mode<synchronous>, transform_indices = @transform_0, window_bounds = array<i64: 48, 1>}, {pipeline_mode = #tpu.pipeline_mode<synchronous>, transform_indices = @transform_1, window_bounds = array<i64: 1232, 256>}, {pipeline_mode = #tpu.pipeline_mode<synchronous>, transform_indices = @transform_2, window_bounds = array<i64: 2, 256>}]} {
    %c1104 = arith.constant 1104 : index
    %c0 = arith.constant 0 : index
    %0 = vector.load %arg2[%c1104, %c0] : memref<1232x256xf32, #tpu.memory_space<vmem>>, vector<64x64xf32>
    %c1168 = arith.constant 1168 : index
    %c0_0 = arith.constant 0 : index
    %1 = vector.load %arg2[%c1168, %c0_0] : memref<1232x256xf32, #tpu.memory_space<vmem>>, vector<64x64xf32>
    %c0_1 = arith.constant 0 : index
    %c0_2 = arith.constant 0 : index
    %2 = vector.load %arg1[%c0_1, %c0_2] : memref<48x1xi32, #tpu.memory_space<vmem>>, vector<32x1xi32>
    %3 = tpu.iota {dimensions = array<i32: 1>} : vector<32x48xi32>
    %4 = vector.broadcast %2 : vector<32x1xi32> to vector<32x48xi32>
    %5 = arith.cmpi eq, %4, %3 : vector<32x48xi32>
    %6 = arith.extui %5 : vector<32x48xi1> to vector<32x48xi32>
    %7 = arith.sitofp %6 : vector<32x48xi32> to vector<32x48xf32>
    %c0_3 = arith.constant 0 : index
    %c0_4 = arith.constant 0 : index
    %8 = vector.load %arg2[%c0_3, %c0_4] : memref<1232x256xf32, #tpu.memory_space<vmem>>, vector<48x64xf32>
    %cst = arith.constant dense<0.000000e+00> : vector<32x64xf32>
    %9 = tpu.matmul %7, %8, %cst {dimension_numbers = #tpu.dot_dimension_numbers<[1], [0], [0], [1], [0, 0, 1, 1], [], []>} : vector<32x48xf32>, vector<48x64xf32>, vector<32x64xf32> -> vector<32x64xf32>
    %10 = vector.extract_strided_slice %9 {offsets = [0, 0], sizes = [16, 64], strides = [1, 1]} : vector<32x64xf32> to vector<16x64xf32>
    %11 = vector.extract_strided_slice %9 {offsets = [16, 0], sizes = [16, 64], strides = [1, 1]} : vector<32x64xf32> to vector<16x64xf32>
    %12 = vector.extract_strided_slice %2 {offsets = [16, 0], sizes = [16, 1], strides = [1, 1]} : vector<32x1xi32> to vector<16x1xi32>
    %cst_5 = arith.constant dense<0.000000e+00> : vector<16x64xf32>
    %13 = tpu.matmul %10, %1, %cst_5 {dimension_numbers = #tpu.dot_dimension_numbers<[1], [0], [0], [1], [0, 0, 1, 1], [], []>} : vector<16x64xf32>, vector<64x64xf32>, vector<16x64xf32> -> vector<16x64xf32>
    %14 = arith.subf %10, %13 : vector<16x64xf32>
    %15 = arith.mulf %14, %14 : vector<16x64xf32>
    %cst_6 = arith.constant dense<0.000000e+00> : vector<16x64xf32>
    %16 = tpu.matmul %15, %1, %cst_6 {dimension_numbers = #tpu.dot_dimension_numbers<[1], [0], [0], [1], [0, 0, 1, 1], [], []>} : vector<16x64xf32>, vector<64x64xf32>, vector<16x64xf32> -> vector<16x64xf32>
    %cst_7 = arith.constant 9.99999974E-6 : f32
    %17 = vector.broadcast %cst_7 : f32 to vector<16x64xf32>
    %18 = arith.addf %16, %17 : vector<16x64xf32>
    %19 = math.rsqrt %18 : vector<16x64xf32>
    %20 = arith.mulf %14, %19 : vector<16x64xf32>
    %c336 = arith.constant 336 : index
    %c0_8 = arith.constant 0 : index
    %21 = vector.load %arg2[%c336, %c0_8] : memref<1232x256xf32, #tpu.memory_space<vmem>>, vector<1x64xf32>
    %22 = vector.broadcast %21 : vector<1x64xf32> to vector<16x64xf32>
    %23 = arith.mulf %20, %22 : vector<16x64xf32>
    %c344 = arith.constant 344 : index
    %c0_9 = arith.constant 0 : index
    %24 = vector.load %arg2[%c344, %c0_9] : memref<1232x256xf32, #tpu.memory_space<vmem>>, vector<1x64xf32>
    %25 = vector.broadcast %24 : vector<1x64xf32> to vector<16x64xf32>
    %26 = arith.addf %23, %25 : vector<16x64xf32>
    %c120 = arith.constant 120 : index
    %c0_10 = arith.constant 0 : index
    %27 = vector.load %arg2[%c120, %c0_10] : memref<1232x256xf32, #tpu.memory_space<vmem>>, vector<64x64xf32>
    %cst_11 = arith.constant dense<0.000000e+00> : vector<16x64xf32>
    %28 = tpu.matmul %26, %27, %cst_11 {dimension_numbers = #tpu.dot_dimension_numbers<[1], [0], [0], [1], [0, 0, 1, 1], [], []>} : vector<16x64xf32>, vector<64x64xf32>, vector<16x64xf32> -> vector<16x64xf32>
    %c184 = arith.constant 184 : index
    %c0_12 = arith.constant 0 : index
    %29 = vector.load %arg2[%c184, %c0_12] : memref<1232x256xf32, #tpu.memory_space<vmem>>, vector<1x64xf32>
    %30 = vector.broadcast %29 : vector<1x64xf32> to vector<16x64xf32>
    %31 = arith.addf %28, %30 : vector<16x64xf32>
    %32 = vector.shape_cast %31 : vector<16x64xf32> to vector<2x8x64xf32>
    %c192 = arith.constant 192 : index
    %c0_13 = arith.constant 0 : index
    %33 = vector.load %arg2[%c192, %c0_13] : memref<1232x256xf32, #tpu.memory_space<vmem>>, vector<64x64xf32>
    %cst_14 = arith.constant dense<0.000000e+00> : vector<16x64xf32>
    %34 = tpu.matmul %26, %33, %cst_14 {dimension_numbers = #tpu.dot_dimension_numbers<[1], [0], [0], [1], [0, 0, 1, 1], [], []>} : vector<16x64xf32>, vector<64x64xf32>, vector<16x64xf32> -> vector<16x64xf32>
    %c256 = arith.constant 256 : index
    %c0_15 = arith.constant 0 : index
    %35 = vector.load %arg2[%c256, %c0_15] : memref<1232x256xf32, #tpu.memory_space<vmem>>, vector<1x64xf32>
    %36 = vector.broadcast %35 : vector<1x64xf32> to vector<16x64xf32>
    %37 = arith.addf %34, %36 : vector<16x64xf32>
    %38 = vector.shape_cast %37 : vector<16x64xf32> to vector<2x8x64xf32>
    %39 = vector.shape_cast %26 : vector<16x64xf32> to vector<2x8x64xf32>
    %40 = vector.extract_strided_slice %39 {offsets = [0, 0, 0], sizes = [2, 1, 64], strides = [1, 1, 1]} : vector<2x8x64xf32> to vector<2x1x64xf32>
    %41 = vector.shape_cast %40 : vector<2x1x64xf32> to vector<2x64xf32>
    %42 = vector.shape_cast %10 : vector<16x64xf32> to vector<2x8x64xf32>
    %43 = vector.extract_strided_slice %42 {offsets = [0, 0, 0], sizes = [2, 1, 64], strides = [1, 1, 1]} : vector<2x8x64xf32> to vector<2x1x64xf32>
    %44 = vector.shape_cast %43 : vector<2x1x64xf32> to vector<2x64xf32>
    %c48 = arith.constant 48 : index
    %c0_16 = arith.constant 0 : index
    %45 = vector.load %arg2[%c48, %c0_16] : memref<1232x256xf32, #tpu.memory_space<vmem>>, vector<64x64xf32>
    %cst_17 = arith.constant dense<0.000000e+00> : vector<2x64xf32>
    %46 = tpu.matmul %41, %45, %cst_17 {dimension_numbers = #tpu.dot_dimension_numbers<[1], [0], [0], [1], [0, 0, 1, 1], [], []>} : vector<2x64xf32>, vector<64x64xf32>, vector<2x64xf32> -> vector<2x64xf32>
    %c112 = arith.constant 112 : index
    %c0_18 = arith.constant 0 : index
    %47 = vector.load %arg2[%c112, %c0_18] : memref<1232x256xf32, #tpu.memory_space<vmem>>, vector<1x64xf32>
    %48 = vector.broadcast %47 : vector<1x64xf32> to vector<2x64xf32>
    %49 = arith.addf %46, %48 : vector<2x64xf32>
    %50 = vector.shape_cast %49 : vector<2x64xf32> to vector<2x1x64xf32>
    %51 = vector.broadcast %50 : vector<2x1x64xf32> to vector<2x8x64xf32>
    %52 = arith.mulf %51, %32 : vector<2x8x64xf32>
    %53 = vector.shape_cast %52 : vector<2x8x64xf32> to vector<16x64xf32>
    %cst_19 = arith.constant dense<0.000000e+00> : vector<16x64xf32>
    %54 = tpu.matmul %53, %0, %cst_19 {dimension_numbers = #tpu.dot_dimension_numbers<[1], [0], [0], [1], [0, 0, 1, 1], [], []>} : vector<16x64xf32>, vector<64x64xf32>, vector<16x64xf32> -> vector<16x64xf32>
    %55 = vector.shape_cast %54 : vector<16x64xf32> to vector<2x8x64xf32>
    %cst_20 = arith.constant 0.176776692 : f32
    %56 = vector.broadcast %cst_20 : f32 to vector<2x8x64xf32>
    %57 = arith.mulf %55, %56 : vector<2x8x64xf32>
    %cst_21 = arith.constant dense<0xFF800000> : vector<2x64xf32>
    %58 = vector.multi_reduction <maximumf>, %57, %cst_21 [1] : vector<2x8x64xf32> to vector<2x64xf32>
    %59 = vector.shape_cast %58 : vector<2x64xf32> to vector<2x1x64xf32>
    %60 = vector.broadcast %59 : vector<2x1x64xf32> to vector<2x8x64xf32>
    %61 = arith.subf %57, %60 : vector<2x8x64xf32>
    %62 = math.exp %61 : vector<2x8x64xf32>
    %cst_22 = arith.constant dense<0.000000e+00> : vector<2x64xf32>
    %63 = vector.multi_reduction <add>, %62, %cst_22 [1] : vector<2x8x64xf32> to vector<2x64xf32>
    %64 = vector.shape_cast %63 : vector<2x64xf32> to vector<2x1x64xf32>
    %65 = vector.broadcast %64 : vector<2x1x64xf32> to vector<2x8x64xf32>
    %66 = arith.divf %62, %65 : vector<2x8x64xf32>
    %67 = arith.mulf %66, %38 : vector<2x8x64xf32>
    %cst_23 = arith.constant dense<0.000000e+00> : vector<2x64xf32>
    %68 = vector.multi_reduction <add>, %67, %cst_23 [1] : vector<2x8x64xf32> to vector<2x64xf32>
    %c264 = arith.constant 264 : index
    %c0_24 = arith.constant 0 : index
    %69 = vector.load %arg2[%c264, %c0_24] : memref<1232x256xf32, #tpu.memory_space<vmem>>, vector<64x64xf32>
    %cst_25 = arith.constant dense<0.000000e+00> : vector<2x64xf32>
    %70 = tpu.matmul %68, %69, %cst_25 {dimension_numbers = #tpu.dot_dimension_numbers<[1], [0], [0], [1], [0, 0, 1, 1], [], []>} : vector<2x64xf32>, vector<64x64xf32>, vector<2x64xf32> -> vector<2x64xf32>
    %c328 = arith.constant 328 : index
    %c0_26 = arith.constant 0 : index
    %71 = vector.load %arg2[%c328, %c0_26] : memref<1232x256xf32, #tpu.memory_space<vmem>>, vector<1x64xf32>
    %72 = vector.broadcast %71 : vector<1x64xf32> to vector<2x64xf32>
    %73 = arith.addf %70, %72 : vector<2x64xf32>
    %74 = arith.addf %44, %73 : vector<2x64xf32>
    %cst_27 = arith.constant dense<0.000000e+00> : vector<2x64xf32>
    %75 = tpu.matmul %74, %1, %cst_27 {dimension_numbers = #tpu.dot_dimension_numbers<[1], [0], [0], [1], [0, 0, 1, 1], [], []>} : vector<2x64xf32>, vector<64x64xf32>, vector<2x64xf32> -> vector<2x64xf32>
    %76 = arith.subf %74, %75 : vector<2x64xf32>
    %77 = arith.mulf %76, %76 : vector<2x64xf32>
    %cst_28 = arith.constant dense<0.000000e+00> : vector<2x64xf32>
    %78 = tpu.matmul %77, %1, %cst_28 {dimension_numbers = #tpu.dot_dimension_numbers<[1], [0], [0], [1], [0, 0, 1, 1], [], []>} : vector<2x64xf32>, vector<64x64xf32>, vector<2x64xf32> -> vector<2x64xf32>
    %cst_29 = arith.constant 9.99999974E-6 : f32
    %79 = vector.broadcast %cst_29 : f32 to vector<2x64xf32>
    %80 = arith.addf %78, %79 : vector<2x64xf32>
    %81 = math.rsqrt %80 : vector<2x64xf32>
    %82 = arith.mulf %76, %81 : vector<2x64xf32>
    %c352 = arith.constant 352 : index
    %c0_30 = arith.constant 0 : index
    %83 = vector.load %arg2[%c352, %c0_30] : memref<1232x256xf32, #tpu.memory_space<vmem>>, vector<1x64xf32>
    %84 = vector.broadcast %83 : vector<1x64xf32> to vector<2x64xf32>
    %85 = arith.mulf %82, %84 : vector<2x64xf32>
    %c360 = arith.constant 360 : index
    %c0_31 = arith.constant 0 : index
    %86 = vector.load %arg2[%c360, %c0_31] : memref<1232x256xf32, #tpu.memory_space<vmem>>, vector<1x64xf32>
    %87 = vector.broadcast %86 : vector<1x64xf32> to vector<2x64xf32>
    %88 = arith.addf %85, %87 : vector<2x64xf32>
    %c384 = arith.constant 384 : index
    %c0_32 = arith.constant 0 : index
    %89 = vector.load %arg2[%c384, %c0_32] : memref<1232x256xf32, #tpu.memory_space<vmem>>, vector<64x256xf32>
    %cst_33 = arith.constant dense<0.000000e+00> : vector<2x256xf32>
    %90 = tpu.matmul %88, %89, %cst_33 {dimension_numbers = #tpu.dot_dimension_numbers<[1], [0], [0], [1], [0, 0, 1, 1], [], []>} : vector<2x64xf32>, vector<64x256xf32>, vector<2x256xf32> -> vector<2x256xf32>
    %c448 = arith.constant 448 : index
    %c0_34 = arith.constant 0 : index
    %91 = vector.load %arg2[%c448, %c0_34] : memref<1232x256xf32, #tpu.memory_space<vmem>>, vector<1x256xf32>
    %92 = vector.broadcast %91 : vector<1x256xf32> to vector<2x256xf32>
    %93 = arith.addf %90, %92 : vector<2x256xf32>
    %94 = arith.mulf %93, %93 : vector<2x256xf32>
    %95 = arith.mulf %93, %94 : vector<2x256xf32>
    %cst_35 = arith.constant 4.471500e-02 : f32
    %96 = vector.broadcast %cst_35 : f32 to vector<2x256xf32>
    %97 = arith.mulf %96, %95 : vector<2x256xf32>
    %98 = arith.addf %93, %97 : vector<2x256xf32>
    %cst_36 = arith.constant 0.797884583 : f32
    %99 = vector.broadcast %cst_36 : f32 to vector<2x256xf32>
    %100 = arith.mulf %99, %98 : vector<2x256xf32>
    %101 = math.tanh %100 : vector<2x256xf32>
    %cst_37 = arith.constant 1.000000e+00 : f32
    %102 = vector.broadcast %cst_37 : f32 to vector<2x256xf32>
    %103 = arith.addf %102, %101 : vector<2x256xf32>
    %cst_38 = arith.constant 5.000000e-01 : f32
    %104 = vector.broadcast %cst_38 : f32 to vector<2x256xf32>
    %105 = arith.mulf %104, %103 : vector<2x256xf32>
    %106 = arith.mulf %93, %105 : vector<2x256xf32>
    %c456 = arith.constant 456 : index
    %c0_39 = arith.constant 0 : index
    %107 = vector.load %arg2[%c456, %c0_39] : memref<1232x256xf32, #tpu.memory_space<vmem>>, vector<256x64xf32>
    %cst_40 = arith.constant dense<0.000000e+00> : vector<2x64xf32>
    %108 = tpu.matmul %106, %107, %cst_40 {dimension_numbers = #tpu.dot_dimension_numbers<[1], [0], [0], [1], [0, 0, 1, 1], [], []>} : vector<2x256xf32>, vector<256x64xf32>, vector<2x64xf32> -> vector<2x64xf32>
    %c712 = arith.constant 712 : index
    %c0_41 = arith.constant 0 : index
    %109 = vector.load %arg2[%c712, %c0_41] : memref<1232x256xf32, #tpu.memory_space<vmem>>, vector<1x64xf32>
    %110 = vector.broadcast %109 : vector<1x64xf32> to vector<2x64xf32>
    %111 = arith.addf %108, %110 : vector<2x64xf32>
    %112 = arith.addf %74, %111 : vector<2x64xf32>
    %cst_42 = arith.constant dense<0.000000e+00> : vector<2x64xf32>
    %113 = tpu.matmul %112, %1, %cst_42 {dimension_numbers = #tpu.dot_dimension_numbers<[1], [0], [0], [1], [0, 0, 1, 1], [], []>} : vector<2x64xf32>, vector<64x64xf32>, vector<2x64xf32> -> vector<2x64xf32>
    %114 = arith.subf %112, %113 : vector<2x64xf32>
    %115 = arith.mulf %114, %114 : vector<2x64xf32>
    %cst_43 = arith.constant dense<0.000000e+00> : vector<2x64xf32>
    %116 = tpu.matmul %115, %1, %cst_43 {dimension_numbers = #tpu.dot_dimension_numbers<[1], [0], [0], [1], [0, 0, 1, 1], [], []>} : vector<2x64xf32>, vector<64x64xf32>, vector<2x64xf32> -> vector<2x64xf32>
    %cst_44 = arith.constant 9.99999974E-6 : f32
    %117 = vector.broadcast %cst_44 : f32 to vector<2x64xf32>
    %118 = arith.addf %116, %117 : vector<2x64xf32>
    %119 = math.rsqrt %118 : vector<2x64xf32>
    %120 = arith.mulf %114, %119 : vector<2x64xf32>
    %c368 = arith.constant 368 : index
    %c0_45 = arith.constant 0 : index
    %121 = vector.load %arg2[%c368, %c0_45] : memref<1232x256xf32, #tpu.memory_space<vmem>>, vector<1x64xf32>
    %122 = vector.broadcast %121 : vector<1x64xf32> to vector<2x64xf32>
    %123 = arith.mulf %120, %122 : vector<2x64xf32>
    %c376 = arith.constant 376 : index
    %c0_46 = arith.constant 0 : index
    %124 = vector.load %arg2[%c376, %c0_46] : memref<1232x256xf32, #tpu.memory_space<vmem>>, vector<1x64xf32>
    %125 = vector.broadcast %124 : vector<1x64xf32> to vector<2x64xf32>
    %126 = arith.addf %123, %125 : vector<2x64xf32>
    %c32 = arith.constant 32 : index
    %c0_47 = arith.constant 0 : index
    %127 = vector.load %arg1[%c32, %c0_47] : memref<48x1xi32, #tpu.memory_space<vmem>>, vector<16x1xi32>
    %128 = arith.sitofp %127 : vector<16x1xi32> to vector<16x1xf32>
    %c720 = arith.constant 720 : index
    %c0_48 = arith.constant 0 : index
    %129 = vector.load %arg2[%c720, %c0_48] : memref<1232x256xf32, #tpu.memory_space<vmem>>, vector<2x32xf32>
    %130 = vector.extract_strided_slice %129 {offsets = [1, 0], sizes = [1, 32], strides = [1, 1]} : vector<2x32xf32> to vector<1x32xf32>
    %131 = vector.broadcast %128 : vector<16x1xf32> to vector<16x32xf32>
    %132 = vector.broadcast %130 : vector<1x32xf32> to vector<16x32xf32>
    %133 = arith.mulf %131, %132 : vector<16x32xf32>
    %cst_49 = arith.constant 1.000000e+00 : f32
    %134 = vector.broadcast %cst_49 : f32 to vector<16x1xf32>
    %135 = arith.subf %134, %128 : vector<16x1xf32>
    %136 = vector.extract_strided_slice %129 {offsets = [0, 0], sizes = [1, 32], strides = [1, 1]} : vector<2x32xf32> to vector<1x32xf32>
    %137 = vector.broadcast %135 : vector<16x1xf32> to vector<16x32xf32>
    %138 = vector.broadcast %136 : vector<1x32xf32> to vector<16x32xf32>
    %139 = arith.mulf %137, %138 : vector<16x32xf32>
    %140 = arith.addf %133, %139 : vector<16x32xf32>
    %141 = tpu.concatenate %11, %140 in 1 : vector<16x64xf32>, vector<16x32xf32> -> vector<16x96xf32>
    %c0_i32 = arith.constant 0 : i32
    %142 = vector.broadcast %c0_i32 : i32 to vector<16x1xi32>
    %143 = arith.cmpi ne, %12, %142 : vector<16x1xi32>
    %144 = arith.extui %143 : vector<16x1xi1> to vector<16x1xi32>
    %145 = arith.sitofp %144 : vector<16x1xi32> to vector<16x1xf32>
    %c728 = arith.constant 728 : index
    %c0_50 = arith.constant 0 : index
    %146 = vector.load %arg2[%c728, %c0_50] : memref<1232x256xf32, #tpu.memory_space<vmem>>, vector<96x256xf32>
    %cst_51 = arith.constant dense<0.000000e+00> : vector<16x256xf32>
    %147 = tpu.matmul %141, %146, %cst_51 {dimension_numbers = #tpu.dot_dimension_numbers<[1], [0], [0], [1], [0, 0, 1, 1], [], []>} : vector<16x96xf32>, vector<96x256xf32>, vector<16x256xf32> -> vector<16x256xf32>
    %c824 = arith.constant 824 : index
    %c0_52 = arith.constant 0 : index
    %148 = vector.load %arg2[%c824, %c0_52] : memref<1232x256xf32, #tpu.memory_space<vmem>>, vector<1x256xf32>
    %149 = vector.broadcast %148 : vector<1x256xf32> to vector<16x256xf32>
    %150 = arith.addf %147, %149 : vector<16x256xf32>
    %c832 = arith.constant 832 : index
    %c0_53 = arith.constant 0 : index
    %151 = vector.load %arg2[%c832, %c0_53] : memref<1232x256xf32, #tpu.memory_space<vmem>>, vector<64x256xf32>
    %cst_54 = arith.constant 0.000000e+00 : f32
    %152 = vector.broadcast %cst_54 : f32 to vector<2x32xf32>
    %cst_55 = arith.constant 0.000000e+00 : f32
    %153 = vector.broadcast %cst_55 : f32 to vector<2x1xf32>
    %154 = vector.extract_strided_slice %145 {offsets = [0, 0], sizes = [2, 1], strides = [1, 1]} : vector<16x1xf32> to vector<2x1xf32>
    %155 = vector.extract_strided_slice %145 {offsets = [14, 0], sizes = [2, 1], strides = [1, 1]} : vector<16x1xf32> to vector<2x1xf32>
    %156 = tpu.concatenate %152, %152 in 1 : vector<2x32xf32>, vector<2x32xf32> -> vector<2x64xf32>
    %cst_56 = arith.constant dense<0.000000e+00> : vector<2x256xf32>
    %157 = tpu.matmul %156, %151, %cst_56 {dimension_numbers = #tpu.dot_dimension_numbers<[1], [0], [0], [1], [0, 0, 1, 1], [], []>} : vector<2x64xf32>, vector<64x256xf32>, vector<2x256xf32> -> vector<2x256xf32>
    %158 = vector.extract_strided_slice %150 {offsets = [0, 0], sizes = [2, 128], strides = [1, 1]} : vector<16x256xf32> to vector<2x128xf32>
    %159 = vector.extract_strided_slice %157 {offsets = [0, 0], sizes = [2, 128], strides = [1, 1]} : vector<2x256xf32> to vector<2x128xf32>
    %160 = arith.addf %158, %159 : vector<2x128xf32>
    %161 = vector.extract_strided_slice %150 {offsets = [14, 128], sizes = [2, 128], strides = [1, 1]} : vector<16x256xf32> to vector<2x128xf32>
    %162 = vector.extract_strided_slice %157 {offsets = [0, 128], sizes = [2, 128], strides = [1, 1]} : vector<2x256xf32> to vector<2x128xf32>
    %163 = arith.addf %161, %162 : vector<2x128xf32>
    %164 = arith.negf %160 : vector<2x128xf32>
    %165 = math.exp %164 : vector<2x128xf32>
    %cst_57 = arith.constant 1.000000e+00 : f32
    %166 = vector.broadcast %cst_57 : f32 to vector<2x128xf32>
    %167 = arith.addf %166, %165 : vector<2x128xf32>
    %168 = arith.divf %166, %167 : vector<2x128xf32>
    %169 = math.tanh %160 : vector<2x128xf32>
    %170 = vector.extract_strided_slice %168 {offsets = [0, 0], sizes = [2, 32], strides = [1, 1]} : vector<2x128xf32> to vector<2x32xf32>
    %171 = vector.extract_strided_slice %168 {offsets = [0, 32], sizes = [2, 32], strides = [1, 1]} : vector<2x128xf32> to vector<2x32xf32>
    %172 = vector.extract_strided_slice %169 {offsets = [0, 64], sizes = [2, 32], strides = [1, 1]} : vector<2x128xf32> to vector<2x32xf32>
    %173 = vector.extract_strided_slice %168 {offsets = [0, 96], sizes = [2, 32], strides = [1, 1]} : vector<2x128xf32> to vector<2x32xf32>
    %174 = arith.mulf %171, %152 : vector<2x32xf32>
    %175 = arith.mulf %170, %172 : vector<2x32xf32>
    %176 = arith.addf %174, %175 : vector<2x32xf32>
    %177 = math.tanh %176 : vector<2x32xf32>
    %178 = arith.mulf %173, %177 : vector<2x32xf32>
    %179 = vector.broadcast %154 : vector<2x1xf32> to vector<2x32xf32>
    %180 = arith.mulf %178, %179 : vector<2x32xf32>
    %181 = arith.addf %152, %180 : vector<2x32xf32>
    %cst_58 = arith.constant 0.000000e+00 : f32
    %182 = vector.broadcast %cst_58 : f32 to vector<2x1xf32>
    %183 = arith.cmpf ogt, %154, %182 : vector<2x1xf32>
    %184 = vector.shape_cast %183 : vector<2x1xi1> to vector<2x1xi1>
    %185 = vector.broadcast %184 : vector<2x1xi1> to vector<2x32xi1>
    %186 = arith.select %185, %178, %152 : vector<2x32xi1>, vector<2x32xf32>
    %cst_59 = arith.constant 0.000000e+00 : f32
    %187 = vector.broadcast %cst_59 : f32 to vector<2x1xf32>
    %188 = arith.cmpf ogt, %154, %187 : vector<2x1xf32>
    %189 = vector.shape_cast %188 : vector<2x1xi1> to vector<2x1xi1>
    %190 = vector.broadcast %189 : vector<2x1xi1> to vector<2x32xi1>
    %191 = arith.select %190, %176, %152 : vector<2x32xi1>, vector<2x32xf32>
    %192 = arith.negf %163 : vector<2x128xf32>
    %193 = math.exp %192 : vector<2x128xf32>
    %cst_60 = arith.constant 1.000000e+00 : f32
    %194 = vector.broadcast %cst_60 : f32 to vector<2x128xf32>
    %195 = arith.addf %194, %193 : vector<2x128xf32>
    %196 = arith.divf %194, %195 : vector<2x128xf32>
    %197 = math.tanh %163 : vector<2x128xf32>
    %198 = vector.extract_strided_slice %196 {offsets = [0, 0], sizes = [2, 32], strides = [1, 1]} : vector<2x128xf32> to vector<2x32xf32>
    %199 = vector.extract_strided_slice %196 {offsets = [0, 32], sizes = [2, 32], strides = [1, 1]} : vector<2x128xf32> to vector<2x32xf32>
    %200 = vector.extract_strided_slice %197 {offsets = [0, 64], sizes = [2, 32], strides = [1, 1]} : vector<2x128xf32> to vector<2x32xf32>
    %201 = vector.extract_strided_slice %196 {offsets = [0, 96], sizes = [2, 32], strides = [1, 1]} : vector<2x128xf32> to vector<2x32xf32>
    %202 = arith.mulf %199, %152 : vector<2x32xf32>
    %203 = arith.mulf %198, %200 : vector<2x32xf32>
    %204 = arith.addf %202, %203 : vector<2x32xf32>
    %205 = math.tanh %204 : vector<2x32xf32>
    %206 = arith.mulf %201, %205 : vector<2x32xf32>
    %207 = vector.broadcast %155 : vector<2x1xf32> to vector<2x32xf32>
    %208 = arith.mulf %206, %207 : vector<2x32xf32>
    %209 = arith.addf %152, %208 : vector<2x32xf32>
    %cst_61 = arith.constant 0.000000e+00 : f32
    %210 = vector.broadcast %cst_61 : f32 to vector<2x1xf32>
    %211 = arith.cmpf ogt, %155, %210 : vector<2x1xf32>
    %212 = vector.shape_cast %211 : vector<2x1xi1> to vector<2x1xi1>
    %213 = vector.broadcast %212 : vector<2x1xi1> to vector<2x32xi1>
    %214 = arith.select %213, %206, %152 : vector<2x32xi1>, vector<2x32xf32>
    %cst_62 = arith.constant 0.000000e+00 : f32
    %215 = vector.broadcast %cst_62 : f32 to vector<2x1xf32>
    %216 = arith.cmpf ogt, %155, %215 : vector<2x1xf32>
    %217 = vector.shape_cast %216 : vector<2x1xi1> to vector<2x1xi1>
    %218 = vector.broadcast %217 : vector<2x1xi1> to vector<2x32xi1>
    %219 = arith.select %218, %204, %152 : vector<2x32xi1>, vector<2x32xf32>
    %220 = arith.addf %153, %154 : vector<2x1xf32>
    %221 = vector.extract_strided_slice %145 {offsets = [2, 0], sizes = [2, 1], strides = [1, 1]} : vector<16x1xf32> to vector<2x1xf32>
    %222 = vector.extract_strided_slice %145 {offsets = [12, 0], sizes = [2, 1], strides = [1, 1]} : vector<16x1xf32> to vector<2x1xf32>
    %223 = tpu.concatenate %186, %214 in 1 : vector<2x32xf32>, vector<2x32xf32> -> vector<2x64xf32>
    %cst_63 = arith.constant dense<0.000000e+00> : vector<2x256xf32>
    %224 = tpu.matmul %223, %151, %cst_63 {dimension_numbers = #tpu.dot_dimension_numbers<[1], [0], [0], [1], [0, 0, 1, 1], [], []>} : vector<2x64xf32>, vector<64x256xf32>, vector<2x256xf32> -> vector<2x256xf32>
    %225 = vector.extract_strided_slice %150 {offsets = [2, 0], sizes = [2, 128], strides = [1, 1]} : vector<16x256xf32> to vector<2x128xf32>
    %226 = vector.extract_strided_slice %224 {offsets = [0, 0], sizes = [2, 128], strides = [1, 1]} : vector<2x256xf32> to vector<2x128xf32>
    %227 = arith.addf %225, %226 : vector<2x128xf32>
    %228 = vector.extract_strided_slice %150 {offsets = [12, 128], sizes = [2, 128], strides = [1, 1]} : vector<16x256xf32> to vector<2x128xf32>
    %229 = vector.extract_strided_slice %224 {offsets = [0, 128], sizes = [2, 128], strides = [1, 1]} : vector<2x256xf32> to vector<2x128xf32>
    %230 = arith.addf %228, %229 : vector<2x128xf32>
    %231 = arith.negf %227 : vector<2x128xf32>
    %232 = math.exp %231 : vector<2x128xf32>
    %cst_64 = arith.constant 1.000000e+00 : f32
    %233 = vector.broadcast %cst_64 : f32 to vector<2x128xf32>
    %234 = arith.addf %233, %232 : vector<2x128xf32>
    %235 = arith.divf %233, %234 : vector<2x128xf32>
    %236 = math.tanh %227 : vector<2x128xf32>
    %237 = vector.extract_strided_slice %235 {offsets = [0, 0], sizes = [2, 32], strides = [1, 1]} : vector<2x128xf32> to vector<2x32xf32>
    %238 = vector.extract_strided_slice %235 {offsets = [0, 32], sizes = [2, 32], strides = [1, 1]} : vector<2x128xf32> to vector<2x32xf32>
    %239 = vector.extract_strided_slice %236 {offsets = [0, 64], sizes = [2, 32], strides = [1, 1]} : vector<2x128xf32> to vector<2x32xf32>
    %240 = vector.extract_strided_slice %235 {offsets = [0, 96], sizes = [2, 32], strides = [1, 1]} : vector<2x128xf32> to vector<2x32xf32>
    %241 = arith.mulf %238, %191 : vector<2x32xf32>
    %242 = arith.mulf %237, %239 : vector<2x32xf32>
    %243 = arith.addf %241, %242 : vector<2x32xf32>
    %244 = math.tanh %243 : vector<2x32xf32>
    %245 = arith.mulf %240, %244 : vector<2x32xf32>
    %246 = vector.broadcast %221 : vector<2x1xf32> to vector<2x32xf32>
    %247 = arith.mulf %245, %246 : vector<2x32xf32>
    %248 = arith.addf %181, %247 : vector<2x32xf32>
    %cst_65 = arith.constant 0.000000e+00 : f32
    %249 = vector.broadcast %cst_65 : f32 to vector<2x1xf32>
    %250 = arith.cmpf ogt, %221, %249 : vector<2x1xf32>
    %251 = vector.shape_cast %250 : vector<2x1xi1> to vector<2x1xi1>
    %252 = vector.broadcast %251 : vector<2x1xi1> to vector<2x32xi1>
    %253 = arith.select %252, %245, %186 : vector<2x32xi1>, vector<2x32xf32>
    %cst_66 = arith.constant 0.000000e+00 : f32
    %254 = vector.broadcast %cst_66 : f32 to vector<2x1xf32>
    %255 = arith.cmpf ogt, %221, %254 : vector<2x1xf32>
    %256 = vector.shape_cast %255 : vector<2x1xi1> to vector<2x1xi1>
    %257 = vector.broadcast %256 : vector<2x1xi1> to vector<2x32xi1>
    %258 = arith.select %257, %243, %191 : vector<2x32xi1>, vector<2x32xf32>
    %259 = arith.negf %230 : vector<2x128xf32>
    %260 = math.exp %259 : vector<2x128xf32>
    %cst_67 = arith.constant 1.000000e+00 : f32
    %261 = vector.broadcast %cst_67 : f32 to vector<2x128xf32>
    %262 = arith.addf %261, %260 : vector<2x128xf32>
    %263 = arith.divf %261, %262 : vector<2x128xf32>
    %264 = math.tanh %230 : vector<2x128xf32>
    %265 = vector.extract_strided_slice %263 {offsets = [0, 0], sizes = [2, 32], strides = [1, 1]} : vector<2x128xf32> to vector<2x32xf32>
    %266 = vector.extract_strided_slice %263 {offsets = [0, 32], sizes = [2, 32], strides = [1, 1]} : vector<2x128xf32> to vector<2x32xf32>
    %267 = vector.extract_strided_slice %264 {offsets = [0, 64], sizes = [2, 32], strides = [1, 1]} : vector<2x128xf32> to vector<2x32xf32>
    %268 = vector.extract_strided_slice %263 {offsets = [0, 96], sizes = [2, 32], strides = [1, 1]} : vector<2x128xf32> to vector<2x32xf32>
    %269 = arith.mulf %266, %219 : vector<2x32xf32>
    %270 = arith.mulf %265, %267 : vector<2x32xf32>
    %271 = arith.addf %269, %270 : vector<2x32xf32>
    %272 = math.tanh %271 : vector<2x32xf32>
    %273 = arith.mulf %268, %272 : vector<2x32xf32>
    %274 = vector.broadcast %222 : vector<2x1xf32> to vector<2x32xf32>
    %275 = arith.mulf %273, %274 : vector<2x32xf32>
    %276 = arith.addf %209, %275 : vector<2x32xf32>
    %cst_68 = arith.constant 0.000000e+00 : f32
    %277 = vector.broadcast %cst_68 : f32 to vector<2x1xf32>
    %278 = arith.cmpf ogt, %222, %277 : vector<2x1xf32>
    %279 = vector.shape_cast %278 : vector<2x1xi1> to vector<2x1xi1>
    %280 = vector.broadcast %279 : vector<2x1xi1> to vector<2x32xi1>
    %281 = arith.select %280, %273, %214 : vector<2x32xi1>, vector<2x32xf32>
    %cst_69 = arith.constant 0.000000e+00 : f32
    %282 = vector.broadcast %cst_69 : f32 to vector<2x1xf32>
    %283 = arith.cmpf ogt, %222, %282 : vector<2x1xf32>
    %284 = vector.shape_cast %283 : vector<2x1xi1> to vector<2x1xi1>
    %285 = vector.broadcast %284 : vector<2x1xi1> to vector<2x32xi1>
    %286 = arith.select %285, %271, %219 : vector<2x32xi1>, vector<2x32xf32>
    %287 = arith.addf %220, %221 : vector<2x1xf32>
    %288 = vector.extract_strided_slice %145 {offsets = [4, 0], sizes = [2, 1], strides = [1, 1]} : vector<16x1xf32> to vector<2x1xf32>
    %289 = vector.extract_strided_slice %145 {offsets = [10, 0], sizes = [2, 1], strides = [1, 1]} : vector<16x1xf32> to vector<2x1xf32>
    %290 = tpu.concatenate %253, %281 in 1 : vector<2x32xf32>, vector<2x32xf32> -> vector<2x64xf32>
    %cst_70 = arith.constant dense<0.000000e+00> : vector<2x256xf32>
    %291 = tpu.matmul %290, %151, %cst_70 {dimension_numbers = #tpu.dot_dimension_numbers<[1], [0], [0], [1], [0, 0, 1, 1], [], []>} : vector<2x64xf32>, vector<64x256xf32>, vector<2x256xf32> -> vector<2x256xf32>
    %292 = vector.extract_strided_slice %150 {offsets = [4, 0], sizes = [2, 128], strides = [1, 1]} : vector<16x256xf32> to vector<2x128xf32>
    %293 = vector.extract_strided_slice %291 {offsets = [0, 0], sizes = [2, 128], strides = [1, 1]} : vector<2x256xf32> to vector<2x128xf32>
    %294 = arith.addf %292, %293 : vector<2x128xf32>
    %295 = vector.extract_strided_slice %150 {offsets = [10, 128], sizes = [2, 128], strides = [1, 1]} : vector<16x256xf32> to vector<2x128xf32>
    %296 = vector.extract_strided_slice %291 {offsets = [0, 128], sizes = [2, 128], strides = [1, 1]} : vector<2x256xf32> to vector<2x128xf32>
    %297 = arith.addf %295, %296 : vector<2x128xf32>
    %298 = arith.negf %294 : vector<2x128xf32>
    %299 = math.exp %298 : vector<2x128xf32>
    %cst_71 = arith.constant 1.000000e+00 : f32
    %300 = vector.broadcast %cst_71 : f32 to vector<2x128xf32>
    %301 = arith.addf %300, %299 : vector<2x128xf32>
    %302 = arith.divf %300, %301 : vector<2x128xf32>
    %303 = math.tanh %294 : vector<2x128xf32>
    %304 = vector.extract_strided_slice %302 {offsets = [0, 0], sizes = [2, 32], strides = [1, 1]} : vector<2x128xf32> to vector<2x32xf32>
    %305 = vector.extract_strided_slice %302 {offsets = [0, 32], sizes = [2, 32], strides = [1, 1]} : vector<2x128xf32> to vector<2x32xf32>
    %306 = vector.extract_strided_slice %303 {offsets = [0, 64], sizes = [2, 32], strides = [1, 1]} : vector<2x128xf32> to vector<2x32xf32>
    %307 = vector.extract_strided_slice %302 {offsets = [0, 96], sizes = [2, 32], strides = [1, 1]} : vector<2x128xf32> to vector<2x32xf32>
    %308 = arith.mulf %305, %258 : vector<2x32xf32>
    %309 = arith.mulf %304, %306 : vector<2x32xf32>
    %310 = arith.addf %308, %309 : vector<2x32xf32>
    %311 = math.tanh %310 : vector<2x32xf32>
    %312 = arith.mulf %307, %311 : vector<2x32xf32>
    %313 = vector.broadcast %288 : vector<2x1xf32> to vector<2x32xf32>
    %314 = arith.mulf %312, %313 : vector<2x32xf32>
    %315 = arith.addf %248, %314 : vector<2x32xf32>
    %cst_72 = arith.constant 0.000000e+00 : f32
    %316 = vector.broadcast %cst_72 : f32 to vector<2x1xf32>
    %317 = arith.cmpf ogt, %288, %316 : vector<2x1xf32>
    %318 = vector.shape_cast %317 : vector<2x1xi1> to vector<2x1xi1>
    %319 = vector.broadcast %318 : vector<2x1xi1> to vector<2x32xi1>
    %320 = arith.select %319, %312, %253 : vector<2x32xi1>, vector<2x32xf32>
    %cst_73 = arith.constant 0.000000e+00 : f32
    %321 = vector.broadcast %cst_73 : f32 to vector<2x1xf32>
    %322 = arith.cmpf ogt, %288, %321 : vector<2x1xf32>
    %323 = vector.shape_cast %322 : vector<2x1xi1> to vector<2x1xi1>
    %324 = vector.broadcast %323 : vector<2x1xi1> to vector<2x32xi1>
    %325 = arith.select %324, %310, %258 : vector<2x32xi1>, vector<2x32xf32>
    %326 = arith.negf %297 : vector<2x128xf32>
    %327 = math.exp %326 : vector<2x128xf32>
    %cst_74 = arith.constant 1.000000e+00 : f32
    %328 = vector.broadcast %cst_74 : f32 to vector<2x128xf32>
    %329 = arith.addf %328, %327 : vector<2x128xf32>
    %330 = arith.divf %328, %329 : vector<2x128xf32>
    %331 = math.tanh %297 : vector<2x128xf32>
    %332 = vector.extract_strided_slice %330 {offsets = [0, 0], sizes = [2, 32], strides = [1, 1]} : vector<2x128xf32> to vector<2x32xf32>
    %333 = vector.extract_strided_slice %330 {offsets = [0, 32], sizes = [2, 32], strides = [1, 1]} : vector<2x128xf32> to vector<2x32xf32>
    %334 = vector.extract_strided_slice %331 {offsets = [0, 64], sizes = [2, 32], strides = [1, 1]} : vector<2x128xf32> to vector<2x32xf32>
    %335 = vector.extract_strided_slice %330 {offsets = [0, 96], sizes = [2, 32], strides = [1, 1]} : vector<2x128xf32> to vector<2x32xf32>
    %336 = arith.mulf %333, %286 : vector<2x32xf32>
    %337 = arith.mulf %332, %334 : vector<2x32xf32>
    %338 = arith.addf %336, %337 : vector<2x32xf32>
    %339 = math.tanh %338 : vector<2x32xf32>
    %340 = arith.mulf %335, %339 : vector<2x32xf32>
    %341 = vector.broadcast %289 : vector<2x1xf32> to vector<2x32xf32>
    %342 = arith.mulf %340, %341 : vector<2x32xf32>
    %343 = arith.addf %276, %342 : vector<2x32xf32>
    %cst_75 = arith.constant 0.000000e+00 : f32
    %344 = vector.broadcast %cst_75 : f32 to vector<2x1xf32>
    %345 = arith.cmpf ogt, %289, %344 : vector<2x1xf32>
    %346 = vector.shape_cast %345 : vector<2x1xi1> to vector<2x1xi1>
    %347 = vector.broadcast %346 : vector<2x1xi1> to vector<2x32xi1>
    %348 = arith.select %347, %340, %281 : vector<2x32xi1>, vector<2x32xf32>
    %cst_76 = arith.constant 0.000000e+00 : f32
    %349 = vector.broadcast %cst_76 : f32 to vector<2x1xf32>
    %350 = arith.cmpf ogt, %289, %349 : vector<2x1xf32>
    %351 = vector.shape_cast %350 : vector<2x1xi1> to vector<2x1xi1>
    %352 = vector.broadcast %351 : vector<2x1xi1> to vector<2x32xi1>
    %353 = arith.select %352, %338, %286 : vector<2x32xi1>, vector<2x32xf32>
    %354 = arith.addf %287, %288 : vector<2x1xf32>
    %355 = vector.extract_strided_slice %145 {offsets = [6, 0], sizes = [2, 1], strides = [1, 1]} : vector<16x1xf32> to vector<2x1xf32>
    %356 = vector.extract_strided_slice %145 {offsets = [8, 0], sizes = [2, 1], strides = [1, 1]} : vector<16x1xf32> to vector<2x1xf32>
    %357 = tpu.concatenate %320, %348 in 1 : vector<2x32xf32>, vector<2x32xf32> -> vector<2x64xf32>
    %cst_77 = arith.constant dense<0.000000e+00> : vector<2x256xf32>
    %358 = tpu.matmul %357, %151, %cst_77 {dimension_numbers = #tpu.dot_dimension_numbers<[1], [0], [0], [1], [0, 0, 1, 1], [], []>} : vector<2x64xf32>, vector<64x256xf32>, vector<2x256xf32> -> vector<2x256xf32>
    %359 = vector.extract_strided_slice %150 {offsets = [6, 0], sizes = [2, 128], strides = [1, 1]} : vector<16x256xf32> to vector<2x128xf32>
    %360 = vector.extract_strided_slice %358 {offsets = [0, 0], sizes = [2, 128], strides = [1, 1]} : vector<2x256xf32> to vector<2x128xf32>
    %361 = arith.addf %359, %360 : vector<2x128xf32>
    %362 = vector.extract_strided_slice %150 {offsets = [8, 128], sizes = [2, 128], strides = [1, 1]} : vector<16x256xf32> to vector<2x128xf32>
    %363 = vector.extract_strided_slice %358 {offsets = [0, 128], sizes = [2, 128], strides = [1, 1]} : vector<2x256xf32> to vector<2x128xf32>
    %364 = arith.addf %362, %363 : vector<2x128xf32>
    %365 = arith.negf %361 : vector<2x128xf32>
    %366 = math.exp %365 : vector<2x128xf32>
    %cst_78 = arith.constant 1.000000e+00 : f32
    %367 = vector.broadcast %cst_78 : f32 to vector<2x128xf32>
    %368 = arith.addf %367, %366 : vector<2x128xf32>
    %369 = arith.divf %367, %368 : vector<2x128xf32>
    %370 = math.tanh %361 : vector<2x128xf32>
    %371 = vector.extract_strided_slice %369 {offsets = [0, 0], sizes = [2, 32], strides = [1, 1]} : vector<2x128xf32> to vector<2x32xf32>
    %372 = vector.extract_strided_slice %369 {offsets = [0, 32], sizes = [2, 32], strides = [1, 1]} : vector<2x128xf32> to vector<2x32xf32>
    %373 = vector.extract_strided_slice %370 {offsets = [0, 64], sizes = [2, 32], strides = [1, 1]} : vector<2x128xf32> to vector<2x32xf32>
    %374 = vector.extract_strided_slice %369 {offsets = [0, 96], sizes = [2, 32], strides = [1, 1]} : vector<2x128xf32> to vector<2x32xf32>
    %375 = arith.mulf %372, %325 : vector<2x32xf32>
    %376 = arith.mulf %371, %373 : vector<2x32xf32>
    %377 = arith.addf %375, %376 : vector<2x32xf32>
    %378 = math.tanh %377 : vector<2x32xf32>
    %379 = arith.mulf %374, %378 : vector<2x32xf32>
    %380 = vector.broadcast %355 : vector<2x1xf32> to vector<2x32xf32>
    %381 = arith.mulf %379, %380 : vector<2x32xf32>
    %382 = arith.addf %315, %381 : vector<2x32xf32>
    %cst_79 = arith.constant 0.000000e+00 : f32
    %383 = vector.broadcast %cst_79 : f32 to vector<2x1xf32>
    %384 = arith.cmpf ogt, %355, %383 : vector<2x1xf32>
    %385 = vector.shape_cast %384 : vector<2x1xi1> to vector<2x1xi1>
    %386 = vector.broadcast %385 : vector<2x1xi1> to vector<2x32xi1>
    %387 = arith.select %386, %379, %320 : vector<2x32xi1>, vector<2x32xf32>
    %cst_80 = arith.constant 0.000000e+00 : f32
    %388 = vector.broadcast %cst_80 : f32 to vector<2x1xf32>
    %389 = arith.cmpf ogt, %355, %388 : vector<2x1xf32>
    %390 = vector.shape_cast %389 : vector<2x1xi1> to vector<2x1xi1>
    %391 = vector.broadcast %390 : vector<2x1xi1> to vector<2x32xi1>
    %392 = arith.select %391, %377, %325 : vector<2x32xi1>, vector<2x32xf32>
    %393 = arith.negf %364 : vector<2x128xf32>
    %394 = math.exp %393 : vector<2x128xf32>
    %cst_81 = arith.constant 1.000000e+00 : f32
    %395 = vector.broadcast %cst_81 : f32 to vector<2x128xf32>
    %396 = arith.addf %395, %394 : vector<2x128xf32>
    %397 = arith.divf %395, %396 : vector<2x128xf32>
    %398 = math.tanh %364 : vector<2x128xf32>
    %399 = vector.extract_strided_slice %397 {offsets = [0, 0], sizes = [2, 32], strides = [1, 1]} : vector<2x128xf32> to vector<2x32xf32>
    %400 = vector.extract_strided_slice %397 {offsets = [0, 32], sizes = [2, 32], strides = [1, 1]} : vector<2x128xf32> to vector<2x32xf32>
    %401 = vector.extract_strided_slice %398 {offsets = [0, 64], sizes = [2, 32], strides = [1, 1]} : vector<2x128xf32> to vector<2x32xf32>
    %402 = vector.extract_strided_slice %397 {offsets = [0, 96], sizes = [2, 32], strides = [1, 1]} : vector<2x128xf32> to vector<2x32xf32>
    %403 = arith.mulf %400, %353 : vector<2x32xf32>
    %404 = arith.mulf %399, %401 : vector<2x32xf32>
    %405 = arith.addf %403, %404 : vector<2x32xf32>
    %406 = math.tanh %405 : vector<2x32xf32>
    %407 = arith.mulf %402, %406 : vector<2x32xf32>
    %408 = vector.broadcast %356 : vector<2x1xf32> to vector<2x32xf32>
    %409 = arith.mulf %407, %408 : vector<2x32xf32>
    %410 = arith.addf %343, %409 : vector<2x32xf32>
    %cst_82 = arith.constant 0.000000e+00 : f32
    %411 = vector.broadcast %cst_82 : f32 to vector<2x1xf32>
    %412 = arith.cmpf ogt, %356, %411 : vector<2x1xf32>
    %413 = vector.shape_cast %412 : vector<2x1xi1> to vector<2x1xi1>
    %414 = vector.broadcast %413 : vector<2x1xi1> to vector<2x32xi1>
    %415 = arith.select %414, %407, %348 : vector<2x32xi1>, vector<2x32xf32>
    %cst_83 = arith.constant 0.000000e+00 : f32
    %416 = vector.broadcast %cst_83 : f32 to vector<2x1xf32>
    %417 = arith.cmpf ogt, %356, %416 : vector<2x1xf32>
    %418 = vector.shape_cast %417 : vector<2x1xi1> to vector<2x1xi1>
    %419 = vector.broadcast %418 : vector<2x1xi1> to vector<2x32xi1>
    %420 = arith.select %419, %405, %353 : vector<2x32xi1>, vector<2x32xf32>
    %421 = arith.addf %354, %355 : vector<2x1xf32>
    %422 = vector.extract_strided_slice %145 {offsets = [8, 0], sizes = [2, 1], strides = [1, 1]} : vector<16x1xf32> to vector<2x1xf32>
    %423 = vector.extract_strided_slice %145 {offsets = [6, 0], sizes = [2, 1], strides = [1, 1]} : vector<16x1xf32> to vector<2x1xf32>
    %424 = tpu.concatenate %387, %415 in 1 : vector<2x32xf32>, vector<2x32xf32> -> vector<2x64xf32>
    %cst_84 = arith.constant dense<0.000000e+00> : vector<2x256xf32>
    %425 = tpu.matmul %424, %151, %cst_84 {dimension_numbers = #tpu.dot_dimension_numbers<[1], [0], [0], [1], [0, 0, 1, 1], [], []>} : vector<2x64xf32>, vector<64x256xf32>, vector<2x256xf32> -> vector<2x256xf32>
    %426 = vector.extract_strided_slice %150 {offsets = [8, 0], sizes = [2, 128], strides = [1, 1]} : vector<16x256xf32> to vector<2x128xf32>
    %427 = vector.extract_strided_slice %425 {offsets = [0, 0], sizes = [2, 128], strides = [1, 1]} : vector<2x256xf32> to vector<2x128xf32>
    %428 = arith.addf %426, %427 : vector<2x128xf32>
    %429 = vector.extract_strided_slice %150 {offsets = [6, 128], sizes = [2, 128], strides = [1, 1]} : vector<16x256xf32> to vector<2x128xf32>
    %430 = vector.extract_strided_slice %425 {offsets = [0, 128], sizes = [2, 128], strides = [1, 1]} : vector<2x256xf32> to vector<2x128xf32>
    %431 = arith.addf %429, %430 : vector<2x128xf32>
    %432 = arith.negf %428 : vector<2x128xf32>
    %433 = math.exp %432 : vector<2x128xf32>
    %cst_85 = arith.constant 1.000000e+00 : f32
    %434 = vector.broadcast %cst_85 : f32 to vector<2x128xf32>
    %435 = arith.addf %434, %433 : vector<2x128xf32>
    %436 = arith.divf %434, %435 : vector<2x128xf32>
    %437 = math.tanh %428 : vector<2x128xf32>
    %438 = vector.extract_strided_slice %436 {offsets = [0, 0], sizes = [2, 32], strides = [1, 1]} : vector<2x128xf32> to vector<2x32xf32>
    %439 = vector.extract_strided_slice %436 {offsets = [0, 32], sizes = [2, 32], strides = [1, 1]} : vector<2x128xf32> to vector<2x32xf32>
    %440 = vector.extract_strided_slice %437 {offsets = [0, 64], sizes = [2, 32], strides = [1, 1]} : vector<2x128xf32> to vector<2x32xf32>
    %441 = vector.extract_strided_slice %436 {offsets = [0, 96], sizes = [2, 32], strides = [1, 1]} : vector<2x128xf32> to vector<2x32xf32>
    %442 = arith.mulf %439, %392 : vector<2x32xf32>
    %443 = arith.mulf %438, %440 : vector<2x32xf32>
    %444 = arith.addf %442, %443 : vector<2x32xf32>
    %445 = math.tanh %444 : vector<2x32xf32>
    %446 = arith.mulf %441, %445 : vector<2x32xf32>
    %447 = vector.broadcast %422 : vector<2x1xf32> to vector<2x32xf32>
    %448 = arith.mulf %446, %447 : vector<2x32xf32>
    %449 = arith.addf %382, %448 : vector<2x32xf32>
    %cst_86 = arith.constant 0.000000e+00 : f32
    %450 = vector.broadcast %cst_86 : f32 to vector<2x1xf32>
    %451 = arith.cmpf ogt, %422, %450 : vector<2x1xf32>
    %452 = vector.shape_cast %451 : vector<2x1xi1> to vector<2x1xi1>
    %453 = vector.broadcast %452 : vector<2x1xi1> to vector<2x32xi1>
    %454 = arith.select %453, %446, %387 : vector<2x32xi1>, vector<2x32xf32>
    %cst_87 = arith.constant 0.000000e+00 : f32
    %455 = vector.broadcast %cst_87 : f32 to vector<2x1xf32>
    %456 = arith.cmpf ogt, %422, %455 : vector<2x1xf32>
    %457 = vector.shape_cast %456 : vector<2x1xi1> to vector<2x1xi1>
    %458 = vector.broadcast %457 : vector<2x1xi1> to vector<2x32xi1>
    %459 = arith.select %458, %444, %392 : vector<2x32xi1>, vector<2x32xf32>
    %460 = arith.negf %431 : vector<2x128xf32>
    %461 = math.exp %460 : vector<2x128xf32>
    %cst_88 = arith.constant 1.000000e+00 : f32
    %462 = vector.broadcast %cst_88 : f32 to vector<2x128xf32>
    %463 = arith.addf %462, %461 : vector<2x128xf32>
    %464 = arith.divf %462, %463 : vector<2x128xf32>
    %465 = math.tanh %431 : vector<2x128xf32>
    %466 = vector.extract_strided_slice %464 {offsets = [0, 0], sizes = [2, 32], strides = [1, 1]} : vector<2x128xf32> to vector<2x32xf32>
    %467 = vector.extract_strided_slice %464 {offsets = [0, 32], sizes = [2, 32], strides = [1, 1]} : vector<2x128xf32> to vector<2x32xf32>
    %468 = vector.extract_strided_slice %465 {offsets = [0, 64], sizes = [2, 32], strides = [1, 1]} : vector<2x128xf32> to vector<2x32xf32>
    %469 = vector.extract_strided_slice %464 {offsets = [0, 96], sizes = [2, 32], strides = [1, 1]} : vector<2x128xf32> to vector<2x32xf32>
    %470 = arith.mulf %467, %420 : vector<2x32xf32>
    %471 = arith.mulf %466, %468 : vector<2x32xf32>
    %472 = arith.addf %470, %471 : vector<2x32xf32>
    %473 = math.tanh %472 : vector<2x32xf32>
    %474 = arith.mulf %469, %473 : vector<2x32xf32>
    %475 = vector.broadcast %423 : vector<2x1xf32> to vector<2x32xf32>
    %476 = arith.mulf %474, %475 : vector<2x32xf32>
    %477 = arith.addf %410, %476 : vector<2x32xf32>
    %cst_89 = arith.constant 0.000000e+00 : f32
    %478 = vector.broadcast %cst_89 : f32 to vector<2x1xf32>
    %479 = arith.cmpf ogt, %423, %478 : vector<2x1xf32>
    %480 = vector.shape_cast %479 : vector<2x1xi1> to vector<2x1xi1>
    %481 = vector.broadcast %480 : vector<2x1xi1> to vector<2x32xi1>
    %482 = arith.select %481, %474, %415 : vector<2x32xi1>, vector<2x32xf32>
    %cst_90 = arith.constant 0.000000e+00 : f32
    %483 = vector.broadcast %cst_90 : f32 to vector<2x1xf32>
    %484 = arith.cmpf ogt, %423, %483 : vector<2x1xf32>
    %485 = vector.shape_cast %484 : vector<2x1xi1> to vector<2x1xi1>
    %486 = vector.broadcast %485 : vector<2x1xi1> to vector<2x32xi1>
    %487 = arith.select %486, %472, %420 : vector<2x32xi1>, vector<2x32xf32>
    %488 = arith.addf %421, %422 : vector<2x1xf32>
    %489 = vector.extract_strided_slice %145 {offsets = [10, 0], sizes = [2, 1], strides = [1, 1]} : vector<16x1xf32> to vector<2x1xf32>
    %490 = vector.extract_strided_slice %145 {offsets = [4, 0], sizes = [2, 1], strides = [1, 1]} : vector<16x1xf32> to vector<2x1xf32>
    %491 = tpu.concatenate %454, %482 in 1 : vector<2x32xf32>, vector<2x32xf32> -> vector<2x64xf32>
    %cst_91 = arith.constant dense<0.000000e+00> : vector<2x256xf32>
    %492 = tpu.matmul %491, %151, %cst_91 {dimension_numbers = #tpu.dot_dimension_numbers<[1], [0], [0], [1], [0, 0, 1, 1], [], []>} : vector<2x64xf32>, vector<64x256xf32>, vector<2x256xf32> -> vector<2x256xf32>
    %493 = vector.extract_strided_slice %150 {offsets = [10, 0], sizes = [2, 128], strides = [1, 1]} : vector<16x256xf32> to vector<2x128xf32>
    %494 = vector.extract_strided_slice %492 {offsets = [0, 0], sizes = [2, 128], strides = [1, 1]} : vector<2x256xf32> to vector<2x128xf32>
    %495 = arith.addf %493, %494 : vector<2x128xf32>
    %496 = vector.extract_strided_slice %150 {offsets = [4, 128], sizes = [2, 128], strides = [1, 1]} : vector<16x256xf32> to vector<2x128xf32>
    %497 = vector.extract_strided_slice %492 {offsets = [0, 128], sizes = [2, 128], strides = [1, 1]} : vector<2x256xf32> to vector<2x128xf32>
    %498 = arith.addf %496, %497 : vector<2x128xf32>
    %499 = arith.negf %495 : vector<2x128xf32>
    %500 = math.exp %499 : vector<2x128xf32>
    %cst_92 = arith.constant 1.000000e+00 : f32
    %501 = vector.broadcast %cst_92 : f32 to vector<2x128xf32>
    %502 = arith.addf %501, %500 : vector<2x128xf32>
    %503 = arith.divf %501, %502 : vector<2x128xf32>
    %504 = math.tanh %495 : vector<2x128xf32>
    %505 = vector.extract_strided_slice %503 {offsets = [0, 0], sizes = [2, 32], strides = [1, 1]} : vector<2x128xf32> to vector<2x32xf32>
    %506 = vector.extract_strided_slice %503 {offsets = [0, 32], sizes = [2, 32], strides = [1, 1]} : vector<2x128xf32> to vector<2x32xf32>
    %507 = vector.extract_strided_slice %504 {offsets = [0, 64], sizes = [2, 32], strides = [1, 1]} : vector<2x128xf32> to vector<2x32xf32>
    %508 = vector.extract_strided_slice %503 {offsets = [0, 96], sizes = [2, 32], strides = [1, 1]} : vector<2x128xf32> to vector<2x32xf32>
    %509 = arith.mulf %506, %459 : vector<2x32xf32>
    %510 = arith.mulf %505, %507 : vector<2x32xf32>
    %511 = arith.addf %509, %510 : vector<2x32xf32>
    %512 = math.tanh %511 : vector<2x32xf32>
    %513 = arith.mulf %508, %512 : vector<2x32xf32>
    %514 = vector.broadcast %489 : vector<2x1xf32> to vector<2x32xf32>
    %515 = arith.mulf %513, %514 : vector<2x32xf32>
    %516 = arith.addf %449, %515 : vector<2x32xf32>
    %cst_93 = arith.constant 0.000000e+00 : f32
    %517 = vector.broadcast %cst_93 : f32 to vector<2x1xf32>
    %518 = arith.cmpf ogt, %489, %517 : vector<2x1xf32>
    %519 = vector.shape_cast %518 : vector<2x1xi1> to vector<2x1xi1>
    %520 = vector.broadcast %519 : vector<2x1xi1> to vector<2x32xi1>
    %521 = arith.select %520, %513, %454 : vector<2x32xi1>, vector<2x32xf32>
    %cst_94 = arith.constant 0.000000e+00 : f32
    %522 = vector.broadcast %cst_94 : f32 to vector<2x1xf32>
    %523 = arith.cmpf ogt, %489, %522 : vector<2x1xf32>
    %524 = vector.shape_cast %523 : vector<2x1xi1> to vector<2x1xi1>
    %525 = vector.broadcast %524 : vector<2x1xi1> to vector<2x32xi1>
    %526 = arith.select %525, %511, %459 : vector<2x32xi1>, vector<2x32xf32>
    %527 = arith.negf %498 : vector<2x128xf32>
    %528 = math.exp %527 : vector<2x128xf32>
    %cst_95 = arith.constant 1.000000e+00 : f32
    %529 = vector.broadcast %cst_95 : f32 to vector<2x128xf32>
    %530 = arith.addf %529, %528 : vector<2x128xf32>
    %531 = arith.divf %529, %530 : vector<2x128xf32>
    %532 = math.tanh %498 : vector<2x128xf32>
    %533 = vector.extract_strided_slice %531 {offsets = [0, 0], sizes = [2, 32], strides = [1, 1]} : vector<2x128xf32> to vector<2x32xf32>
    %534 = vector.extract_strided_slice %531 {offsets = [0, 32], sizes = [2, 32], strides = [1, 1]} : vector<2x128xf32> to vector<2x32xf32>
    %535 = vector.extract_strided_slice %532 {offsets = [0, 64], sizes = [2, 32], strides = [1, 1]} : vector<2x128xf32> to vector<2x32xf32>
    %536 = vector.extract_strided_slice %531 {offsets = [0, 96], sizes = [2, 32], strides = [1, 1]} : vector<2x128xf32> to vector<2x32xf32>
    %537 = arith.mulf %534, %487 : vector<2x32xf32>
    %538 = arith.mulf %533, %535 : vector<2x32xf32>
    %539 = arith.addf %537, %538 : vector<2x32xf32>
    %540 = math.tanh %539 : vector<2x32xf32>
    %541 = arith.mulf %536, %540 : vector<2x32xf32>
    %542 = vector.broadcast %490 : vector<2x1xf32> to vector<2x32xf32>
    %543 = arith.mulf %541, %542 : vector<2x32xf32>
    %544 = arith.addf %477, %543 : vector<2x32xf32>
    %cst_96 = arith.constant 0.000000e+00 : f32
    %545 = vector.broadcast %cst_96 : f32 to vector<2x1xf32>
    %546 = arith.cmpf ogt, %490, %545 : vector<2x1xf32>
    %547 = vector.shape_cast %546 : vector<2x1xi1> to vector<2x1xi1>
    %548 = vector.broadcast %547 : vector<2x1xi1> to vector<2x32xi1>
    %549 = arith.select %548, %541, %482 : vector<2x32xi1>, vector<2x32xf32>
    %cst_97 = arith.constant 0.000000e+00 : f32
    %550 = vector.broadcast %cst_97 : f32 to vector<2x1xf32>
    %551 = arith.cmpf ogt, %490, %550 : vector<2x1xf32>
    %552 = vector.shape_cast %551 : vector<2x1xi1> to vector<2x1xi1>
    %553 = vector.broadcast %552 : vector<2x1xi1> to vector<2x32xi1>
    %554 = arith.select %553, %539, %487 : vector<2x32xi1>, vector<2x32xf32>
    %555 = arith.addf %488, %489 : vector<2x1xf32>
    %556 = vector.extract_strided_slice %145 {offsets = [12, 0], sizes = [2, 1], strides = [1, 1]} : vector<16x1xf32> to vector<2x1xf32>
    %557 = vector.extract_strided_slice %145 {offsets = [2, 0], sizes = [2, 1], strides = [1, 1]} : vector<16x1xf32> to vector<2x1xf32>
    %558 = tpu.concatenate %521, %549 in 1 : vector<2x32xf32>, vector<2x32xf32> -> vector<2x64xf32>
    %cst_98 = arith.constant dense<0.000000e+00> : vector<2x256xf32>
    %559 = tpu.matmul %558, %151, %cst_98 {dimension_numbers = #tpu.dot_dimension_numbers<[1], [0], [0], [1], [0, 0, 1, 1], [], []>} : vector<2x64xf32>, vector<64x256xf32>, vector<2x256xf32> -> vector<2x256xf32>
    %560 = vector.extract_strided_slice %150 {offsets = [12, 0], sizes = [2, 128], strides = [1, 1]} : vector<16x256xf32> to vector<2x128xf32>
    %561 = vector.extract_strided_slice %559 {offsets = [0, 0], sizes = [2, 128], strides = [1, 1]} : vector<2x256xf32> to vector<2x128xf32>
    %562 = arith.addf %560, %561 : vector<2x128xf32>
    %563 = vector.extract_strided_slice %150 {offsets = [2, 128], sizes = [2, 128], strides = [1, 1]} : vector<16x256xf32> to vector<2x128xf32>
    %564 = vector.extract_strided_slice %559 {offsets = [0, 128], sizes = [2, 128], strides = [1, 1]} : vector<2x256xf32> to vector<2x128xf32>
    %565 = arith.addf %563, %564 : vector<2x128xf32>
    %566 = arith.negf %562 : vector<2x128xf32>
    %567 = math.exp %566 : vector<2x128xf32>
    %cst_99 = arith.constant 1.000000e+00 : f32
    %568 = vector.broadcast %cst_99 : f32 to vector<2x128xf32>
    %569 = arith.addf %568, %567 : vector<2x128xf32>
    %570 = arith.divf %568, %569 : vector<2x128xf32>
    %571 = math.tanh %562 : vector<2x128xf32>
    %572 = vector.extract_strided_slice %570 {offsets = [0, 0], sizes = [2, 32], strides = [1, 1]} : vector<2x128xf32> to vector<2x32xf32>
    %573 = vector.extract_strided_slice %570 {offsets = [0, 32], sizes = [2, 32], strides = [1, 1]} : vector<2x128xf32> to vector<2x32xf32>
    %574 = vector.extract_strided_slice %571 {offsets = [0, 64], sizes = [2, 32], strides = [1, 1]} : vector<2x128xf32> to vector<2x32xf32>
    %575 = vector.extract_strided_slice %570 {offsets = [0, 96], sizes = [2, 32], strides = [1, 1]} : vector<2x128xf32> to vector<2x32xf32>
    %576 = arith.mulf %573, %526 : vector<2x32xf32>
    %577 = arith.mulf %572, %574 : vector<2x32xf32>
    %578 = arith.addf %576, %577 : vector<2x32xf32>
    %579 = math.tanh %578 : vector<2x32xf32>
    %580 = arith.mulf %575, %579 : vector<2x32xf32>
    %581 = vector.broadcast %556 : vector<2x1xf32> to vector<2x32xf32>
    %582 = arith.mulf %580, %581 : vector<2x32xf32>
    %583 = arith.addf %516, %582 : vector<2x32xf32>
    %cst_100 = arith.constant 0.000000e+00 : f32
    %584 = vector.broadcast %cst_100 : f32 to vector<2x1xf32>
    %585 = arith.cmpf ogt, %556, %584 : vector<2x1xf32>
    %586 = vector.shape_cast %585 : vector<2x1xi1> to vector<2x1xi1>
    %587 = vector.broadcast %586 : vector<2x1xi1> to vector<2x32xi1>
    %588 = arith.select %587, %580, %521 : vector<2x32xi1>, vector<2x32xf32>
    %cst_101 = arith.constant 0.000000e+00 : f32
    %589 = vector.broadcast %cst_101 : f32 to vector<2x1xf32>
    %590 = arith.cmpf ogt, %556, %589 : vector<2x1xf32>
    %591 = vector.shape_cast %590 : vector<2x1xi1> to vector<2x1xi1>
    %592 = vector.broadcast %591 : vector<2x1xi1> to vector<2x32xi1>
    %593 = arith.select %592, %578, %526 : vector<2x32xi1>, vector<2x32xf32>
    %594 = arith.negf %565 : vector<2x128xf32>
    %595 = math.exp %594 : vector<2x128xf32>
    %cst_102 = arith.constant 1.000000e+00 : f32
    %596 = vector.broadcast %cst_102 : f32 to vector<2x128xf32>
    %597 = arith.addf %596, %595 : vector<2x128xf32>
    %598 = arith.divf %596, %597 : vector<2x128xf32>
    %599 = math.tanh %565 : vector<2x128xf32>
    %600 = vector.extract_strided_slice %598 {offsets = [0, 0], sizes = [2, 32], strides = [1, 1]} : vector<2x128xf32> to vector<2x32xf32>
    %601 = vector.extract_strided_slice %598 {offsets = [0, 32], sizes = [2, 32], strides = [1, 1]} : vector<2x128xf32> to vector<2x32xf32>
    %602 = vector.extract_strided_slice %599 {offsets = [0, 64], sizes = [2, 32], strides = [1, 1]} : vector<2x128xf32> to vector<2x32xf32>
    %603 = vector.extract_strided_slice %598 {offsets = [0, 96], sizes = [2, 32], strides = [1, 1]} : vector<2x128xf32> to vector<2x32xf32>
    %604 = arith.mulf %601, %554 : vector<2x32xf32>
    %605 = arith.mulf %600, %602 : vector<2x32xf32>
    %606 = arith.addf %604, %605 : vector<2x32xf32>
    %607 = math.tanh %606 : vector<2x32xf32>
    %608 = arith.mulf %603, %607 : vector<2x32xf32>
    %609 = vector.broadcast %557 : vector<2x1xf32> to vector<2x32xf32>
    %610 = arith.mulf %608, %609 : vector<2x32xf32>
    %611 = arith.addf %544, %610 : vector<2x32xf32>
    %cst_103 = arith.constant 0.000000e+00 : f32
    %612 = vector.broadcast %cst_103 : f32 to vector<2x1xf32>
    %613 = arith.cmpf ogt, %557, %612 : vector<2x1xf32>
    %614 = vector.shape_cast %613 : vector<2x1xi1> to vector<2x1xi1>
    %615 = vector.broadcast %614 : vector<2x1xi1> to vector<2x32xi1>
    %616 = arith.select %615, %608, %549 : vector<2x32xi1>, vector<2x32xf32>
    %cst_104 = arith.constant 0.000000e+00 : f32
    %617 = vector.broadcast %cst_104 : f32 to vector<2x1xf32>
    %618 = arith.cmpf ogt, %557, %617 : vector<2x1xf32>
    %619 = vector.shape_cast %618 : vector<2x1xi1> to vector<2x1xi1>
    %620 = vector.broadcast %619 : vector<2x1xi1> to vector<2x32xi1>
    %621 = arith.select %620, %606, %554 : vector<2x32xi1>, vector<2x32xf32>
    %622 = arith.addf %555, %556 : vector<2x1xf32>
    %623 = vector.extract_strided_slice %145 {offsets = [14, 0], sizes = [2, 1], strides = [1, 1]} : vector<16x1xf32> to vector<2x1xf32>
    %624 = vector.extract_strided_slice %145 {offsets = [0, 0], sizes = [2, 1], strides = [1, 1]} : vector<16x1xf32> to vector<2x1xf32>
    %625 = tpu.concatenate %588, %616 in 1 : vector<2x32xf32>, vector<2x32xf32> -> vector<2x64xf32>
    %cst_105 = arith.constant dense<0.000000e+00> : vector<2x256xf32>
    %626 = tpu.matmul %625, %151, %cst_105 {dimension_numbers = #tpu.dot_dimension_numbers<[1], [0], [0], [1], [0, 0, 1, 1], [], []>} : vector<2x64xf32>, vector<64x256xf32>, vector<2x256xf32> -> vector<2x256xf32>
    %627 = vector.extract_strided_slice %150 {offsets = [14, 0], sizes = [2, 128], strides = [1, 1]} : vector<16x256xf32> to vector<2x128xf32>
    %628 = vector.extract_strided_slice %626 {offsets = [0, 0], sizes = [2, 128], strides = [1, 1]} : vector<2x256xf32> to vector<2x128xf32>
    %629 = arith.addf %627, %628 : vector<2x128xf32>
    %630 = vector.extract_strided_slice %150 {offsets = [0, 128], sizes = [2, 128], strides = [1, 1]} : vector<16x256xf32> to vector<2x128xf32>
    %631 = vector.extract_strided_slice %626 {offsets = [0, 128], sizes = [2, 128], strides = [1, 1]} : vector<2x256xf32> to vector<2x128xf32>
    %632 = arith.addf %630, %631 : vector<2x128xf32>
    %633 = arith.negf %629 : vector<2x128xf32>
    %634 = math.exp %633 : vector<2x128xf32>
    %cst_106 = arith.constant 1.000000e+00 : f32
    %635 = vector.broadcast %cst_106 : f32 to vector<2x128xf32>
    %636 = arith.addf %635, %634 : vector<2x128xf32>
    %637 = arith.divf %635, %636 : vector<2x128xf32>
    %638 = math.tanh %629 : vector<2x128xf32>
    %639 = vector.extract_strided_slice %637 {offsets = [0, 0], sizes = [2, 32], strides = [1, 1]} : vector<2x128xf32> to vector<2x32xf32>
    %640 = vector.extract_strided_slice %637 {offsets = [0, 32], sizes = [2, 32], strides = [1, 1]} : vector<2x128xf32> to vector<2x32xf32>
    %641 = vector.extract_strided_slice %638 {offsets = [0, 64], sizes = [2, 32], strides = [1, 1]} : vector<2x128xf32> to vector<2x32xf32>
    %642 = vector.extract_strided_slice %637 {offsets = [0, 96], sizes = [2, 32], strides = [1, 1]} : vector<2x128xf32> to vector<2x32xf32>
    %643 = arith.mulf %640, %593 : vector<2x32xf32>
    %644 = arith.mulf %639, %641 : vector<2x32xf32>
    %645 = arith.addf %643, %644 : vector<2x32xf32>
    %646 = math.tanh %645 : vector<2x32xf32>
    %647 = arith.mulf %642, %646 : vector<2x32xf32>
    %648 = vector.broadcast %623 : vector<2x1xf32> to vector<2x32xf32>
    %649 = arith.mulf %647, %648 : vector<2x32xf32>
    %650 = arith.addf %583, %649 : vector<2x32xf32>
    %651 = arith.negf %632 : vector<2x128xf32>
    %652 = math.exp %651 : vector<2x128xf32>
    %cst_107 = arith.constant 1.000000e+00 : f32
    %653 = vector.broadcast %cst_107 : f32 to vector<2x128xf32>
    %654 = arith.addf %653, %652 : vector<2x128xf32>
    %655 = arith.divf %653, %654 : vector<2x128xf32>
    %656 = math.tanh %632 : vector<2x128xf32>
    %657 = vector.extract_strided_slice %655 {offsets = [0, 0], sizes = [2, 32], strides = [1, 1]} : vector<2x128xf32> to vector<2x32xf32>
    %658 = vector.extract_strided_slice %655 {offsets = [0, 32], sizes = [2, 32], strides = [1, 1]} : vector<2x128xf32> to vector<2x32xf32>
    %659 = vector.extract_strided_slice %656 {offsets = [0, 64], sizes = [2, 32], strides = [1, 1]} : vector<2x128xf32> to vector<2x32xf32>
    %660 = vector.extract_strided_slice %655 {offsets = [0, 96], sizes = [2, 32], strides = [1, 1]} : vector<2x128xf32> to vector<2x32xf32>
    %661 = arith.mulf %658, %621 : vector<2x32xf32>
    %662 = arith.mulf %657, %659 : vector<2x32xf32>
    %663 = arith.addf %661, %662 : vector<2x32xf32>
    %664 = math.tanh %663 : vector<2x32xf32>
    %665 = arith.mulf %660, %664 : vector<2x32xf32>
    %666 = vector.broadcast %624 : vector<2x1xf32> to vector<2x32xf32>
    %667 = arith.mulf %665, %666 : vector<2x32xf32>
    %668 = arith.addf %611, %667 : vector<2x32xf32>
    %669 = arith.addf %622, %623 : vector<2x1xf32>
    %cst_108 = arith.constant 1.000000e+00 : f32
    %670 = vector.broadcast %cst_108 : f32 to vector<2x1xf32>
    %671 = arith.maximumf %669, %670 : vector<2x1xf32>
    %cst_109 = arith.constant 1.000000e+00 : f32
    %672 = vector.broadcast %cst_109 : f32 to vector<2x1xf32>
    %673 = arith.divf %672, %671 : vector<2x1xf32>
    %674 = vector.broadcast %673 : vector<2x1xf32> to vector<2x32xf32>
    %675 = arith.mulf %650, %674 : vector<2x32xf32>
    %676 = vector.broadcast %673 : vector<2x1xf32> to vector<2x32xf32>
    %677 = arith.mulf %668, %676 : vector<2x32xf32>
    %678 = vector.extract_strided_slice %126 {offsets = [0, 0], sizes = [2, 32], strides = [1, 1]} : vector<2x64xf32> to vector<2x32xf32>
    %679 = vector.extract_strided_slice %675 {offsets = [0, 0], sizes = [2, 16], strides = [1, 1]} : vector<2x32xf32> to vector<2x16xf32>
    %680 = vector.extract_strided_slice %677 {offsets = [0, 0], sizes = [2, 16], strides = [1, 1]} : vector<2x32xf32> to vector<2x16xf32>
    %681 = vector.extract_strided_slice %126 {offsets = [0, 32], sizes = [2, 32], strides = [1, 1]} : vector<2x64xf32> to vector<2x32xf32>
    %682 = vector.extract_strided_slice %675 {offsets = [0, 16], sizes = [2, 16], strides = [1, 1]} : vector<2x32xf32> to vector<2x16xf32>
    %683 = vector.extract_strided_slice %677 {offsets = [0, 16], sizes = [2, 16], strides = [1, 1]} : vector<2x32xf32> to vector<2x16xf32>
    %684 = tpu.concatenate %678, %679, %680, %681, %682, %683 in 1 : vector<2x32xf32>, vector<2x16xf32>, vector<2x16xf32>, vector<2x32xf32>, vector<2x16xf32>, vector<2x16xf32> -> vector<2x128xf32>
    %c896 = arith.constant 896 : index
    %c0_110 = arith.constant 0 : index
    %685 = vector.load %arg2[%c896, %c0_110] : memref<1232x256xf32, #tpu.memory_space<vmem>>, vector<128x64xf32>
    %cst_111 = arith.constant dense<0.000000e+00> : vector<2x64xf32>
    %686 = tpu.matmul %684, %685, %cst_111 {dimension_numbers = #tpu.dot_dimension_numbers<[1], [0], [0], [1], [0, 0, 1, 1], [], []>} : vector<2x128xf32>, vector<128x64xf32>, vector<2x64xf32> -> vector<2x64xf32>
    %c1024 = arith.constant 1024 : index
    %c0_112 = arith.constant 0 : index
    %687 = vector.load %arg2[%c1024, %c0_112] : memref<1232x256xf32, #tpu.memory_space<vmem>>, vector<1x64xf32>
    %688 = vector.broadcast %687 : vector<1x64xf32> to vector<2x64xf32>
    %689 = arith.addf %686, %688 : vector<2x64xf32>
    %cst_113 = arith.constant 0.000000e+00 : f32
    %690 = vector.broadcast %cst_113 : f32 to vector<2x64xf32>
    %691 = arith.maximumf %689, %690 : vector<2x64xf32>
    %c1032 = arith.constant 1032 : index
    %c0_114 = arith.constant 0 : index
    %692 = vector.load %arg2[%c1032, %c0_114] : memref<1232x256xf32, #tpu.memory_space<vmem>>, vector<64x2xf32>
    %cst_115 = arith.constant dense<0.000000e+00> : vector<2x2xf32>
    %693 = tpu.matmul %691, %692, %cst_115 {dimension_numbers = #tpu.dot_dimension_numbers<[1], [0], [0], [1], [0, 0, 1, 1], [], []>} : vector<2x64xf32>, vector<64x2xf32>, vector<2x2xf32> -> vector<2x2xf32>
    %c1096 = arith.constant 1096 : index
    %c0_116 = arith.constant 0 : index
    %694 = vector.load %arg2[%c1096, %c0_116] : memref<1232x256xf32, #tpu.memory_space<vmem>>, vector<1x2xf32>
    %695 = vector.broadcast %694 : vector<1x2xf32> to vector<2x2xf32>
    %696 = arith.addf %693, %695 : vector<2x2xf32>
    %cst_117 = arith.constant 0.000000e+00 : f32
    %697 = vector.broadcast %cst_117 : f32 to vector<2x126xf32>
    %698 = tpu.concatenate %684, %696, %697 in 1 : vector<2x128xf32>, vector<2x2xf32>, vector<2x126xf32> -> vector<2x256xf32>
    %c0_118 = arith.constant 0 : index
    %c0_119 = arith.constant 0 : index
    %699 = vector.load %arg3[%c0_118, %c0_119] : memref<2x256xf32, #tpu.memory_space<vmem>>, vector<2x256xf32>
    tpu.vector_store %arg3[%c0_118, %c0_119], %698 {strides = array<i32>} : memref<2x256xf32, #tpu.memory_space<vmem>>, vector<2x256xf32>,
    return
  }
  func.func @transform_0(%arg0: i32) -> (i32, i32) {
    %c0_i32 = arith.constant 0 : i32
    %c0_i32_0 = arith.constant 0 : i32
    %c0_i32_1 = arith.constant 0 : i32
    return %c0_i32, %c0_i32_0 : i32, i32
  }
  func.func @transform_1(%arg0: i32) -> (i32, i32) {
    %c0_i32 = arith.constant 0 : i32
    %c0_i32_0 = arith.constant 0 : i32
    %c0_i32_1 = arith.constant 0 : i32
    return %c0_i32, %c0_i32_0 : i32, i32
  }
  func.func @transform_2(%arg0: i32) -> (i32, i32) {
    %c0_i32 = arith.constant 0 : i32
    %c0_i32_0 = arith.constant 0 : i32
    %c0_i32_1 = arith.constant 0 : i32
    return %c0_i32, %c0_i32_0 : i32, i32
  }
}

</mosaic_0001>

<llo_original>
// kernel: ensemble_forward.1
$region0: #{ensemble_forward.1}
  #allocation0 [shape = 'u32[]', space=smem, size = 0x4, offset = 0x4, fixed_abs, tag = 'smem constant byte address 0x4 - core index']
  #allocation1 [shape = 'u32[144,128]{1,0:T(1,128)}', space=vmem, size = 0x12000, scoped, tag = 'internal scratch']
  %s0 = inlined_call_operand.vmem [shape: s32[48,1], index: 0, kind: input, shape index: {}]
  %s1 = inlined_call_operand.hbm [shape: f32[1232,256], index: 1, kind: input, shape index: {}]
  %s2 = inlined_call_operand.vmem [shape: f32[2,256], index: 2, kind: output, shape index: {}]
  %s3 = sld [smem:[#allocation0]]
  $region22: #{ensemble_forward.1} parent=0
    _
  %s5 = ssub.s32 1, %s3
  %s6 = scalar_select 0, %s5, %s3
  $region1: #{ensemble_forward.1} parent=0
    #allocation2 [shape = 'u8[1261568]{0}', space=vmem, size = 0x134000, scoped, tag = 'input window, operand 1, single buffered']
    #allocation3 [shape = 's32[1]{0}', space=sflag, size = 0x4, scoped, tag = 'scoped memory for ensemble_forward.1']
    %7 = vsyncpa [#allocation3], 0
    // Predicated region
    $region2: #{ensemble_forward.1} parent=1 // pred_check
      _
    $region3: #{ensemble_forward.1} parent=1 // pred_check_branch
      %9 = sbr.rel (0) target = $region5
    $region4: #{ensemble_forward.1} parent=1 // pred_region
      _
    $region5: #{ensemble_forward.1} parent=1 // pred_fallthru
      _
    // Predicated region
    $region6: #{ensemble_forward.1} parent=1 // pred_check
      _
    $region7: #{ensemble_forward.1} parent=1 // pred_check_branch
      %11 = sbr.rel (0) target = $region9
    $region8: #{ensemble_forward.1} parent=1 // pred_region
      %s13 = ssub.s32 39424, 39424
      %14 = vsyncadd [#allocation3], %s13
      %s15 = sshll.u32 [#allocation2], 4
      %s16 = int_to_ptr.vmem [resolvable:$true] %s15
      %21 = dma.hbm_to_vmem [thread:$0]  %s1, 39424, %s16, [#allocation3], 256, 256, 16
    $region9: #{ensemble_forward.1} parent=1 // pred_fallthru
      _
    // Predicated region
    $region10: #{ensemble_forward.1} parent=1 // pred_check
      _
    $region11: #{ensemble_forward.1} parent=1 // pred_check_branch
      %23 = sbr.rel (0) target = $region13
    $region12: #{ensemble_forward.1} parent=1 // pred_region
      %24 = dma.done [#allocation3], 39424
    $region13: #{ensemble_forward.1} parent=1 // pred_fallthru
      _
    %v25 = vld [vmem:[#allocation2 + $0x8a0] sm:$0xff]
    %v26 = vld [vmem:[#allocation2 + $0x8b0] sm:$0xff]
    %v27 = vld [vmem:[#allocation2 + $0x8c0] sm:$0xff]
    %v28 = vld [vmem:[#allocation2 + $0x8d0] sm:$0xff]
    %v29 = vld [vmem:[#allocation2 + $0x8e0] sm:$0xff]
    %v30 = vld [vmem:[#allocation2 + $0x8f0] sm:$0xff]
    %v31 = vld [vmem:[#allocation2 + $0x900] sm:$0xff]
    %v32 = vld [vmem:[#allocation2 + $0x910] sm:$0xff]
    %v33 = vld [vmem:[#allocation2 + $0x920] sm:$0xff]
    %v34 = vld [vmem:[#allocation2 + $0x930] sm:$0xff]
    %v35 = vld [vmem:[#allocation2 + $0x940] sm:$0xff]
    %v36 = vld [vmem:[#allocation2 + $0x950] sm:$0xff]
    %v37 = vld [vmem:[#allocation2 + $0x960] sm:$0xff]
    %v38 = vld [vmem:[#allocation2 + $0x970] sm:$0xff]
    %v39 = vld [vmem:[#allocation2 + $0x980] sm:$0xff]
    %v40 = vld [vmem:[#allocation2 + $0x990] sm:$0xff]
    %v41 = vld [vmem:[%s0] sm:$0xff]
    %v42 = vld [vmem:[%s0 + $0x8] sm:$0xff]
    %v43 = vld [vmem:[%s0 + $0x10] sm:$0xff]
    %v44 = vld [vmem:[%s0 + $0x18] sm:$0xff]
    %v45 = vlaneseq
    %v46 = vand.u32 %v45, 127
    %47 = vset.pattern.permute.xlu0 0
    %48 = vperm.xlu0 %47, %v41
    %v49 = vpop.permute.xlu0 %48
    %50 = vset.pattern.permute.xlu0 0
    %51 = vperm.xlu0 %50, %v42
    %v52 = vpop.permute.xlu0 %51
    %53 = vset.pattern.permute.xlu0 0
    %54 = vperm.xlu0 %53, %v43
    %v55 = vpop.permute.xlu0 %54
    %56 = vset.pattern.permute.xlu0 0
    %57 = vperm.xlu0 %56, %v44
    %v58 = vpop.permute.xlu0 %57
    %vm59 = vcmp.eq.s32.totalorder %v49, %v46
    %vm60 = vcmp.eq.s32.totalorder %v52, %v46
    %vm61 = vcmp.eq.s32.totalorder %v55, %v46
    %vm62 = vcmp.eq.s32.totalorder %v58, %v46
    %v63 = vsel %vm59, 1, 0
    %v64 = vsel %vm60, 1, 0
    %v65 = vsel %vm61, 1, 0
    %v66 = vsel %vm62, 1, 0
    %v67 = vcvt.s32.f32 %v63
    %v68 = vcvt.s32.f32 %v64
    %v69 = vcvt.s32.f32 %v65
    %v70 = vcvt.s32.f32 %v66
    %v71 = vld [vmem:[#allocation2] sm:$0xff]
    %v72 = vld [vmem:[#allocation2 + $0x10] sm:$0xff]
    %v73 = vld [vmem:[#allocation2 + $0x20] sm:$0xff]
    %v74 = vld [vmem:[#allocation2 + $0x30] sm:$0xff]
    %v75 = vld [vmem:[#allocation2 + $0x40] sm:$0xff]
    %v76 = vld [vmem:[#allocation2 + $0x50] sm:$0xff]
    %vm77 = vcmask 392192
    %v79 = vsel %vm77, %v67, 0
    %v82 = vsel %vm77, %v68, 0
    %v85 = vsel %vm77, %v69, 0
    %v88 = vsel %vm77, %v70, 0
    %90 = vmatprep.subr.mxu0 0.0
    %91 = vmatpush1.msra.mxu0 0.0
    %92 = vmatprep.subr.mxu0 0.0
    %93 = vmatpush1.msra.mxu0 0.0
    %94 = vmatprep.subr.mxu0 0.0
    %95 = vmatpush1.msra.mxu0 0.0
    %96 = vmatprep.subr.mxu0 0.0
    %97 = vmatpush1.msra.mxu0 0.0
    %98 = vmatprep.subr.mxu0 0.0
    %99 = vmatpush1.msra.mxu0 0.0
    %100 = vmatprep.subr.mxu0 0.0
    %101 = vmatpush1.msra.mxu0 0.0
    %102 = vmatprep.subr.mxu0 0.0
    %103 = vmatpush1.msra.mxu0 0.0
    %104 = vmatprep.subr.mxu0 0.0
    %105 = vmatpush1.msra.mxu0 0.0
    %106 = vmatprep.subr.mxu0 0.0
    %107 = vmatpush1.msra.mxu0 0.0
    %108 = vmatprep.subr.mxu0 0.0
    %109 = vmatpush1.msra.mxu0 0.0
    %110 = vmatprep.subr.mxu0 0.0
    %111 = vmatpush1.msra.mxu0 %v76
    %112 = vmatprep.subr.mxu0 0.0
    %113 = vmatpush1.msra.mxu0 %v75
    %114 = vmatprep.subr.mxu0 0.0
    %115 = vmatpush1.msra.mxu0 %v74
    %116 = vmatprep.subr.mxu0 0.0
    %117 = vmatpush1.msra.mxu0 %v73
    %118 = vmatprep.subr.mxu0 0.0
    %119 = vmatpush1.msra.mxu0 %v72
    %120 = vmatprep.subr.mxu0 0.0
    %121 = vmatpush1.msra.mxu0 %v71
    %122 = vmatprep.subr.mxu0 0.0
    %123 = vmatpush2.msra.mxu0 0.0
    %124 = vmatprep.subr.mxu0 0.0
    %125 = vmatpush2.msra.mxu0 0.0
    %126 = vmatprep.subr.mxu0 0.0
    %127 = vmatpush2.msra.mxu0 0.0
    %128 = vmatprep.subr.mxu0 0.0
    %129 = vmatpush2.msra.mxu0 0.0
    %130 = vmatprep.subr.mxu0 0.0
    %131 = vmatpush2.msra.mxu0 0.0
    %132 = vmatprep.subr.mxu0 0.0
    %133 = vmatpush2.msra.mxu0 0.0
    %134 = vmatprep.subr.mxu0 0.0
    %135 = vmatpush2.msra.mxu0 0.0
    %136 = vmatprep.subr.mxu0 0.0
    %137 = vmatpush2.msra.mxu0 0.0
    %138 = vmatprep.subr.mxu0 0.0
    %139 = vmatpush2.msra.mxu0 0.0
    %140 = vmatprep.subr.mxu0 0.0
    %141 = vmatpush2.msra.mxu0 0.0
    %142 = vmatprep.subr.mxu0 0.0
    %143 = vmatpush2.msra.mxu0 0.0
    %144 = vmatprep.subr.mxu0 0.0
    %145 = vmatpush2.msra.mxu0 0.0
    %146 = vmatprep.subr.mxu0 0.0
    %147 = vmatpush2.msra.mxu0 0.0
    %148 = vmatprep.subr.mxu0 0.0
    %149 = vmatpush2.msra.mxu0 0.0
    %150 = vmatprep.subr.mxu0 0.0
    %151 = vmatpush2.msra.mxu0 0.0
    %152 = vmatprep.subr.mxu0 0.0
    %153 = vmatpush2.msra.mxu0 0.0
    %154 = vmatprep.mubr.f32.mxu0 0.0
    %155 = vmatmul.mubr.f32.gmra.mxu0 %v79
    %v156 = vpop.f32.mrf.mxu0
    %v157 = vadd.f32 0.0, %v156
    %v158 = vpop.f32.mrf.mxu0
    %159 = vmatprep.mubr.f32.mxu0 0.0
    %160 = vmatmul.mubr.f32.gmra.mxu0 %v82
    %v161 = vpop.f32.mrf.mxu0
    %v162 = vadd.f32 0.0, %v161
    %v163 = vpop.f32.mrf.mxu0
    %164 = vmatprep.mubr.f32.mxu0 0.0
    %165 = vmatmul.mubr.f32.gmra.mxu0 %v85
    %v166 = vpop.f32.mrf.mxu0
    %v167 = vadd.f32 0.0, %v166
    %v168 = vpop.f32.mrf.mxu0
    %169 = vmatprep.mubr.f32.mxu0 0.0
    %170 = vmatmul.mubr.f32.gmra.mxu0 %v88
    %v171 = vpop.f32.mrf.mxu0
    %v172 = vadd.f32 0.0, %v171
    %v173 = vpop.f32.mrf.mxu0
    %174 = vdwg.mxu0
    %vm175 = vcmask 523264
    %v177 = vsel %vm175, %v157, 0
    %v180 = vsel %vm175, %v162, 0
    %182 = vmatprep.subr.mxu0 0.0
    %183 = vmatpush1.msra.mxu0 0.0
    %184 = vmatprep.subr.mxu0 0.0
    %185 = vmatpush1.msra.mxu0 0.0
    %186 = vmatprep.subr.mxu0 0.0
    %187 = vmatpush1.msra.mxu0 0.0
    %188 = vmatprep.subr.mxu0 0.0
    %189 = vmatpush1.msra.mxu0 0.0
    %190 = vmatprep.subr.mxu0 0.0
    %191 = vmatpush1.msra.mxu0 0.0
    %192 = vmatprep.subr.mxu0 0.0
    %193 = vmatpush1.msra.mxu0 0.0
    %194 = vmatprep.subr.mxu0 0.0
    %195 = vmatpush1.msra.mxu0 0.0
    %196 = vmatprep.subr.mxu0 0.0
    %197 = vmatpush1.msra.mxu0 0.0
    %198 = vmatprep.subr.mxu0 0.0
    %199 = vmatpush1.msra.mxu0 %v40
    %200 = vmatprep.subr.mxu0 0.0
    %201 = vmatpush1.msra.mxu0 %v39
    %202 = vmatprep.subr.mxu0 0.0
    %203 = vmatpush1.msra.mxu0 %v38
    %204 = vmatprep.subr.mxu0 0.0
    %205 = vmatpush1.msra.mxu0 %v37
    %206 = vmatprep.subr.mxu0 0.0
    %207 = vmatpush1.msra.mxu0 %v36
    %208 = vmatprep.subr.mxu0 0.0
    %209 = vmatpush1.msra.mxu0 %v35
    %210 = vmatprep.subr.mxu0 0.0
    %211 = vmatpush1.msra.mxu0 %v34
    %212 = vmatprep.subr.mxu0 0.0
    %213 = vmatpush1.msra.mxu0 %v33
    %214 = vmatprep.subr.mxu0 0.0
    %215 = vmatpush2.msra.mxu0 0.0
    %216 = vmatprep.subr.mxu0 0.0
    %217 = vmatpush2.msra.mxu0 0.0
    %218 = vmatprep.subr.mxu0 0.0
    %219 = vmatpush2.msra.mxu0 0.0
    %220 = vmatprep.subr.mxu0 0.0
    %221 = vmatpush2.msra.mxu0 0.0
    %222 = vmatprep.subr.mxu0 0.0
    %223 = vmatpush2.msra.mxu0 0.0
    %224 = vmatprep.subr.mxu0 0.0
    %225 = vmatpush2.msra.mxu0 0.0
    %226 = vmatprep.subr.mxu0 0.0
    %227 = vmatpush2.msra.mxu0 0.0
    %228 = vmatprep.subr.mxu0 0.0
    %229 = vmatpush2.msra.mxu0 0.0
    %230 = vmatprep.subr.mxu0 0.0
    %231 = vmatpush2.msra.mxu0 0.0
    %232 = vmatprep.subr.mxu0 0.0
    %233 = vmatpush2.msra.mxu0 0.0
    %234 = vmatprep.subr.mxu0 0.0
    %235 = vmatpush2.msra.mxu0 0.0
    %236 = vmatprep.subr.mxu0 0.0
    %237 = vmatpush2.msra.mxu0 0.0
    %238 = vmatprep.subr.mxu0 0.0
    %239 = vmatpush2.msra.mxu0 0.0
    %240 = vmatprep.subr.mxu0 0.0
    %241 = vmatpush2.msra.mxu0 0.0
    %242 = vmatprep.subr.mxu0 0.0
    %243 = vmatpush2.msra.mxu0 0.0
    %244 = vmatprep.subr.mxu0 0.0
    %245 = vmatpush2.msra.mxu0 0.0
    %246 = vmatprep.mubr.f32.mxu0 0.0
    %247 = vmatmul.mubr.f32.gmra.mxu0 %v177
    %v248 = vpop.f32.mrf.mxu0
    %v249 = vadd.f32 0.0, %v248
    %v250 = vpop.f32.mrf.mxu0
    %251 = vmatprep.mubr.f32.mxu0 0.0
    %252 = vmatmul.mubr.f32.gmra.mxu0 %v180
    %v253 = vpop.f32.mrf.mxu0
    %v254 = vadd.f32 0.0, %v253
    %v255 = vpop.f32.mrf.mxu0
    %256 = vdwg.mxu0
    %v257 = vsub.f32 %v157, %v249
    %v258 = vsub.f32 %v162, %v254
    %v259 = vmul.f32 %v257, %v257
    %v260 = vmul.f32 %v258, %v258
    %v262 = vsel %vm175, %v259, 0
    %v265 = vsel %vm175, %v260, 0
    %267 = vmatprep.subr.mxu0 0.0
    %268 = vmatpush1.msra.mxu0 0.0
    %269 = vmatprep.subr.mxu0 0.0
    %270 = vmatpush1.msra.mxu0 0.0
    %271 = vmatprep.subr.mxu0 0.0
    %272 = vmatpush1.msra.mxu0 0.0
    %273 = vmatprep.subr.mxu0 0.0
    %274 = vmatpush1.msra.mxu0 0.0
    %275 = vmatprep.subr.mxu0 0.0
    %276 = vmatpush1.msra.mxu0 0.0
    %277 = vmatprep.subr.mxu0 0.0
    %278 = vmatpush1.msra.mxu0 0.0
    %279 = vmatprep.subr.mxu0 0.0
    %280 = vmatpush1.msra.mxu0 0.0
    %281 = vmatprep.subr.mxu0 0.0
    %282 = vmatpush1.msra.mxu0 0.0
    %283 = vmatprep.subr.mxu0 0.0
    %284 = vmatpush1.msra.mxu0 %v40
    %285 = vmatprep.subr.mxu0 0.0
    %286 = vmatpush1.msra.mxu0 %v39
    %287 = vmatprep.subr.mxu0 0.0
    %288 = vmatpush1.msra.mxu0 %v38
    %289 = vmatprep.subr.mxu0 0.0
    %290 = vmatpush1.msra.mxu0 %v37
    %291 = vmatprep.subr.mxu0 0.0
    %292 = vmatpush1.msra.mxu0 %v36
    %293 = vmatprep.subr.mxu0 0.0
    %294 = vmatpush1.msra.mxu0 %v35
    %295 = vmatprep.subr.mxu0 0.0
    %296 = vmatpush1.msra.mxu0 %v34
    %297 = vmatprep.subr.mxu0 0.0
    %298 = vmatpush1.msra.mxu0 %v33
    %299 = vmatprep.subr.mxu0 0.0
    %300 = vmatpush2.msra.mxu0 0.0
    %301 = vmatprep.subr.mxu0 0.0
    %302 = vmatpush2.msra.mxu0 0.0
    %303 = vmatprep.subr.mxu0 0.0
    %304 = vmatpush2.msra.mxu0 0.0
    %305 = vmatprep.subr.mxu0 0.0
    %306 = vmatpush2.msra.mxu0 0.0
    %307 = vmatprep.subr.mxu0 0.0
    %308 = vmatpush2.msra.mxu0 0.0
    %309 = vmatprep.subr.mxu0 0.0
    %310 = vmatpush2.msra.mxu0 0.0
    %311 = vmatprep.subr.mxu0 0.0
    %312 = vmatpush2.msra.mxu0 0.0
    %313 = vmatprep.subr.mxu0 0.0
    %314 = vmatpush2.msra.mxu0 0.0
    %315 = vmatprep.subr.mxu0 0.0
    %316 = vmatpush2.msra.mxu0 0.0
    %317 = vmatprep.subr.mxu0 0.0
    %318 = vmatpush2.msra.mxu0 0.0
    %319 = vmatprep.subr.mxu0 0.0
    %320 = vmatpush2.msra.mxu0 0.0
    %321 = vmatprep.subr.mxu0 0.0
    %322 = vmatpush2.msra.mxu0 0.0
    %323 = vmatprep.subr.mxu0 0.0
    %324 = vmatpush2.msra.mxu0 0.0
    %325 = vmatprep.subr.mxu0 0.0
    %326 = vmatpush2.msra.mxu0 0.0
    %327 = vmatprep.subr.mxu0 0.0
    %328 = vmatpush2.msra.mxu0 0.0
    %329 = vmatprep.subr.mxu0 0.0
    %330 = vmatpush2.msra.mxu0 0.0
    %331 = vmatprep.mubr.f32.mxu0 0.0
    %332 = vmatmul.mubr.f32.gmra.mxu0 %v262
    %v333 = vpop.f32.mrf.mxu0
    %v334 = vadd.f32 1e-05, %v333
    %v335 = vpop.f32.mrf.mxu0
    %336 = vmatprep.mubr.f32.mxu0 0.0
    %337 = vmatmul.mubr.f32.gmra.mxu0 %v265
    %v338 = vpop.f32.mrf.mxu0
    %v339 = vadd.f32 1e-05, %v338
    %v340 = vpop.f32.mrf.mxu0
    %341 = vdwg.mxu0
    %v342 = vrsqrt.pop %v334
    %v343 = vrsqrt.pop %v339
    %v344 = vmul.f32 %v257, %v342
    %v345 = vmul.f32 %v258, %v343
    %v346 = vld [vmem:[#allocation2 + $0x2a0] ss:$0 sm:$0xff]
    %v347 = vmul.f32 %v344, %v346
    %v348 = vmul.f32 %v345, %v346
    %v349 = vld [vmem:[#allocation2 + $0x2b0] ss:$0 sm:$0xff]
    %v350 = vadd.f32 %v347, %v349
    %v351 = vadd.f32 %v348, %v349
    %v352 = vld [vmem:[#allocation2 + $0xf0] sm:$0xff]
    %v353 = vld [vmem:[#allocation2 + $0x100] sm:$0xff]
    %v354 = vld [vmem:[#allocation2 + $0x110] sm:$0xff]
    %v355 = vld [vmem:[#allocation2 + $0x120] sm:$0xff]
    %v356 = vld [vmem:[#allocation2 + $0x130] sm:$0xff]
    %v357 = vld [vmem:[#allocation2 + $0x140] sm:$0xff]
    %v358 = vld [vmem:[#allocation2 + $0x150] sm:$0xff]
    %v359 = vld [vmem:[#allocation2 + $0x160] sm:$0xff]
    %v360 = vld [vmem:[#allocation2 + $0x170] ss:$0 sm:$0xff]
    %v362 = vsel %vm175, %v350, 0
    %v365 = vsel %vm175, %v351, 0
    %367 = vmatprep.subr.mxu0 0.0
    %368 = vmatpush1.msra.mxu0 0.0
    %369 = vmatprep.subr.mxu0 0.0
    %370 = vmatpush1.msra.mxu0 0.0
    %371 = vmatprep.subr.mxu0 0.0
    %372 = vmatpush1.msra.mxu0 0.0
    %373 = vmatprep.subr.mxu0 0.0
    %374 = vmatpush1.msra.mxu0 0.0
    %375 = vmatprep.subr.mxu0 0.0
    %376 = vmatpush1.msra.mxu0 0.0
    %377 = vmatprep.subr.mxu0 0.0
    %378 = vmatpush1.msra.mxu0 0.0
    %379 = vmatprep.subr.mxu0 0.0
    %380 = vmatpush1.msra.mxu0 0.0
    %381 = vmatprep.subr.mxu0 0.0
    %382 = vmatpush1.msra.mxu0 0.0
    %383 = vmatprep.subr.mxu0 0.0
    %384 = vmatpush1.msra.mxu0 %v359
    %385 = vmatprep.subr.mxu0 0.0
    %386 = vmatpush1.msra.mxu0 %v358
    %387 = vmatprep.subr.mxu0 0.0
    %388 = vmatpush1.msra.mxu0 %v357
    %389 = vmatprep.subr.mxu0 0.0
    %390 = vmatpush1.msra.mxu0 %v356
    %391 = vmatprep.subr.mxu0 0.0
    %392 = vmatpush1.msra.mxu0 %v355
    %393 = vmatprep.subr.mxu0 0.0
    %394 = vmatpush1.msra.mxu0 %v354
    %395 = vmatprep.subr.mxu0 0.0
    %396 = vmatpush1.msra.mxu0 %v353
    %397 = vmatprep.subr.mxu0 0.0
    %398 = vmatpush1.msra.mxu0 %v352
    %399 = vmatprep.subr.mxu0 0.0
    %400 = vmatpush2.msra.mxu0 0.0
    %401 = vmatprep.subr.mxu0 0.0
    %402 = vmatpush2.msra.mxu0 0.0
    %403 = vmatprep.subr.mxu0 0.0
    %404 = vmatpush2.msra.mxu0 0.0
    %405 = vmatprep.subr.mxu0 0.0
    %406 = vmatpush2.msra.mxu0 0.0
    %407 = vmatprep.subr.mxu0 0.0
    %408 = vmatpush2.msra.mxu0 0.0
    %409 = vmatprep.subr.mxu0 0.0
    %410 = vmatpush2.msra.mxu0 0.0
    %411 = vmatprep.subr.mxu0 0.0
    %412 = vmatpush2.msra.mxu0 0.0
    %413 = vmatprep.subr.mxu0 0.0
    %414 = vmatpush2.msra.mxu0 0.0
    %415 = vmatprep.subr.mxu0 0.0
    %416 = vmatpush2.msra.mxu0 0.0
    %417 = vmatprep.subr.mxu0 0.0
    %418 = vmatpush2.msra.mxu0 0.0
    %419 = vmatprep.subr.mxu0 0.0
    %420 = vmatpush2.msra.mxu0 0.0
    %421 = vmatprep.subr.mxu0 0.0
    %422 = vmatpush2.msra.mxu0 0.0
    %423 = vmatprep.subr.mxu0 0.0
    %424 = vmatpush2.msra.mxu0 0.0
    %425 = vmatprep.subr.mxu0 0.0
    %426 = vmatpush2.msra.mxu0 0.0
    %427 = vmatprep.subr.mxu0 0.0
    %428 = vmatpush2.msra.mxu0 0.0
    %429 = vmatprep.subr.mxu0 0.0
    %430 = vmatpush2.msra.mxu0 0.0
    %431 = vmatprep.mubr.f32.mxu0 0.0
    %432 = vmatmul.mubr.f32.gmra.mxu0 %v362
    %v433 = vpop.f32.mrf.mxu0
    %v434 = vadd.f32 %v360, %v433
    %v435 = vpop.f32.mrf.mxu0
    %436 = vmatprep.mubr.f32.mxu0 0.0
    %437 = vmatmul.mubr.f32.gmra.mxu0 %v365
    %v438 = vpop.f32.mrf.mxu0
    %v439 = vadd.f32 %v360, %v438
    %v440 = vpop.f32.mrf.mxu0
    %441 = vdwg.mxu0
    %v442 = vld [vmem:[#allocation2 + $0x180] sm:$0xff]
    %v443 = vld [vmem:[#allocation2 + $0x190] sm:$0xff]
    %v444 = vld [vmem:[#allocation2 + $0x1a0] sm:$0xff]
    %v445 = vld [vmem:[#allocation2 + $0x1b0] sm:$0xff]
    %v446 = vld [vmem:[#allocation2 + $0x1c0] sm:$0xff]
    %v447 = vld [vmem:[#allocation2 + $0x1d0] sm:$0xff]
    %v448 = vld [vmem:[#allocation2 + $0x1e0] sm:$0xff]
    %v449 = vld [vmem:[#allocation2 + $0x1f0] sm:$0xff]
    %v450 = vld [vmem:[#allocation2 + $0x200] ss:$0 sm:$0xff]
    %451 = vmatprep.subr.mxu0 0.0
    %452 = vmatpush1.msra.mxu0 0.0
    %453 = vmatprep.subr.mxu0 0.0
    %454 = vmatpush1.msra.mxu0 0.0
    %455 = vmatprep.subr.mxu0 0.0
    %456 = vmatpush1.msra.mxu0 0.0
    %457 = vmatprep.subr.mxu0 0.0
    %458 = vmatpush1.msra.mxu0 0.0
    %459 = vmatprep.subr.mxu0 0.0
    %460 = vmatpush1.msra.mxu0 0.0
    %461 = vmatprep.subr.mxu0 0.0
    %462 = vmatpush1.msra.mxu0 0.0
    %463 = vmatprep.subr.mxu0 0.0
    %464 = vmatpush1.msra.mxu0 0.0
    %465 = vmatprep.subr.mxu0 0.0
    %466 = vmatpush1.msra.mxu0 0.0
    %467 = vmatprep.subr.mxu0 0.0
    %468 = vmatpush1.msra.mxu0 %v449
    %469 = vmatprep.subr.mxu0 0.0
    %470 = vmatpush1.msra.mxu0 %v448
    %471 = vmatprep.subr.mxu0 0.0
    %472 = vmatpush1.msra.mxu0 %v447
    %473 = vmatprep.subr.mxu0 0.0
    %474 = vmatpush1.msra.mxu0 %v446
    %475 = vmatprep.subr.mxu0 0.0
    %476 = vmatpush1.msra.mxu0 %v445
    %477 = vmatprep.subr.mxu0 0.0
    %478 = vmatpush1.msra.mxu0 %v444
    %479 = vmatprep.subr.mxu0 0.0
    %480 = vmatpush1.msra.mxu0 %v443
    %481 = vmatprep.subr.mxu0 0.0
    %482 = vmatpush1.msra.mxu0 %v442
    %483 = vmatprep.subr.mxu0 0.0
    %484 = vmatpush2.msra.mxu0 0.0
    %485 = vmatprep.subr.mxu0 0.0
    %486 = vmatpush2.msra.mxu0 0.0
    %487 = vmatprep.subr.mxu0 0.0
    %488 = vmatpush2.msra.mxu0 0.0
    %489 = vmatprep.subr.mxu0 0.0
    %490 = vmatpush2.msra.mxu0 0.0
    %491 = vmatprep.subr.mxu0 0.0
    %492 = vmatpush2.msra.mxu0 0.0
    %493 = vmatprep.subr.mxu0 0.0
    %494 = vmatpush2.msra.mxu0 0.0
    %495 = vmatprep.subr.mxu0 0.0
    %496 = vmatpush2.msra.mxu0 0.0
    %497 = vmatprep.subr.mxu0 0.0
    %498 = vmatpush2.msra.mxu0 0.0
    %499 = vmatprep.subr.mxu0 0.0
    %500 = vmatpush2.msra.mxu0 0.0
    %501 = vmatprep.subr.mxu0 0.0
    %502 = vmatpush2.msra.mxu0 0.0
    %503 = vmatprep.subr.mxu0 0.0
    %504 = vmatpush2.msra.mxu0 0.0
    %505 = vmatprep.subr.mxu0 0.0
    %506 = vmatpush2.msra.mxu0 0.0
    %507 = vmatprep.subr.mxu0 0.0
    %508 = vmatpush2.msra.mxu0 0.0
    %509 = vmatprep.subr.mxu0 0.0
    %510 = vmatpush2.msra.mxu0 0.0
    %511 = vmatprep.subr.mxu0 0.0
    %512 = vmatpush2.msra.mxu0 0.0
    %513 = vmatprep.subr.mxu0 0.0
    %514 = vmatpush2.msra.mxu0 0.0
    %515 = vmatprep.mubr.f32.mxu0 0.0
    %516 = vmatmul.mubr.f32.gmra.mxu0 %v362
    %v517 = vpop.f32.mrf.mxu0
    %v518 = vadd.f32 %v450, %v517
    %v519 = vpop.f32.mrf.mxu0
    %520 = vmatprep.mubr.f32.mxu0 0.0
    %521 = vmatmul.mubr.f32.gmra.mxu0 %v365
    %v522 = vpop.f32.mrf.mxu0
    %v523 = vadd.f32 %v450, %v522
    %v524 = vpop.f32.mrf.mxu0
    %525 = vdwg.mxu0
    %v526 = vld [vmem:[#allocation2 + $0x60] sm:$0xff]
    %v527 = vld [vmem:[#allocation2 + $0x70] sm:$0xff]
    %v528 = vld [vmem:[#allocation2 + $0x80] sm:$0xff]
    %v529 = vld [vmem:[#allocation2 + $0x90] sm:$0xff]
    %v530 = vld [vmem:[#allocation2 + $0xa0] sm:$0xff]
    %v531 = vld [vmem:[#allocation2 + $0xb0] sm:$0xff]
    %v532 = vld [vmem:[#allocation2 + $0xc0] sm:$0xff]
    %v533 = vld [vmem:[#allocation2 + $0xd0] sm:$0xff]
    %v534 = vld [vmem:[#allocation2 + $0xe0] ss:$0 sm:$0xff]
    %v535 = vrot.slane %v351, 7
    %vm536 = vcmask 1041409
    %v537 = vsel %vm536, %v535, %v350
    %v538 = vsel %vm175, %v537, 0
    %540 = vmatprep.subr.mxu0 0.0
    %541 = vmatpush1.msra.mxu0 0.0
    %542 = vmatprep.subr.mxu0 0.0
    %543 = vmatpush1.msra.mxu0 0.0
    %544 = vmatprep.subr.mxu0 0.0
    %545 = vmatpush1.msra.mxu0 0.0
    %546 = vmatprep.subr.mxu0 0.0
    %547 = vmatpush1.msra.mxu0 0.0
    %548 = vmatprep.subr.mxu0 0.0
    %549 = vmatpush1.msra.mxu0 0.0
    %550 = vmatprep.subr.mxu0 0.0
    %551 = vmatpush1.msra.mxu0 0.0
    %552 = vmatprep.subr.mxu0 0.0
    %553 = vmatpush1.msra.mxu0 0.0
    %554 = vmatprep.subr.mxu0 0.0
    %555 = vmatpush1.msra.mxu0 0.0
    %556 = vmatprep.subr.mxu0 0.0
    %557 = vmatpush1.msra.mxu0 %v533
    %558 = vmatprep.subr.mxu0 0.0
    %559 = vmatpush1.msra.mxu0 %v532
    %560 = vmatprep.subr.mxu0 0.0
    %561 = vmatpush1.msra.mxu0 %v531
    %562 = vmatprep.subr.mxu0 0.0
    %563 = vmatpush1.msra.mxu0 %v530
    %564 = vmatprep.subr.mxu0 0.0
    %565 = vmatpush1.msra.mxu0 %v529
    %566 = vmatprep.subr.mxu0 0.0
    %567 = vmatpush1.msra.mxu0 %v528
    %568 = vmatprep.subr.mxu0 0.0
    %569 = vmatpush1.msra.mxu0 %v527
    %570 = vmatprep.subr.mxu0 0.0
    %571 = vmatpush1.msra.mxu0 %v526
    %572 = vmatprep.subr.mxu0 0.0
    %573 = vmatpush2.msra.mxu0 0.0
    %574 = vmatprep.subr.mxu0 0.0
    %575 = vmatpush2.msra.mxu0 0.0
    %576 = vmatprep.subr.mxu0 0.0
    %577 = vmatpush2.msra.mxu0 0.0
    %578 = vmatprep.subr.mxu0 0.0
    %579 = vmatpush2.msra.mxu0 0.0
    %580 = vmatprep.subr.mxu0 0.0
    %581 = vmatpush2.msra.mxu0 0.0
    %582 = vmatprep.subr.mxu0 0.0
    %583 = vmatpush2.msra.mxu0 0.0
    %584 = vmatprep.subr.mxu0 0.0
    %585 = vmatpush2.msra.mxu0 0.0
    %586 = vmatprep.subr.mxu0 0.0
    %587 = vmatpush2.msra.mxu0 0.0
    %588 = vmatprep.subr.mxu0 0.0
    %589 = vmatpush2.msra.mxu0 0.0
    %590 = vmatprep.subr.mxu0 0.0
    %591 = vmatpush2.msra.mxu0 0.0
    %592 = vmatprep.subr.mxu0 0.0
    %593 = vmatpush2.msra.mxu0 0.0
    %594 = vmatprep.subr.mxu0 0.0
    %595 = vmatpush2.msra.mxu0 0.0
    %596 = vmatprep.subr.mxu0 0.0
    %597 = vmatpush2.msra.mxu0 0.0
    %598 = vmatprep.subr.mxu0 0.0
    %599 = vmatpush2.msra.mxu0 0.0
    %600 = vmatprep.subr.mxu0 0.0
    %601 = vmatpush2.msra.mxu0 0.0
    %602 = vmatprep.subr.mxu0 0.0
    %603 = vmatpush2.msra.mxu0 0.0
    %604 = vmatprep.mubr.f32.mxu0 0.0
    %605 = vmatmul.mubr.f32.gmra.mxu0 %v538
    %v606 = vpop.f32.mrf.mxu0
    %v607 = vadd.f32 %v534, %v606
    %v608 = vpop.f32.mrf.mxu0
    %609 = vdwg.mxu0
    %v612 = vunpack.c.l.s4 1966171168
    %v613 = vunpack.c.0.s8 %v612
    %v614 = vlaneseq
    %v615 = vshrl.u32 %v614, 7
    %v616 = vsub.s32 %v613, %v615
    %v617 = vrot.slane %v607, %v616
    %v618 = vcombine.high %v617, %v617
    %v620 = vunpack.c.l.s4 1966171168
    %v621 = vunpack.c.0.s8 %v620
    %v622 = vlaneseq
    %v623 = vshrl.u32 %v622, 7
    %v624 = vsub.s32 %v621, %v623
    %v625 = vrot.slane %v617, %v624
    %v627 = vunpack.c.l.s4 1966171168
    %v628 = vunpack.c.0.s8 %v627
    %v629 = vlaneseq
    %v630 = vshrl.u32 %v629, 7
    %v631 = vsub.s32 %v628, %v630
    %v632 = vrot.slane %v618, %v631
    %v633 = vlaneseq
    %v634 = vshrl.u32 %v633, 7
    %v635 = vsub.s32 0, %v634
    %v636 = vrot.slane %v625, %v635
    %v637 = vlaneseq
    %v638 = vshrl.u32 %v637, 7
    %v639 = vsub.s32 0, %v638
    %v640 = vrot.slane %v632, %v639
    %v643 = vmul.f32 %v636, %v434
    %v644 = vmul.f32 %v640, %v439
    %v646 = vsel %vm175, %v643, 0
    %v649 = vsel %vm175, %v644, 0
    %651 = vmatprep.subr.mxu0 0.0
    %652 = vmatpush1.msra.mxu0 0.0
    %653 = vmatprep.subr.mxu0 0.0
    %654 = vmatpush1.msra.mxu0 0.0
    %655 = vmatprep.subr.mxu0 0.0
    %656 = vmatpush1.msra.mxu0 0.0
    %657 = vmatprep.subr.mxu0 0.0
    %658 = vmatpush1.msra.mxu0 0.0
    %659 = vmatprep.subr.mxu0 0.0
    %660 = vmatpush1.msra.mxu0 0.0
    %661 = vmatprep.subr.mxu0 0.0
    %662 = vmatpush1.msra.mxu0 0.0
    %663 = vmatprep.subr.mxu0 0.0
    %664 = vmatpush1.msra.mxu0 0.0
    %665 = vmatprep.subr.mxu0 0.0
    %666 = vmatpush1.msra.mxu0 0.0
    %667 = vmatprep.subr.mxu0 0.0
    %668 = vmatpush1.msra.mxu0 %v32
    %669 = vmatprep.subr.mxu0 0.0
    %670 = vmatpush1.msra.mxu0 %v31
    %671 = vmatprep.subr.mxu0 0.0
    %672 = vmatpush1.msra.mxu0 %v30
    %673 = vmatprep.subr.mxu0 0.0
    %674 = vmatpush1.msra.mxu0 %v29
    %675 = vmatprep.subr.mxu0 0.0
    %676 = vmatpush1.msra.mxu0 %v28
    %677 = vmatprep.subr.mxu0 0.0
    %678 = vmatpush1.msra.mxu0 %v27
    %679 = vmatprep.subr.mxu0 0.0
    %680 = vmatpush1.msra.mxu0 %v26
    %681 = vmatprep.subr.mxu0 0.0
    %682 = vmatpush1.msra.mxu0 %v25
    %683 = vmatprep.subr.mxu0 0.0
    %684 = vmatpush2.msra.mxu0 0.0
    %685 = vmatprep.subr.mxu0 0.0
    %686 = vmatpush2.msra.mxu0 0.0
    %687 = vmatprep.subr.mxu0 0.0
    %688 = vmatpush2.msra.mxu0 0.0
    %689 = vmatprep.subr.mxu0 0.0
    %690 = vmatpush2.msra.mxu0 0.0
    %691 = vmatprep.subr.mxu0 0.0
    %692 = vmatpush2.msra.mxu0 0.0
    %693 = vmatprep.subr.mxu0 0.0
    %694 = vmatpush2.msra.mxu0 0.0
    %695 = vmatprep.subr.mxu0 0.0
    %696 = vmatpush2.msra.mxu0 0.0
    %697 = vmatprep.subr.mxu0 0.0
    %698 = vmatpush2.msra.mxu0 0.0
    %699 = vmatprep.subr.mxu0 0.0
    %700 = vmatpush2.msra.mxu0 0.0
    %701 = vmatprep.subr.mxu0 0.0
    %702 = vmatpush2.msra.mxu0 0.0
    %703 = vmatprep.subr.mxu0 0.0
    %704 = vmatpush2.msra.mxu0 0.0
    %705 = vmatprep.subr.mxu0 0.0
    %706 = vmatpush2.msra.mxu0 0.0
    %707 = vmatprep.subr.mxu0 0.0
    %708 = vmatpush2.msra.mxu0 0.0
    %709 = vmatprep.subr.mxu0 0.0
    %710 = vmatpush2.msra.mxu0 0.0
    %711 = vmatprep.subr.mxu0 0.0
    %712 = vmatpush2.msra.mxu0 0.0
    %713 = vmatprep.subr.mxu0 0.0
    %714 = vmatpush2.msra.mxu0 0.0
    %715 = vmatprep.mubr.f32.mxu0 0.0
    %716 = vmatmul.mubr.f32.gmra.mxu0 %v646
    %v717 = vpop.f32.mrf.mxu0
    %v718 = vadd.f32 0.0, %v717
    %v719 = vpop.f32.mrf.mxu0
    %720 = vmatprep.mubr.f32.mxu0 0.0
    %721 = vmatmul.mubr.f32.gmra.mxu0 %v649
    %v722 = vpop.f32.mrf.mxu0
    %v723 = vadd.f32 0.0, %v722
    %v724 = vpop.f32.mrf.mxu0
    %725 = vdwg.mxu0
    %v726 = vmul.f32 %v718, 0.17677669
    %v727 = vmul.f32 %v723, 0.17677669
    %v728 = vsel %vm175, %v726, -inf
    %v729 = vrot.slane %v728, 4
    %v730 = vmax.f32 %v728, %v729
    %v731 = vrot.slane %v730, 2
    %v732 = vmax.f32 %v730, %v731
    %v733 = vrot.slane %v732, 1
    %v734 = vmax.f32 %v732, %v733
    %v735 = vsel %vm175, %v727, -inf
    %v736 = vrot.slane %v735, 4
    %v737 = vmax.f32 %v735, %v736
    %v738 = vrot.slane %v737, 2
    %v739 = vmax.f32 %v737, %v738
    %v740 = vrot.slane %v739, 1
    %v741 = vmax.f32 %v739, %v740
    %v742 = vsub.f32 %v726, %v734
    %v743 = vsub.f32 %v727, %v741
    %v744 = vmul.f32 %v742, 1.442695
    %v745 = vpow.pop %v744
    %v746 = vmul.f32 %v743, 1.442695
    %v747 = vpow.pop %v746
    %v748 = vsel %vm175, %v745, 0.0
    %v749 = vrot.slane %v748, 4
    %v750 = vadd.f32 %v748, %v749
    %v751 = vrot.slane %v750, 2
    %v752 = vadd.f32 %v750, %v751
    %v753 = vrot.slane %v752, 1
    %v754 = vadd.f32 %v752, %v753
    %v755 = vsel %vm175, %v747, 0.0
    %v756 = vrot.slane %v755, 4
    %v757 = vadd.f32 %v755, %v756
    %v758 = vrot.slane %v757, 2
    %v759 = vadd.f32 %v757, %v758
    %v760 = vrot.slane %v759, 1
    %v761 = vadd.f32 %v759, %v760
    %v762 = vrcp.pop %v754
    %v763 = vmul.f32 %v745, %v762
    %v764 = vrcp.pop %v761
    %v765 = vmul.f32 %v747, %v764
    %v766 = vmul.f32 %v763, %v518
    %v767 = vmul.f32 %v765, %v523
    %v768 = vsel %vm175, %v766, 0.0
    %v769 = vrot.slane %v768, 4
    %v770 = vadd.f32 %v768, %v769
    %v771 = vrot.slane %v770, 2
    %v772 = vadd.f32 %v770, %v771
    %v773 = vrot.slane %v772, 1
    %v774 = vadd.f32 %v772, %v773
    %v775 = vsel %vm175, %v767, 0.0
    %v776 = vrot.slane %v775, 4
    %v777 = vadd.f32 %v775, %v776
    %v778 = vrot.slane %v777, 2
    %v779 = vadd.f32 %v777, %v778
    %v780 = vrot.slane %v779, 1
    %v781 = vadd.f32 %v779, %v780
    %v782 = vld [vmem:[#allocation2 + $0x210] sm:$0xff]
    %v783 = vld [vmem:[#allocation2 + $0x220] sm:$0xff]
    %v784 = vld [vmem:[#allocation2 + $0x230] sm:$0xff]
    %v785 = vld [vmem:[#allocation2 + $0x240] sm:$0xff]
    %v786 = vld [vmem:[#allocation2 + $0x250] sm:$0xff]
    %v787 = vld [vmem:[#allocation2 + $0x260] sm:$0xff]
    %v788 = vld [vmem:[#allocation2 + $0x270] sm:$0xff]
    %v789 = vld [vmem:[#allocation2 + $0x280] sm:$0xff]
    %v790 = vld [vmem:[#allocation2 + $0x290] ss:$0 sm:$0xff]
    %v793 = vsel %vm536, %v781, %v774
    %v794 = vsel %vm175, %v793, 0
    %796 = vmatprep.subr.mxu0 0.0
    %797 = vmatpush1.msra.mxu0 0.0
    %798 = vmatprep.subr.mxu0 0.0
    %799 = vmatpush1.msra.mxu0 0.0
    %800 = vmatprep.subr.mxu0 0.0
    %801 = vmatpush1.msra.mxu0 0.0
    %802 = vmatprep.subr.mxu0 0.0
    %803 = vmatpush1.msra.mxu0 0.0
    %804 = vmatprep.subr.mxu0 0.0
    %805 = vmatpush1.msra.mxu0 0.0
    %806 = vmatprep.subr.mxu0 0.0
    %807 = vmatpush1.msra.mxu0 0.0
    %808 = vmatprep.subr.mxu0 0.0
    %809 = vmatpush1.msra.mxu0 0.0
    %810 = vmatprep.subr.mxu0 0.0
    %811 = vmatpush1.msra.mxu0 0.0
    %812 = vmatprep.subr.mxu0 0.0
    %813 = vmatpush1.msra.mxu0 %v789
    %814 = vmatprep.subr.mxu0 0.0
    %815 = vmatpush1.msra.mxu0 %v788
    %816 = vmatprep.subr.mxu0 0.0
    %817 = vmatpush1.msra.mxu0 %v787
    %818 = vmatprep.subr.mxu0 0.0
    %819 = vmatpush1.msra.mxu0 %v786
    %820 = vmatprep.subr.mxu0 0.0
    %821 = vmatpush1.msra.mxu0 %v785
    %822 = vmatprep.subr.mxu0 0.0
    %823 = vmatpush1.msra.mxu0 %v784
    %824 = vmatprep.subr.mxu0 0.0
    %825 = vmatpush1.msra.mxu0 %v783
    %826 = vmatprep.subr.mxu0 0.0
    %827 = vmatpush1.msra.mxu0 %v782
    %828 = vmatprep.subr.mxu0 0.0
    %829 = vmatpush2.msra.mxu0 0.0
    %830 = vmatprep.subr.mxu0 0.0
    %831 = vmatpush2.msra.mxu0 0.0
    %832 = vmatprep.subr.mxu0 0.0
    %833 = vmatpush2.msra.mxu0 0.0
    %834 = vmatprep.subr.mxu0 0.0
    %835 = vmatpush2.msra.mxu0 0.0
    %836 = vmatprep.subr.mxu0 0.0
    %837 = vmatpush2.msra.mxu0 0.0
    %838 = vmatprep.subr.mxu0 0.0
    %839 = vmatpush2.msra.mxu0 0.0
    %840 = vmatprep.subr.mxu0 0.0
    %841 = vmatpush2.msra.mxu0 0.0
    %842 = vmatprep.subr.mxu0 0.0
    %843 = vmatpush2.msra.mxu0 0.0
    %844 = vmatprep.subr.mxu0 0.0
    %845 = vmatpush2.msra.mxu0 0.0
    %846 = vmatprep.subr.mxu0 0.0
    %847 = vmatpush2.msra.mxu0 0.0
    %848 = vmatprep.subr.mxu0 0.0
    %849 = vmatpush2.msra.mxu0 0.0
    %850 = vmatprep.subr.mxu0 0.0
    %851 = vmatpush2.msra.mxu0 0.0
    %852 = vmatprep.subr.mxu0 0.0
    %853 = vmatpush2.msra.mxu0 0.0
    %854 = vmatprep.subr.mxu0 0.0
    %855 = vmatpush2.msra.mxu0 0.0
    %856 = vmatprep.subr.mxu0 0.0
    %857 = vmatpush2.msra.mxu0 0.0
    %858 = vmatprep.subr.mxu0 0.0
    %859 = vmatpush2.msra.mxu0 0.0
    %860 = vmatprep.mubr.f32.mxu0 0.0
    %861 = vmatmul.mubr.f32.gmra.mxu0 %v794
    %v862 = vpop.f32.mrf.mxu0
    %v863 = vadd.f32 %v790, %v862
    %v864 = vpop.f32.mrf.mxu0
    %865 = vdwg.mxu0
    %v867 = vrot.slane %v863, 1
    %v870 = vadd.f32 %v157, %v863
    %v871 = vadd.f32 %v162, %v867
    %v874 = vrot.slane %v871, 7
    %v875 = vsel %vm536, %v874, %v870
    %v876 = vsel %vm175, %v875, 0
    %878 = vmatprep.subr.mxu0 0.0
    %879 = vmatpush1.msra.mxu0 0.0
    %880 = vmatprep.subr.mxu0 0.0
    %881 = vmatpush1.msra.mxu0 0.0
    %882 = vmatprep.subr.mxu0 0.0
    %883 = vmatpush1.msra.mxu0 0.0
    %884 = vmatprep.subr.mxu0 0.0
    %885 = vmatpush1.msra.mxu0 0.0
    %886 = vmatprep.subr.mxu0 0.0
    %887 = vmatpush1.msra.mxu0 0.0
    %888 = vmatprep.subr.mxu0 0.0
    %889 = vmatpush1.msra.mxu0 0.0
    %890 = vmatprep.subr.mxu0 0.0
    %891 = vmatpush1.msra.mxu0 0.0
    %892 = vmatprep.subr.mxu0 0.0
    %893 = vmatpush1.msra.mxu0 0.0
    %894 = vmatprep.subr.mxu0 0.0
    %895 = vmatpush1.msra.mxu0 %v40
    %896 = vmatprep.subr.mxu0 0.0
    %897 = vmatpush1.msra.mxu0 %v39
    %898 = vmatprep.subr.mxu0 0.0
    %899 = vmatpush1.msra.mxu0 %v38
    %900 = vmatprep.subr.mxu0 0.0
    %901 = vmatpush1.msra.mxu0 %v37
    %902 = vmatprep.subr.mxu0 0.0
    %903 = vmatpush1.msra.mxu0 %v36
    %904 = vmatprep.subr.mxu0 0.0
    %905 = vmatpush1.msra.mxu0 %v35
    %906 = vmatprep.subr.mxu0 0.0
    %907 = vmatpush1.msra.mxu0 %v34
    %908 = vmatprep.subr.mxu0 0.0
    %909 = vmatpush1.msra.mxu0 %v33
    %910 = vmatprep.subr.mxu0 0.0
    %911 = vmatpush2.msra.mxu0 0.0
    %912 = vmatprep.subr.mxu0 0.0
    %913 = vmatpush2.msra.mxu0 0.0
    %914 = vmatprep.subr.mxu0 0.0
    %915 = vmatpush2.msra.mxu0 0.0
    %916 = vmatprep.subr.mxu0 0.0
    %917 = vmatpush2.msra.mxu0 0.0
    %918 = vmatprep.subr.mxu0 0.0
    %919 = vmatpush2.msra.mxu0 0.0
    %920 = vmatprep.subr.mxu0 0.0
    %921 = vmatpush2.msra.mxu0 0.0
    %922 = vmatprep.subr.mxu0 0.0
    %923 = vmatpush2.msra.mxu0 0.0
    %924 = vmatprep.subr.mxu0 0.0
    %925 = vmatpush2.msra.mxu0 0.0
    %926 = vmatprep.subr.mxu0 0.0
    %927 = vmatpush2.msra.mxu0 0.0
    %928 = vmatprep.subr.mxu0 0.0
    %929 = vmatpush2.msra.mxu0 0.0
    %930 = vmatprep.subr.mxu0 0.0
    %931 = vmatpush2.msra.mxu0 0.0
    %932 = vmatprep.subr.mxu0 0.0
    %933 = vmatpush2.msra.mxu0 0.0
    %934 = vmatprep.subr.mxu0 0.0
    %935 = vmatpush2.msra.mxu0 0.0
    %936 = vmatprep.subr.mxu0 0.0
    %937 = vmatpush2.msra.mxu0 0.0
    %938 = vmatprep.subr.mxu0 0.0
    %939 = vmatpush2.msra.mxu0 0.0
    %940 = vmatprep.subr.mxu0 0.0
    %941 = vmatpush2.msra.mxu0 0.0
    %942 = vmatprep.mubr.f32.mxu0 0.0
    %943 = vmatmul.mubr.f32.gmra.mxu0 %v876
    %v944 = vpop.f32.mrf.mxu0
    %v945 = vadd.f32 0.0, %v944
    %v946 = vpop.f32.mrf.mxu0
    %947 = vdwg.mxu0
    %v949 = vrot.slane %v945, 1
    %v952 = vsub.f32 %v870, %v945
    %v953 = vsub.f32 %v871, %v949
    %v954 = vmul.f32 %v952, %v952
    %v955 = vmul.f32 %v953, %v953
    %v958 = vrot.slane %v955, 7
    %v959 = vsel %vm536, %v958, %v954
    %v960 = vsel %vm175, %v959, 0
    %962 = vmatprep.subr.mxu0 0.0
    %963 = vmatpush1.msra.mxu0 0.0
    %964 = vmatprep.subr.mxu0 0.0
    %965 = vmatpush1.msra.mxu0 0.0
    %966 = vmatprep.subr.mxu0 0.0
    %967 = vmatpush1.msra.mxu0 0.0
    %968 = vmatprep.subr.mxu0 0.0
    %969 = vmatpush1.msra.mxu0 0.0
    %970 = vmatprep.subr.mxu0 0.0
    %971 = vmatpush1.msra.mxu0 0.0
    %972 = vmatprep.subr.mxu0 0.0
    %973 = vmatpush1.msra.mxu0 0.0
    %974 = vmatprep.subr.mxu0 0.0
    %975 = vmatpush1.msra.mxu0 0.0
    %976 = vmatprep.subr.mxu0 0.0
    %977 = vmatpush1.msra.mxu0 0.0
    %978 = vmatprep.subr.mxu0 0.0
    %979 = vmatpush1.msra.mxu0 %v40
    %980 = vmatprep.subr.mxu0 0.0
    %981 = vmatpush1.msra.mxu0 %v39
    %982 = vmatprep.subr.mxu0 0.0
    %983 = vmatpush1.msra.mxu0 %v38
    %984 = vmatprep.subr.mxu0 0.0
    %985 = vmatpush1.msra.mxu0 %v37
    %986 = vmatprep.subr.mxu0 0.0
    %987 = vmatpush1.msra.mxu0 %v36
    %988 = vmatprep.subr.mxu0 0.0
    %989 = vmatpush1.msra.mxu0 %v35
    %990 = vmatprep.subr.mxu0 0.0
    %991 = vmatpush1.msra.mxu0 %v34
    %992 = vmatprep.subr.mxu0 0.0
    %993 = vmatpush1.msra.mxu0 %v33
    %994 = vmatprep.subr.mxu0 0.0
    %995 = vmatpush2.msra.mxu0 0.0
    %996 = vmatprep.subr.mxu0 0.0
    %997 = vmatpush2.msra.mxu0 0.0
    %998 = vmatprep.subr.mxu0 0.0
    %999 = vmatpush2.msra.mxu0 0.0
    %1000 = vmatprep.subr.mxu0 0.0
    %1001 = vmatpush2.msra.mxu0 0.0
    %1002 = vmatprep.subr.mxu0 0.0
    %1003 = vmatpush2.msra.mxu0 0.0
    %1004 = vmatprep.subr.mxu0 0.0
    %1005 = vmatpush2.msra.mxu0 0.0
    %1006 = vmatprep.subr.mxu0 0.0
    %1007 = vmatpush2.msra.mxu0 0.0
    %1008 = vmatprep.subr.mxu0 0.0
    %1009 = vmatpush2.msra.mxu0 0.0
    %1010 = vmatprep.subr.mxu0 0.0
    %1011 = vmatpush2.msra.mxu0 0.0
    %1012 = vmatprep.subr.mxu0 0.0
    %1013 = vmatpush2.msra.mxu0 0.0
    %1014 = vmatprep.subr.mxu0 0.0
    %1015 = vmatpush2.msra.mxu0 0.0
    %1016 = vmatprep.subr.mxu0 0.0
    %1017 = vmatpush2.msra.mxu0 0.0
    %1018 = vmatprep.subr.mxu0 0.0
    %1019 = vmatpush2.msra.mxu0 0.0
    %1020 = vmatprep.subr.mxu0 0.0
    %1021 = vmatpush2.msra.mxu0 0.0
    %1022 = vmatprep.subr.mxu0 0.0
    %1023 = vmatpush2.msra.mxu0 0.0
    %1024 = vmatprep.subr.mxu0 0.0
    %1025 = vmatpush2.msra.mxu0 0.0
    %1026 = vmatprep.mubr.f32.mxu0 0.0
    %1027 = vmatmul.mubr.f32.gmra.mxu0 %v960
    %v1028 = vpop.f32.mrf.mxu0
    %v1029 = vadd.f32 1e-05, %v1028
    %v1030 = vpop.f32.mrf.mxu0
    %1031 = vdwg.mxu0
    %v1032 = vrsqrt.pop %v1029
    %v1034 = vrot.slane %v1032, 1
    %v1037 = vmul.f32 %v952, %v1032
    %v1038 = vmul.f32 %v953, %v1034
    %v1039 = vld [vmem:[#allocation2 + $0x2c0] ss:$0 sm:$0xff]
    %v1040 = vmul.f32 %v1037, %v1039
    %v1041 = vmul.f32 %v1038, %v1039
    %v1042 = vld [vmem:[#allocation2 + $0x2d0] ss:$0 sm:$0xff]
    %v1043 = vadd.f32 %v1040, %v1042
    %v1044 = vadd.f32 %v1041, %v1042
    %v1045 = vld [vmem:[#allocation2 + $0x300] sm:$0xff]
    %v1046 = vld [vmem:[#allocation2 + $0x308] sm:$0xff]
    %v1047 = vld [vmem:[#allocation2 + $0x310] sm:$0xff]
    %v1048 = vld [vmem:[#allocation2 + $0x318] sm:$0xff]
    %v1049 = vld [vmem:[#allocation2 + $0x320] sm:$0xff]
    %v1050 = vld [vmem:[#allocation2 + $0x328] sm:$0xff]
    %v1051 = vld [vmem:[#allocation2 + $0x330] sm:$0xff]
    %v1052 = vld [vmem:[#allocation2 + $0x338] sm:$0xff]
    %v1053 = vld [vmem:[#allocation2 + $0x340] sm:$0xff]
    %v1054 = vld [vmem:[#allocation2 + $0x348] sm:$0xff]
    %v1055 = vld [vmem:[#allocation2 + $0x350] sm:$0xff]
    %v1056 = vld [vmem:[#allocation2 + $0x358] sm:$0xff]
    %v1057 = vld [vmem:[#allocation2 + $0x360] sm:$0xff]
    %v1058 = vld [vmem:[#allocation2 + $0x368] sm:$0xff]
    %v1059 = vld [vmem:[#allocation2 + $0x370] sm:$0xff]
    %v1060 = vld [vmem:[#allocation2 + $0x378] sm:$0xff]
    %s1061 = scalar_lea.vmem [#allocation2], 896
    %v1062 = vld [vmem:[%s1061] ss:$8 sm:$0x3]
    %v1064 = vlaneseq
    %v1065 = vshrl.u32 %v1064, 7
    %v1066 = vsub.s32 0, %v1065
    %v1067 = vrot.slane %v1062, %v1066
    %v1068 = vlaneseq
    %v1069 = vshrl.u32 %v1068, 7
    %v1070 = vsub.s32 1, %v1069
    %v1071 = vrot.slane %v1062, %v1070
    %v1076 = vrot.slane %v1044, 7
    %v1077 = vsel %vm536, %v1076, %v1043
    %v1078 = vsel %vm175, %v1077, 0
    %1080 = vmatprep.subr.mxu0 0.0
    %1081 = vmatpush1.msra.mxu0 0.0
    %1082 = vmatprep.subr.mxu0 0.0
    %1083 = vmatpush1.msra.mxu0 0.0
    %1084 = vmatprep.subr.mxu0 0.0
    %1085 = vmatpush1.msra.mxu0 0.0
    %1086 = vmatprep.subr.mxu0 0.0
    %1087 = vmatpush1.msra.mxu0 0.0
    %1088 = vmatprep.subr.mxu0 0.0
    %1089 = vmatpush1.msra.mxu0 0.0
    %1090 = vmatprep.subr.mxu0 0.0
    %1091 = vmatpush1.msra.mxu0 0.0
    %1092 = vmatprep.subr.mxu0 0.0
    %1093 = vmatpush1.msra.mxu0 0.0
    %1094 = vmatprep.subr.mxu0 0.0
    %1095 = vmatpush1.msra.mxu0 0.0
    %1096 = vmatprep.subr.mxu0 %v1060
    %1097 = vmatpush1.msra.mxu0 %v1059
    %1098 = vmatprep.subr.mxu0 %v1058
    %1099 = vmatpush1.msra.mxu0 %v1057
    %1100 = vmatprep.subr.mxu0 %v1056
    %1101 = vmatpush1.msra.mxu0 %v1055
    %1102 = vmatprep.subr.mxu0 %v1054
    %1103 = vmatpush1.msra.mxu0 %v1053
    %1104 = vmatprep.subr.mxu0 %v1052
    %1105 = vmatpush1.msra.mxu0 %v1051
    %1106 = vmatprep.subr.mxu0 %v1050
    %1107 = vmatpush1.msra.mxu0 %v1049
    %1108 = vmatprep.subr.mxu0 %v1048
    %1109 = vmatpush1.msra.mxu0 %v1047
    %1110 = vmatprep.subr.mxu0 %v1046
    %1111 = vmatpush1.msra.mxu0 %v1045
    %1112 = vmatprep.subr.mxu0 0.0
    %1113 = vmatpush2.msra.mxu0 0.0
    %1114 = vmatprep.subr.mxu0 0.0
    %1115 = vmatpush2.msra.mxu0 0.0
    %1116 = vmatprep.subr.mxu0 0.0
    %1117 = vmatpush2.msra.mxu0 0.0
    %1118 = vmatprep.subr.mxu0 0.0
    %1119 = vmatpush2.msra.mxu0 0.0
    %1120 = vmatprep.subr.mxu0 0.0
    %1121 = vmatpush2.msra.mxu0 0.0
    %1122 = vmatprep.subr.mxu0 0.0
    %1123 = vmatpush2.msra.mxu0 0.0
    %1124 = vmatprep.subr.mxu0 0.0
    %1125 = vmatpush2.msra.mxu0 0.0
    %1126 = vmatprep.subr.mxu0 0.0
    %1127 = vmatpush2.msra.mxu0 0.0
    %1128 = vmatprep.subr.mxu0 0.0
    %1129 = vmatpush2.msra.mxu0 0.0
    %1130 = vmatprep.subr.mxu0 0.0
    %1131 = vmatpush2.msra.mxu0 0.0
    %1132 = vmatprep.subr.mxu0 0.0
    %1133 = vmatpush2.msra.mxu0 0.0
    %1134 = vmatprep.subr.mxu0 0.0
    %1135 = vmatpush2.msra.mxu0 0.0
    %1136 = vmatprep.subr.mxu0 0.0
    %1137 = vmatpush2.msra.mxu0 0.0
    %1138 = vmatprep.subr.mxu0 0.0
    %1139 = vmatpush2.msra.mxu0 0.0
    %1140 = vmatprep.subr.mxu0 0.0
    %1141 = vmatpush2.msra.mxu0 0.0
    %1142 = vmatprep.subr.mxu0 0.0
    %1143 = vmatpush2.msra.mxu0 0.0
    %1144 = vmatprep.mubr.f32.mxu0 0.0
    %1145 = vmatmul.mubr.f32.gmra.mxu0 %v1078
    %v1146 = vpop.f32.mrf.mxu0
    %v1147 = vadd.f32 %v1067, %v1146
    %v1148 = vpop.f32.mrf.mxu0
    %v1149 = vadd.f32 %v1071, %v1148
    %1150 = vdwg.mxu0
    %v1151 = vmul.f32 %v1147, %v1147
    %v1152 = vmul.f32 %v1149, %v1149
    %v1153 = vmul.f32 %v1147, %v1151
    %v1154 = vmul.f32 %v1149, %v1152
    %v1155 = vmul.f32 %v1153, 0.044715
    %v1156 = vmul.f32 %v1154, 0.044715
    %v1157 = vadd.f32 %v1147, %v1155
    %v1158 = vadd.f32 %v1149, %v1156
    %v1159 = vmul.f32 %v1157, 0.7978846
    %v1160 = vmul.f32 %v1158, 0.7978846
    %v1161 = vtanh.pop %v1159
    %v1162 = vtanh.pop %v1160
    %v1163 = vadd.f32 %v1161, 1.0
    %v1164 = vadd.f32 %v1162, 1.0
    %v1165 = vmul.f32 %v1163, 0.5
    %v1166 = vmul.f32 %v1164, 0.5
    %v1167 = vmul.f32 %v1147, %v1165
    %v1168 = vmul.f32 %v1149, %v1166
    %v1169 = vld [vmem:[#allocation2 + $0x390] sm:$0xff]
    %v1170 = vld [vmem:[#allocation2 + $0x3a0] sm:$0xff]
    %v1171 = vld [vmem:[#allocation2 + $0x3b0] sm:$0xff]
    %v1172 = vld [vmem:[#allocation2 + $0x3c0] sm:$0xff]
    %v1173 = vld [vmem:[#allocation2 + $0x3d0] sm:$0xff]
    %v1174 = vld [vmem:[#allocation2 + $0x3e0] sm:$0xff]
    %v1175 = vld [vmem:[#allocation2 + $0x3f0] sm:$0xff]
    %v1176 = vld [vmem:[#allocation2 + $0x400] sm:$0xff]
    %v1177 = vld [vmem:[#allocation2 + $0x410] sm:$0xff]
    %v1178 = vld [vmem:[#allocation2 + $0x420] sm:$0xff]
    %v1179 = vld [vmem:[#allocation2 + $0x430] sm:$0xff]
    %v1180 = vld [vmem:[#allocation2 + $0x440] sm:$0xff]
    %v1181 = vld [vmem:[#allocation2 + $0x450] sm:$0xff]
    %v1182 = vld [vmem:[#allocation2 + $0x460] sm:$0xff]
    %v1183 = vld [vmem:[#allocation2 + $0x470] sm:$0xff]
    %v1184 = vld [vmem:[#allocation2 + $0x480] sm:$0xff]
    %v1185 = vld [vmem:[#allocation2 + $0x490] sm:$0xff]
    %v1186 = vld [vmem:[#allocation2 + $0x4a0] sm:$0xff]
    %v1187 = vld [vmem:[#allocation2 + $0x4b0] sm:$0xff]
    %v1188 = vld [vmem:[#allocation2 + $0x4c0] sm:$0xff]
    %v1189 = vld [vmem:[#allocation2 + $0x4d0] sm:$0xff]
    %v1190 = vld [vmem:[#allocation2 + $0x4e0] sm:$0xff]
    %v1191 = vld [vmem:[#allocation2 + $0x4f0] sm:$0xff]
    %v1192 = vld [vmem:[#allocation2 + $0x500] sm:$0xff]
    %v1193 = vld [vmem:[#allocation2 + $0x510] sm:$0xff]
    %v1194 = vld [vmem:[#allocation2 + $0x520] sm:$0xff]
    %v1195 = vld [vmem:[#allocation2 + $0x530] sm:$0xff]
    %v1196 = vld [vmem:[#allocation2 + $0x540] sm:$0xff]
    %v1197 = vld [vmem:[#allocation2 + $0x550] sm:$0xff]
    %v1198 = vld [vmem:[#allocation2 + $0x560] sm:$0xff]
    %v1199 = vld [vmem:[#allocation2 + $0x570] sm:$0xff]
    %v1200 = vld [vmem:[#allocation2 + $0x580] sm:$0xff]
    %v1201 = vld [vmem:[#allocation2 + $0x590] ss:$0 sm:$0xff]
    %1202 = vmatprep.subr.mxu0 0.0
    %1203 = vmatpush1.msra.mxu0 %v1184
    %1204 = vmatprep.subr.mxu0 0.0
    %1205 = vmatpush1.msra.mxu0 %v1183
    %1206 = vmatprep.subr.mxu0 0.0
    %1207 = vmatpush1.msra.mxu0 %v1182
    %1208 = vmatprep.subr.mxu0 0.0
    %1209 = vmatpush1.msra.mxu0 %v1181
    %1210 = vmatprep.subr.mxu0 0.0
    %1211 = vmatpush1.msra.mxu0 %v1180
    %1212 = vmatprep.subr.mxu0 0.0
    %1213 = vmatpush1.msra.mxu0 %v1179
    %1214 = vmatprep.subr.mxu0 0.0
    %1215 = vmatpush1.msra.mxu0 %v1178
    %1216 = vmatprep.subr.mxu0 0.0
    %1217 = vmatpush1.msra.mxu0 %v1177
    %1218 = vmatprep.subr.mxu0 0.0
    %1219 = vmatpush1.msra.mxu0 %v1176
    %1220 = vmatprep.subr.mxu0 0.0
    %1221 = vmatpush1.msra.mxu0 %v1175
    %1222 = vmatprep.subr.mxu0 0.0
    %1223 = vmatpush1.msra.mxu0 %v1174
    %1224 = vmatprep.subr.mxu0 0.0
    %1225 = vmatpush1.msra.mxu0 %v1173
    %1226 = vmatprep.subr.mxu0 0.0
    %1227 = vmatpush1.msra.mxu0 %v1172
    %1228 = vmatprep.subr.mxu0 0.0
    %1229 = vmatpush1.msra.mxu0 %v1171
    %1230 = vmatprep.subr.mxu0 0.0
    %1231 = vmatpush1.msra.mxu0 %v1170
    %1232 = vmatprep.subr.mxu0 0.0
    %1233 = vmatpush1.msra.mxu0 %v1169
    %1234 = vmatprep.subr.mxu0 0.0
    %1235 = vmatpush2.msra.mxu0 %v1200
    %1236 = vmatprep.subr.mxu0 0.0
    %1237 = vmatpush2.msra.mxu0 %v1199
    %1238 = vmatprep.subr.mxu0 0.0
    %1239 = vmatpush2.msra.mxu0 %v1198
    %1240 = vmatprep.subr.mxu0 0.0
    %1241 = vmatpush2.msra.mxu0 %v1197
    %1242 = vmatprep.subr.mxu0 0.0
    %1243 = vmatpush2.msra.mxu0 %v1196
    %1244 = vmatprep.subr.mxu0 0.0
    %1245 = vmatpush2.msra.mxu0 %v1195
    %1246 = vmatprep.subr.mxu0 0.0
    %1247 = vmatpush2.msra.mxu0 %v1194
    %1248 = vmatprep.subr.mxu0 0.0
    %1249 = vmatpush2.msra.mxu0 %v1193
    %1250 = vmatprep.subr.mxu0 0.0
    %1251 = vmatpush2.msra.mxu0 %v1192
    %1252 = vmatprep.subr.mxu0 0.0
    %1253 = vmatpush2.msra.mxu0 %v1191
    %1254 = vmatprep.subr.mxu0 0.0
    %1255 = vmatpush2.msra.mxu0 %v1190
    %1256 = vmatprep.subr.mxu0 0.0
    %1257 = vmatpush2.msra.mxu0 %v1189
    %1258 = vmatprep.subr.mxu0 0.0
    %1259 = vmatpush2.msra.mxu0 %v1188
    %1260 = vmatprep.subr.mxu0 0.0
    %1261 = vmatpush2.msra.mxu0 %v1187
    %1262 = vmatprep.subr.mxu0 0.0
    %1263 = vmatpush2.msra.mxu0 %v1186
    %1264 = vmatprep.subr.mxu0 0.0
    %1265 = vmatpush2.msra.mxu0 %v1185
    %1266 = vmatprep.mubr.f32.mxu0 %v1168
    %1267 = vmatmul.mubr.f32.gmra.mxu0 %v1167
    %v1268 = vpop.f32.mrf.mxu0
    %v1269 = vadd.f32 %v1201, %v1268
    %v1270 = vpop.f32.mrf.mxu0
    %1271 = vdwg.mxu0
    %v1273 = vrot.slane %v1269, 1
    %v1276 = vadd.f32 %v870, %v1269
    %v1277 = vadd.f32 %v871, %v1273
    %v1280 = vrot.slane %v1277, 7
    %v1281 = vsel %vm536, %v1280, %v1276
    %v1282 = vsel %vm175, %v1281, 0
    %1284 = vmatprep.subr.mxu0 0.0
    %1285 = vmatpush1.msra.mxu0 0.0
    %1286 = vmatprep.subr.mxu0 0.0
    %1287 = vmatpush1.msra.mxu0 0.0
    %1288 = vmatprep.subr.mxu0 0.0
    %1289 = vmatpush1.msra.mxu0 0.0
    %1290 = vmatprep.subr.mxu0 0.0
    %1291 = vmatpush1.msra.mxu0 0.0
    %1292 = vmatprep.subr.mxu0 0.0
    %1293 = vmatpush1.msra.mxu0 0.0
    %1294 = vmatprep.subr.mxu0 0.0
    %1295 = vmatpush1.msra.mxu0 0.0
    %1296 = vmatprep.subr.mxu0 0.0
    %1297 = vmatpush1.msra.mxu0 0.0
    %1298 = vmatprep.subr.mxu0 0.0
    %1299 = vmatpush1.msra.mxu0 0.0
    %1300 = vmatprep.subr.mxu0 0.0
    %1301 = vmatpush1.msra.mxu0 %v40
    %1302 = vmatprep.subr.mxu0 0.0
    %1303 = vmatpush1.msra.mxu0 %v39
    %1304 = vmatprep.subr.mxu0 0.0
    %1305 = vmatpush1.msra.mxu0 %v38
    %1306 = vmatprep.subr.mxu0 0.0
    %1307 = vmatpush1.msra.mxu0 %v37
    %1308 = vmatprep.subr.mxu0 0.0
    %1309 = vmatpush1.msra.mxu0 %v36
    %1310 = vmatprep.subr.mxu0 0.0
    %1311 = vmatpush1.msra.mxu0 %v35
    %1312 = vmatprep.subr.mxu0 0.0
    %1313 = vmatpush1.msra.mxu0 %v34
    %1314 = vmatprep.subr.mxu0 0.0
    %1315 = vmatpush1.msra.mxu0 %v33
    %1316 = vmatprep.subr.mxu0 0.0
    %1317 = vmatpush2.msra.mxu0 0.0
    %1318 = vmatprep.subr.mxu0 0.0
    %1319 = vmatpush2.msra.mxu0 0.0
    %1320 = vmatprep.subr.mxu0 0.0
    %1321 = vmatpush2.msra.mxu0 0.0
    %1322 = vmatprep.subr.mxu0 0.0
    %1323 = vmatpush2.msra.mxu0 0.0
    %1324 = vmatprep.subr.mxu0 0.0
    %1325 = vmatpush2.msra.mxu0 0.0
    %1326 = vmatprep.subr.mxu0 0.0
    %1327 = vmatpush2.msra.mxu0 0.0
    %1328 = vmatprep.subr.mxu0 0.0
    %1329 = vmatpush2.msra.mxu0 0.0
    %1330 = vmatprep.subr.mxu0 0.0
    %1331 = vmatpush2.msra.mxu0 0.0
    %1332 = vmatprep.subr.mxu0 0.0
    %1333 = vmatpush2.msra.mxu0 0.0
    %1334 = vmatprep.subr.mxu0 0.0
    %1335 = vmatpush2.msra.mxu0 0.0
    %1336 = vmatprep.subr.mxu0 0.0
    %1337 = vmatpush2.msra.mxu0 0.0
    %1338 = vmatprep.subr.mxu0 0.0
    %1339 = vmatpush2.msra.mxu0 0.0
    %1340 = vmatprep.subr.mxu0 0.0
    %1341 = vmatpush2.msra.mxu0 0.0
    %1342 = vmatprep.subr.mxu0 0.0
    %1343 = vmatpush2.msra.mxu0 0.0
    %1344 = vmatprep.subr.mxu0 0.0
    %1345 = vmatpush2.msra.mxu0 0.0
    %1346 = vmatprep.subr.mxu0 0.0
    %1347 = vmatpush2.msra.mxu0 0.0
    %1348 = vmatprep.mubr.f32.mxu0 0.0
    %1349 = vmatmul.mubr.f32.gmra.mxu0 %v1282
    %v1350 = vpop.f32.mrf.mxu0
    %v1351 = vadd.f32 0.0, %v1350
    %v1352 = vpop.f32.mrf.mxu0
    %1353 = vdwg.mxu0
    %v1355 = vrot.slane %v1351, 1
    %v1358 = vsub.f32 %v1276, %v1351
    %v1359 = vsub.f32 %v1277, %v1355
    %v1360 = vmul.f32 %v1358, %v1358
    %v1361 = vmul.f32 %v1359, %v1359
    %v1364 = vrot.slane %v1361, 7
    %v1365 = vsel %vm536, %v1364, %v1360
    %v1366 = vsel %vm175, %v1365, 0
    %1368 = vmatprep.subr.mxu0 0.0
    %1369 = vmatpush1.msra.mxu0 0.0
    %1370 = vmatprep.subr.mxu0 0.0
    %1371 = vmatpush1.msra.mxu0 0.0
    %1372 = vmatprep.subr.mxu0 0.0
    %1373 = vmatpush1.msra.mxu0 0.0
    %1374 = vmatprep.subr.mxu0 0.0
    %1375 = vmatpush1.msra.mxu0 0.0
    %1376 = vmatprep.subr.mxu0 0.0
    %1377 = vmatpush1.msra.mxu0 0.0
    %1378 = vmatprep.subr.mxu0 0.0
    %1379 = vmatpush1.msra.mxu0 0.0
    %1380 = vmatprep.subr.mxu0 0.0
    %1381 = vmatpush1.msra.mxu0 0.0
    %1382 = vmatprep.subr.mxu0 0.0
    %1383 = vmatpush1.msra.mxu0 0.0
    %1384 = vmatprep.subr.mxu0 0.0
    %1385 = vmatpush1.msra.mxu0 %v40
    %1386 = vmatprep.subr.mxu0 0.0
    %1387 = vmatpush1.msra.mxu0 %v39
    %1388 = vmatprep.subr.mxu0 0.0
    %1389 = vmatpush1.msra.mxu0 %v38
    %1390 = vmatprep.subr.mxu0 0.0
    %1391 = vmatpush1.msra.mxu0 %v37
    %1392 = vmatprep.subr.mxu0 0.0
    %1393 = vmatpush1.msra.mxu0 %v36
    %1394 = vmatprep.subr.mxu0 0.0
    %1395 = vmatpush1.msra.mxu0 %v35
    %1396 = vmatprep.subr.mxu0 0.0
    %1397 = vmatpush1.msra.mxu0 %v34
    %1398 = vmatprep.subr.mxu0 0.0
    %1399 = vmatpush1.msra.mxu0 %v33
    %1400 = vmatprep.subr.mxu0 0.0
    %1401 = vmatpush2.msra.mxu0 0.0
    %1402 = vmatprep.subr.mxu0 0.0
    %1403 = vmatpush2.msra.mxu0 0.0
    %1404 = vmatprep.subr.mxu0 0.0
    %1405 = vmatpush2.msra.mxu0 0.0
    %1406 = vmatprep.subr.mxu0 0.0
    %1407 = vmatpush2.msra.mxu0 0.0
    %1408 = vmatprep.subr.mxu0 0.0
    %1409 = vmatpush2.msra.mxu0 0.0
    %1410 = vmatprep.subr.mxu0 0.0
    %1411 = vmatpush2.msra.mxu0 0.0
    %1412 = vmatprep.subr.mxu0 0.0
    %1413 = vmatpush2.msra.mxu0 0.0
    %1414 = vmatprep.subr.mxu0 0.0
    %1415 = vmatpush2.msra.mxu0 0.0
    %1416 = vmatprep.subr.mxu0 0.0
    %1417 = vmatpush2.msra.mxu0 0.0
    %1418 = vmatprep.subr.mxu0 0.0
    %1419 = vmatpush2.msra.mxu0 0.0
    %1420 = vmatprep.subr.mxu0 0.0
    %1421 = vmatpush2.msra.mxu0 0.0
    %1422 = vmatprep.subr.mxu0 0.0
    %1423 = vmatpush2.msra.mxu0 0.0
    %1424 = vmatprep.subr.mxu0 0.0
    %1425 = vmatpush2.msra.mxu0 0.0
    %1426 = vmatprep.subr.mxu0 0.0
    %1427 = vmatpush2.msra.mxu0 0.0
    %1428 = vmatprep.subr.mxu0 0.0
    %1429 = vmatpush2.msra.mxu0 0.0
    %1430 = vmatprep.subr.mxu0 0.0
    %1431 = vmatpush2.msra.mxu0 0.0
    %1432 = vmatprep.mubr.f32.mxu0 0.0
    %1433 = vmatmul.mubr.f32.gmra.mxu0 %v1366
    %v1434 = vpop.f32.mrf.mxu0
    %v1435 = vadd.f32 1e-05, %v1434
    %v1436 = vpop.f32.mrf.mxu0
    %1437 = vdwg.mxu0
    %v1438 = vrsqrt.pop %v1435
    %v1440 = vrot.slane %v1438, 1
    %v1443 = vmul.f32 %v1358, %v1438
    %v1444 = vmul.f32 %v1359, %v1440
    %v1445 = vld [vmem:[#allocation2 + $0x2e0] ss:$0 sm:$0xff]
    %v1446 = vmul.f32 %v1443, %v1445
    %v1447 = vmul.f32 %v1444, %v1445
    %v1448 = vld [vmem:[#allocation2 + $0x2f0] ss:$0 sm:$0xff]
    %v1449 = vadd.f32 %v1446, %v1448
    %v1450 = vadd.f32 %v1447, %v1448
    %v1451 = vld [vmem:[%s0 + $0x20] sm:$0xff]
    %v1452 = vld [vmem:[%s0 + $0x28] sm:$0xff]
    %v1453 = vcvt.s32.f32 %v1451
    %v1454 = vcvt.s32.f32 %v1452
    %v1455 = vld [vmem:[#allocation2 + $0x5a0] sm:$0x3]
    %1457 = vset.pattern.permute.xlu0 0
    %1458 = vperm.xlu0 %1457, %v1453
    %v1459 = vpop.permute.xlu0 %1458
    %1462 = vset.pattern.permute.xlu0 0
    %1463 = vperm.xlu0 %1462, %v1454
    %v1464 = vpop.permute.xlu0 %1463
    %v1466 = vlaneseq
    %v1467 = vshrl.u32 %v1466, 7
    %v1468 = vsub.s32 1, %v1467
    %v1469 = vrot.slane %v1455, %v1468
    %v1470 = vmul.f32 %v1459, %v1469
    %v1471 = vmul.f32 %v1464, %v1469
    %v1472 = vsub.f32 1.0, %v1453
    %v1473 = vsub.f32 1.0, %v1454
    %1475 = vset.pattern.permute.xlu0 0
    %1476 = vperm.xlu0 %1475, %v1472
    %v1477 = vpop.permute.xlu0 %1476
    %1480 = vset.pattern.permute.xlu0 0
    %1481 = vperm.xlu0 %1480, %v1473
    %v1482 = vpop.permute.xlu0 %1481
    %v1484 = vlaneseq
    %v1485 = vshrl.u32 %v1484, 7
    %v1486 = vsub.s32 0, %v1485
    %v1487 = vrot.slane %v1455, %v1486
    %v1488 = vmul.f32 %v1477, %v1487
    %v1489 = vmul.f32 %v1482, %v1487
    %v1490 = vadd.f32 %v1470, %v1488
    %v1491 = vadd.f32 %v1471, %v1489
    %1494 = vrot.lane.b32.xlu0 %v1490, 64
    %v1495 = vpop.permute.xlu0 %1494
    %1496 = vrot.lane.b32.xlu0 %v1491, 64
    %v1497 = vpop.permute.xlu0 %1496
    %v1500 = vsel %vm175, %v167, %v1495
    %v1501 = vsel %vm175, %v172, %v1497
    %vm1502 = vcmp.ne.s32.totalorder %v43, 0
    %vm1503 = vcmp.ne.s32.totalorder %v44, 0
    %v1504 = vsel %vm1502, 1, 0
    %v1505 = vsel %vm1503, 1, 0
    %v1506 = vcvt.s32.f32 %v1504
    %v1507 = vcvt.s32.f32 %v1505
    %v1508 = vld [vmem:[#allocation2 + $0x5b0] sm:$0xff]
    %v1509 = vld [vmem:[#allocation2 + $0x5b8] sm:$0xff]
    %v1510 = vld [vmem:[#allocation2 + $0x5c0] sm:$0xff]
    %v1511 = vld [vmem:[#allocation2 + $0x5c8] sm:$0xff]
    %v1512 = vld [vmem:[#allocation2 + $0x5d0] sm:$0xff]
    %v1513 = vld [vmem:[#allocation2 + $0x5d8] sm:$0xff]
    %v1514 = vld [vmem:[#allocation2 + $0x5e0] sm:$0xff]
    %v1515 = vld [vmem:[#allocation2 + $0x5e8] sm:$0xff]
    %v1516 = vld [vmem:[#allocation2 + $0x5f0] sm:$0xff]
    %v1517 = vld [vmem:[#allocation2 + $0x5f8] sm:$0xff]
    %v1518 = vld [vmem:[#allocation2 + $0x600] sm:$0xff]
    %v1519 = vld [vmem:[#allocation2 + $0x608] sm:$0xff]
    %v1520 = vld [vmem:[#allocation2 + $0x610] sm:$0xff]
    %v1521 = vld [vmem:[#allocation2 + $0x618] sm:$0xff]
    %v1522 = vld [vmem:[#allocation2 + $0x620] sm:$0xff]
    %v1523 = vld [vmem:[#allocation2 + $0x628] sm:$0xff]
    %v1524 = vld [vmem:[#allocation2 + $0x630] sm:$0xff]
    %v1525 = vld [vmem:[#allocation2 + $0x638] sm:$0xff]
    %v1526 = vld [vmem:[#allocation2 + $0x640] sm:$0xff]
    %v1527 = vld [vmem:[#allocation2 + $0x648] sm:$0xff]
    %v1528 = vld [vmem:[#allocation2 + $0x650] sm:$0xff]
    %v1529 = vld [vmem:[#allocation2 + $0x658] sm:$0xff]
    %v1530 = vld [vmem:[#allocation2 + $0x660] sm:$0xff]
    %v1531 = vld [vmem:[#allocation2 + $0x668] sm:$0xff]
    %s1532 = scalar_lea.vmem [#allocation2], 1648
    %v1533 = vld [vmem:[%s1532] ss:$8 sm:$0x3]
    %v1535 = vlaneseq
    %v1536 = vshrl.u32 %v1535, 7
    %v1537 = vsub.s32 0, %v1536
    %v1538 = vrot.slane %v1533, %v1537
    %v1539 = vlaneseq
    %v1540 = vshrl.u32 %v1539, 7
    %v1541 = vsub.s32 1, %v1540
    %v1542 = vrot.slane %v1533, %v1541
    %vm1545 = vcmask 785408
    %v1547 = vsel %vm1545, %v1500, 0
    %v1550 = vsel %vm1545, %v1501, 0
    %1552 = vmatprep.subr.mxu0 0.0
    %1553 = vmatpush1.msra.mxu0 0.0
    %1554 = vmatprep.subr.mxu0 0.0
    %1555 = vmatpush1.msra.mxu0 0.0
    %1556 = vmatprep.subr.mxu0 0.0
    %1557 = vmatpush1.msra.mxu0 0.0
    %1558 = vmatprep.subr.mxu0 0.0
    %1559 = vmatpush1.msra.mxu0 0.0
    %1560 = vmatprep.subr.mxu0 %v1531
    %1561 = vmatpush1.msra.mxu0 %v1530
    %1562 = vmatprep.subr.mxu0 %v1529
    %1563 = vmatpush1.msra.mxu0 %v1528
    %1564 = vmatprep.subr.mxu0 %v1527
    %1565 = vmatpush1.msra.mxu0 %v1526
    %1566 = vmatprep.subr.mxu0 %v1525
    %1567 = vmatpush1.msra.mxu0 %v1524
    %1568 = vmatprep.subr.mxu0 %v1523
    %1569 = vmatpush1.msra.mxu0 %v1522
    %1570 = vmatprep.subr.mxu0 %v1521
    %1571 = vmatpush1.msra.mxu0 %v1520
    %1572 = vmatprep.subr.mxu0 %v1519
    %1573 = vmatpush1.msra.mxu0 %v1518
    %1574 = vmatprep.subr.mxu0 %v1517
    %1575 = vmatpush1.msra.mxu0 %v1516
    %1576 = vmatprep.subr.mxu0 %v1515
    %1577 = vmatpush1.msra.mxu0 %v1514
    %1578 = vmatprep.subr.mxu0 %v1513
    %1579 = vmatpush1.msra.mxu0 %v1512
    %1580 = vmatprep.subr.mxu0 %v1511
    %1581 = vmatpush1.msra.mxu0 %v1510
    %1582 = vmatprep.subr.mxu0 %v1509
    %1583 = vmatpush1.msra.mxu0 %v1508
    %1584 = vmatprep.subr.mxu0 0.0
    %1585 = vmatpush2.msra.mxu0 0.0
    %1586 = vmatprep.subr.mxu0 0.0
    %1587 = vmatpush2.msra.mxu0 0.0
    %1588 = vmatprep.subr.mxu0 0.0
    %1589 = vmatpush2.msra.mxu0 0.0
    %1590 = vmatprep.subr.mxu0 0.0
    %1591 = vmatpush2.msra.mxu0 0.0
    %1592 = vmatprep.subr.mxu0 0.0
    %1593 = vmatpush2.msra.mxu0 0.0
    %1594 = vmatprep.subr.mxu0 0.0
    %1595 = vmatpush2.msra.mxu0 0.0
    %1596 = vmatprep.subr.mxu0 0.0
    %1597 = vmatpush2.msra.mxu0 0.0
    %1598 = vmatprep.subr.mxu0 0.0
    %1599 = vmatpush2.msra.mxu0 0.0
    %1600 = vmatprep.subr.mxu0 0.0
    %1601 = vmatpush2.msra.mxu0 0.0
    %1602 = vmatprep.subr.mxu0 0.0
    %1603 = vmatpush2.msra.mxu0 0.0
    %1604 = vmatprep.subr.mxu0 0.0
    %1605 = vmatpush2.msra.mxu0 0.0
    %1606 = vmatprep.subr.mxu0 0.0
    %1607 = vmatpush2.msra.mxu0 0.0
    %1608 = vmatprep.subr.mxu0 0.0
    %1609 = vmatpush2.msra.mxu0 0.0
    %1610 = vmatprep.subr.mxu0 0.0
    %1611 = vmatpush2.msra.mxu0 0.0
    %1612 = vmatprep.subr.mxu0 0.0
    %1613 = vmatpush2.msra.mxu0 0.0
    %1614 = vmatprep.subr.mxu0 0.0
    %1615 = vmatpush2.msra.mxu0 0.0
    %1616 = vmatprep.mubr.f32.mxu0 0.0
    %1617 = vmatmul.mubr.f32.gmra.mxu0 %v1547
    %v1618 = vpop.f32.mrf.mxu0
    %v1619 = vadd.f32 %v1538, %v1618
    %v1620 = vpop.f32.mrf.mxu0
    %v1621 = vadd.f32 %v1542, %v1620
    %1622 = vmatprep.mubr.f32.mxu0 0.0
    %1623 = vmatmul.mubr.f32.gmra.mxu0 %v1550
    %v1624 = vpop.f32.mrf.mxu0
    %v1625 = vadd.f32 %v1538, %v1624
    %v1626 = vpop.f32.mrf.mxu0
    %v1627 = vadd.f32 %v1542, %v1626
    %1628 = vdwg.mxu0
    %v1629 = vld [vmem:[#allocation2 + $0x680] sm:$0xff]
    %v1630 = vld [vmem:[#allocation2 + $0x688] sm:$0xff]
    %v1631 = vld [vmem:[#allocation2 + $0x690] sm:$0xff]
    %v1632 = vld [vmem:[#allocation2 + $0x698] sm:$0xff]
    %v1633 = vld [vmem:[#allocation2 + $0x6a0] sm:$0xff]
    %v1634 = vld [vmem:[#allocation2 + $0x6a8] sm:$0xff]
    %v1635 = vld [vmem:[#allocation2 + $0x6b0] sm:$0xff]
    %v1636 = vld [vmem:[#allocation2 + $0x6b8] sm:$0xff]
    %v1637 = vld [vmem:[#allocation2 + $0x6c0] sm:$0xff]
    %v1638 = vld [vmem:[#allocation2 + $0x6c8] sm:$0xff]
    %v1639 = vld [vmem:[#allocation2 + $0x6d0] sm:$0xff]
    %v1640 = vld [vmem:[#allocation2 + $0x6d8] sm:$0xff]
    %v1641 = vld [vmem:[#allocation2 + $0x6e0] sm:$0xff]
    %v1642 = vld [vmem:[#allocation2 + $0x6e8] sm:$0xff]
    %v1643 = vld [vmem:[#allocation2 + $0x6f0] sm:$0xff]
    %v1644 = vld [vmem:[#allocation2 + $0x6f8] sm:$0xff]
    %v1646 = vsel %vm175, 0.0, 0
    %1648 = vmatprep.subr.mxu0 0.0
    %1649 = vmatpush1.msra.mxu0 0.0
    %1650 = vmatprep.subr.mxu0 0.0
    %1651 = vmatpush1.msra.mxu0 0.0
    %1652 = vmatprep.subr.mxu0 0.0
    %1653 = vmatpush1.msra.mxu0 0.0
    %1654 = vmatprep.subr.mxu0 0.0
    %1655 = vmatpush1.msra.mxu0 0.0
    %1656 = vmatprep.subr.mxu0 0.0
    %1657 = vmatpush1.msra.mxu0 0.0
    %1658 = vmatprep.subr.mxu0 0.0
    %1659 = vmatpush1.msra.mxu0 0.0
    %1660 = vmatprep.subr.mxu0 0.0
    %1661 = vmatpush1.msra.mxu0 0.0
    %1662 = vmatprep.subr.mxu0 0.0
    %1663 = vmatpush1.msra.mxu0 0.0
    %1664 = vmatprep.subr.mxu0 %v1644
    %1665 = vmatpush1.msra.mxu0 %v1643
    %1666 = vmatprep.subr.mxu0 %v1642
    %1667 = vmatpush1.msra.mxu0 %v1641
    %1668 = vmatprep.subr.mxu0 %v1640
    %1669 = vmatpush1.msra.mxu0 %v1639
    %1670 = vmatprep.subr.mxu0 %v1638
    %1671 = vmatpush1.msra.mxu0 %v1637
    %1672 = vmatprep.subr.mxu0 %v1636
    %1673 = vmatpush1.msra.mxu0 %v1635
    %1674 = vmatprep.subr.mxu0 %v1634
    %1675 = vmatpush1.msra.mxu0 %v1633
    %1676 = vmatprep.subr.mxu0 %v1632
    %1677 = vmatpush1.msra.mxu0 %v1631
    %1678 = vmatprep.subr.mxu0 %v1630
    %1679 = vmatpush1.msra.mxu0 %v1629
    %1680 = vmatprep.subr.mxu0 0.0
    %1681 = vmatpush2.msra.mxu0 0.0
    %1682 = vmatprep.subr.mxu0 0.0
    %1683 = vmatpush2.msra.mxu0 0.0
    %1684 = vmatprep.subr.mxu0 0.0
    %1685 = vmatpush2.msra.mxu0 0.0
    %1686 = vmatprep.subr.mxu0 0.0
    %1687 = vmatpush2.msra.mxu0 0.0
    %1688 = vmatprep.subr.mxu0 0.0
    %1689 = vmatpush2.msra.mxu0 0.0
    %1690 = vmatprep.subr.mxu0 0.0
    %1691 = vmatpush2.msra.mxu0 0.0
    %1692 = vmatprep.subr.mxu0 0.0
    %1693 = vmatpush2.msra.mxu0 0.0
    %1694 = vmatprep.subr.mxu0 0.0
    %1695 = vmatpush2.msra.mxu0 0.0
    %1696 = vmatprep.subr.mxu0 0.0
    %1697 = vmatpush2.msra.mxu0 0.0
    %1698 = vmatprep.subr.mxu0 0.0
    %1699 = vmatpush2.msra.mxu0 0.0
    %1700 = vmatprep.subr.mxu0 0.0
    %1701 = vmatpush2.msra.mxu0 0.0
    %1702 = vmatprep.subr.mxu0 0.0
    %1703 = vmatpush2.msra.mxu0 0.0
    %1704 = vmatprep.subr.mxu0 0.0
    %1705 = vmatpush2.msra.mxu0 0.0
    %1706 = vmatprep.subr.mxu0 0.0
    %1707 = vmatpush2.msra.mxu0 0.0
    %1708 = vmatprep.subr.mxu0 0.0
    %1709 = vmatpush2.msra.mxu0 0.0
    %1710 = vmatprep.subr.mxu0 0.0
    %1711 = vmatpush2.msra.mxu0 0.0
    %1712 = vmatprep.mubr.f32.mxu0 0.0
    %1713 = vmatmul.mubr.f32.gmra.mxu0 %v1646
    %v1714 = vpop.f32.mrf.mxu0
    %v1715 = vadd.f32 0.0, %v1714
    %v1716 = vpop.f32.mrf.mxu0
    %v1717 = vadd.f32 0.0, %v1716
    %1718 = vdwg.mxu0
    %v1719 = vadd.f32 %v1619, %v1715
    %v1721 = vrot.slane %v1717, 2
    %v1723 = vadd.f32 %v1627, %v1721
    %v1724 = vxor.u32 %v1719, 2147483648
    %v1725 = vmul.f32 %v1724, 1.442695
    %v1726 = vpow.pop %v1725
    %v1727 = vadd.f32 %v1726, 1.0
    %v1728 = vrcp.pop %v1727
    %v1729 = vmul.f32 1.0, %v1728
    %v1730 = vtanh.pop %v1719
    %v1731 = vmul.f32 %v1729, 0.0
    %1733 = vrot.lane.b32.xlu0 %v1730, 64
    %v1734 = vpop.permute.xlu0 %1733
    %v1736 = vmul.f32 %v1729, %v1734
    %1738 = vrot.lane.b32.xlu0 %v1736, 32
    %v1739 = vpop.permute.xlu0 %1738
    %v1741 = vadd.f32 %v1731, %v1739
    %v1742 = vtanh.pop %v1741
    %1744 = vrot.lane.b32.xlu0 %v1742, 64
    %v1745 = vpop.permute.xlu0 %1744
    %v1747 = vmul.f32 %v1729, %v1745
    %1749 = vset.pattern.permute.xlu0 0
    %1750 = vperm.xlu0 %1749, %v1506
    %v1751 = vpop.permute.xlu0 %1750
    %v1753 = vmul.f32 %v1747, %v1751
    %v1754 = vadd.f32 %v1753, 0.0
    %vm1755 = vcmp.gt.f32.partialorder %v1506, 0.0
    %v1756 = vsel %vm1755, 1, 0
    %1757 = vset.pattern.permute.xlu0 0
    %1758 = vperm.xlu0 %1757, %v1756
    %v1759 = vpop.permute.xlu0 %1758
    %vm1760 = vcmp.eq.s32.totalorder %v1759, 1
    %v1761 = vsel %vm1760, %v1747, 0.0
    %v1762 = vsel %vm1760, %v1741, 0.0
    %v1763 = vxor.u32 %v1723, 2147483648
    %v1764 = vmul.f32 %v1763, 1.442695
    %v1765 = vpow.pop %v1764
    %v1766 = vadd.f32 %v1765, 1.0
    %v1767 = vrcp.pop %v1766
    %v1768 = vmul.f32 1.0, %v1767
    %v1769 = vtanh.pop %v1723
    %v1770 = vmul.f32 %v1768, 0.0
    %1772 = vrot.lane.b32.xlu0 %v1769, 64
    %v1773 = vpop.permute.xlu0 %1772
    %v1775 = vmul.f32 %v1768, %v1773
    %1777 = vrot.lane.b32.xlu0 %v1775, 32
    %v1778 = vpop.permute.xlu0 %1777
    %v1780 = vadd.f32 %v1770, %v1778
    %v1781 = vtanh.pop %v1780
    %1783 = vrot.lane.b32.xlu0 %v1781, 64
    %v1784 = vpop.permute.xlu0 %1783
    %v1786 = vmul.f32 %v1768, %v1784
    %1788 = vset.pattern.permute.xlu0 0
    %1789 = vperm.xlu0 %1788, %v1507
    %v1790 = vpop.permute.xlu0 %1789
    %v1792 = vmul.f32 %v1786, %v1790
    %v1793 = vadd.f32 %v1792, 0.0
    %vm1794 = vcmp.gt.f32.partialorder %v1507, 0.0
    %v1795 = vsel %vm1794, 1, 0
    %1796 = vset.pattern.permute.xlu0 0
    %1797 = vperm.xlu0 %1796, %v1795
    %v1798 = vpop.permute.xlu0 %1797
    %vm1799 = vcmp.eq.s32.totalorder %v1798, 1
    %v1800 = vsel %vm1799, %v1786, 0.0
    %v1801 = vsel %vm1799, %v1780, 0.0
    %v1802 = vadd.f32 %v1506, 0.0
    %1804 = vrot.lane.b32.xlu0 %v1761, 32
    %v1805 = vpop.permute.xlu0 %1804
    %v1808 = vrot.slane %v1800, 6
    %1809 = vrot.lane.b32.xlu0 %v1808, 64
    %v1810 = vpop.permute.xlu0 %1809
    %vm1812 = vcmask 261120
    %v1813 = vsel %vm1812, %v1805, %v1810
    %v1815 = vsel %vm175, %v1813, 0
    %1817 = vmatprep.subr.mxu0 0.0
    %1818 = vmatpush1.msra.mxu0 0.0
    %1819 = vmatprep.subr.mxu0 0.0
    %1820 = vmatpush1.msra.mxu0 0.0
    %1821 = vmatprep.subr.mxu0 0.0
    %1822 = vmatpush1.msra.mxu0 0.0
    %1823 = vmatprep.subr.mxu0 0.0
    %1824 = vmatpush1.msra.mxu0 0.0
    %1825 = vmatprep.subr.mxu0 0.0
    %1826 = vmatpush1.msra.mxu0 0.0
    %1827 = vmatprep.subr.mxu0 0.0
    %1828 = vmatpush1.msra.mxu0 0.0
    %1829 = vmatprep.subr.mxu0 0.0
    %1830 = vmatpush1.msra.mxu0 0.0
    %1831 = vmatprep.subr.mxu0 0.0
    %1832 = vmatpush1.msra.mxu0 0.0
    %1833 = vmatprep.subr.mxu0 %v1644
    %1834 = vmatpush1.msra.mxu0 %v1643
    %1835 = vmatprep.subr.mxu0 %v1642
    %1836 = vmatpush1.msra.mxu0 %v1641
    %1837 = vmatprep.subr.mxu0 %v1640
    %1838 = vmatpush1.msra.mxu0 %v1639
    %1839 = vmatprep.subr.mxu0 %v1638
    %1840 = vmatpush1.msra.mxu0 %v1637
    %1841 = vmatprep.subr.mxu0 %v1636
    %1842 = vmatpush1.msra.mxu0 %v1635
    %1843 = vmatprep.subr.mxu0 %v1634
    %1844 = vmatpush1.msra.mxu0 %v1633
    %1845 = vmatprep.subr.mxu0 %v1632
    %1846 = vmatpush1.msra.mxu0 %v1631
    %1847 = vmatprep.subr.mxu0 %v1630
    %1848 = vmatpush1.msra.mxu0 %v1629
    %1849 = vmatprep.subr.mxu0 0.0
    %1850 = vmatpush2.msra.mxu0 0.0
    %1851 = vmatprep.subr.mxu0 0.0
    %1852 = vmatpush2.msra.mxu0 0.0
    %1853 = vmatprep.subr.mxu0 0.0
    %1854 = vmatpush2.msra.mxu0 0.0
    %1855 = vmatprep.subr.mxu0 0.0
    %1856 = vmatpush2.msra.mxu0 0.0
    %1857 = vmatprep.subr.mxu0 0.0
    %1858 = vmatpush2.msra.mxu0 0.0
    %1859 = vmatprep.subr.mxu0 0.0
    %1860 = vmatpush2.msra.mxu0 0.0
    %1861 = vmatprep.subr.mxu0 0.0
    %1862 = vmatpush2.msra.mxu0 0.0
    %1863 = vmatprep.subr.mxu0 0.0
    %1864 = vmatpush2.msra.mxu0 0.0
    %1865 = vmatprep.subr.mxu0 0.0
    %1866 = vmatpush2.msra.mxu0 0.0
    %1867 = vmatprep.subr.mxu0 0.0
    %1868 = vmatpush2.msra.mxu0 0.0
    %1869 = vmatprep.subr.mxu0 0.0
    %1870 = vmatpush2.msra.mxu0 0.0
    %1871 = vmatprep.subr.mxu0 0.0
    %1872 = vmatpush2.msra.mxu0 0.0
    %1873 = vmatprep.subr.mxu0 0.0
    %1874 = vmatpush2.msra.mxu0 0.0
    %1875 = vmatprep.subr.mxu0 0.0
    %1876 = vmatpush2.msra.mxu0 0.0
    %1877 = vmatprep.subr.mxu0 0.0
    %1878 = vmatpush2.msra.mxu0 0.0
    %1879 = vmatprep.subr.mxu0 0.0
    %1880 = vmatpush2.msra.mxu0 0.0
    %1881 = vmatprep.mubr.f32.mxu0 0.0
    %1882 = vmatmul.mubr.f32.gmra.mxu0 %v1815
    %v1883 = vpop.f32.mrf.mxu0
    %v1884 = vadd.f32 0.0, %v1883
    %v1885 = vpop.f32.mrf.mxu0
    %v1886 = vadd.f32 0.0, %v1885
    %1887 = vdwg.mxu0
    %v1889 = vrot.slane %v1884, 6
    %v1891 = vadd.f32 %v1619, %v1889
    %v1893 = vrot.slane %v1886, 4
    %v1895 = vadd.f32 %v1627, %v1893
    %v1896 = vxor.u32 %v1891, 2147483648
    %v1897 = vmul.f32 %v1896, 1.442695
    %v1898 = vpow.pop %v1897
    %v1899 = vadd.f32 %v1898, 1.0
    %v1900 = vrcp.pop %v1899
    %v1901 = vmul.f32 1.0, %v1900
    %v1902 = vtanh.pop %v1891
    %v1904 = vrot.slane %v1762, 6
    %v1906 = vmul.f32 %v1901, %v1904
    %1908 = vrot.lane.b32.xlu0 %v1902, 64
    %v1909 = vpop.permute.xlu0 %1908
    %v1911 = vmul.f32 %v1901, %v1909
    %1913 = vrot.lane.b32.xlu0 %v1911, 32
    %v1914 = vpop.permute.xlu0 %1913
    %v1916 = vadd.f32 %v1906, %v1914
    %v1917 = vtanh.pop %v1916
    %1919 = vrot.lane.b32.xlu0 %v1917, 64
    %v1920 = vpop.permute.xlu0 %1919
    %v1922 = vmul.f32 %v1901, %v1920
    %v1923 = vmul.f32 %v1922, %v1751
    %v1925 = vrot.slane %v1923, 2
    %v1927 = vadd.f32 %v1754, %v1925
    %v1928 = vrot.slane %v1761, 6
    %v1930 = vsel %vm1760, %v1922, %v1928
    %v1931 = vsel %vm1760, %v1916, %v1904
    %v1932 = vxor.u32 %v1895, 2147483648
    %v1933 = vmul.f32 %v1932, 1.442695
    %v1934 = vpow.pop %v1933
    %v1935 = vadd.f32 %v1934, 1.0
    %v1936 = vrcp.pop %v1935
    %v1937 = vmul.f32 1.0, %v1936
    %v1938 = vtanh.pop %v1895
    %v1940 = vrot.slane %v1801, 2
    %v1942 = vmul.f32 %v1937, %v1940
    %1944 = vrot.lane.b32.xlu0 %v1938, 64
    %v1945 = vpop.permute.xlu0 %1944
    %v1947 = vmul.f32 %v1937, %v1945
    %1949 = vrot.lane.b32.xlu0 %v1947, 32
    %v1950 = vpop.permute.xlu0 %1949
    %v1952 = vadd.f32 %v1942, %v1950
    %v1953 = vtanh.pop %v1952
    %1955 = vrot.lane.b32.xlu0 %v1953, 64
    %v1956 = vpop.permute.xlu0 %1955
    %v1958 = vmul.f32 %v1937, %v1956
    %v1959 = vmul.f32 %v1958, %v1790
    %v1961 = vrot.slane %v1959, 6
    %v1963 = vadd.f32 %v1793, %v1961
    %v1964 = vrot.slane %v1800, 2
    %v1966 = vsel %vm1799, %v1958, %v1964
    %v1967 = vsel %vm1799, %v1952, %v1940
    %v1968 = vrot.slane %v1506, 2
    %v1970 = vadd.f32 %v1802, %v1968
    %1972 = vrot.lane.b32.xlu0 %v1930, 32
    %v1973 = vpop.permute.xlu0 %1972
    %v1976 = vrot.slane %v1966, 2
    %1977 = vrot.lane.b32.xlu0 %v1976, 64
    %v1978 = vpop.permute.xlu0 %1977
    %v1980 = vsel %vm1812, %v1973, %v1978
    %v1982 = vrot.slane %v1980, 2
    %v1983 = vsel %vm175, %v1982, 0
    %1985 = vmatprep.subr.mxu0 0.0
    %1986 = vmatpush1.msra.mxu0 0.0
    %1987 = vmatprep.subr.mxu0 0.0
    %1988 = vmatpush1.msra.mxu0 0.0
    %1989 = vmatprep.subr.mxu0 0.0
    %1990 = vmatpush1.msra.mxu0 0.0
    %1991 = vmatprep.subr.mxu0 0.0
    %1992 = vmatpush1.msra.mxu0 0.0
    %1993 = vmatprep.subr.mxu0 0.0
    %1994 = vmatpush1.msra.mxu0 0.0
    %1995 = vmatprep.subr.mxu0 0.0
    %1996 = vmatpush1.msra.mxu0 0.0
    %1997 = vmatprep.subr.mxu0 0.0
    %1998 = vmatpush1.msra.mxu0 0.0
    %1999 = vmatprep.subr.mxu0 0.0
    %2000 = vmatpush1.msra.mxu0 0.0
    %2001 = vmatprep.subr.mxu0 %v1644
    %2002 = vmatpush1.msra.mxu0 %v1643
    %2003 = vmatprep.subr.mxu0 %v1642
    %2004 = vmatpush1.msra.mxu0 %v1641
    %2005 = vmatprep.subr.mxu0 %v1640
    %2006 = vmatpush1.msra.mxu0 %v1639
    %2007 = vmatprep.subr.mxu0 %v1638
    %2008 = vmatpush1.msra.mxu0 %v1637
    %2009 = vmatprep.subr.mxu0 %v1636
    %2010 = vmatpush1.msra.mxu0 %v1635
    %2011 = vmatprep.subr.mxu0 %v1634
    %2012 = vmatpush1.msra.mxu0 %v1633
    %2013 = vmatprep.subr.mxu0 %v1632
    %2014 = vmatpush1.msra.mxu0 %v1631
    %2015 = vmatprep.subr.mxu0 %v1630
    %2016 = vmatpush1.msra.mxu0 %v1629
    %2017 = vmatprep.subr.mxu0 0.0
    %2018 = vmatpush2.msra.mxu0 0.0
    %2019 = vmatprep.subr.mxu0 0.0
    %2020 = vmatpush2.msra.mxu0 0.0
    %2021 = vmatprep.subr.mxu0 0.0
    %2022 = vmatpush2.msra.mxu0 0.0
    %2023 = vmatprep.subr.mxu0 0.0
    %2024 = vmatpush2.msra.mxu0 0.0
    %2025 = vmatprep.subr.mxu0 0.0
    %2026 = vmatpush2.msra.mxu0 0.0
    %2027 = vmatprep.subr.mxu0 0.0
    %2028 = vmatpush2.msra.mxu0 0.0
    %2029 = vmatprep.subr.mxu0 0.0
    %2030 = vmatpush2.msra.mxu0 0.0
    %2031 = vmatprep.subr.mxu0 0.0
    %2032 = vmatpush2.msra.mxu0 0.0
    %2033 = vmatprep.subr.mxu0 0.0
    %2034 = vmatpush2.msra.mxu0 0.0
    %2035 = vmatprep.subr.mxu0 0.0
    %2036 = vmatpush2.msra.mxu0 0.0
    %2037 = vmatprep.subr.mxu0 0.0
    %2038 = vmatpush2.msra.mxu0 0.0
    %2039 = vmatprep.subr.mxu0 0.0
    %2040 = vmatpush2.msra.mxu0 0.0
    %2041 = vmatprep.subr.mxu0 0.0
    %2042 = vmatpush2.msra.mxu0 0.0
    %2043 = vmatprep.subr.mxu0 0.0
    %2044 = vmatpush2.msra.mxu0 0.0
    %2045 = vmatprep.subr.mxu0 0.0
    %2046 = vmatpush2.msra.mxu0 0.0
    %2047 = vmatprep.subr.mxu0 0.0
    %2048 = vmatpush2.msra.mxu0 0.0
    %2049 = vmatprep.mubr.f32.mxu0 0.0
    %2050 = vmatmul.mubr.f32.gmra.mxu0 %v1983
    %v2051 = vpop.f32.mrf.mxu0
    %v2052 = vadd.f32 0.0, %v2051
    %v2053 = vpop.f32.mrf.mxu0
    %v2054 = vadd.f32 0.0, %v2053
    %2055 = vdwg.mxu0
    %v2057 = vrot.slane %v2052, 4
    %v2059 = vadd.f32 %v1619, %v2057
    %v2061 = vrot.slane %v2054, 6
    %v2063 = vadd.f32 %v1627, %v2061
    %v2064 = vxor.u32 %v2059, 2147483648
    %v2065 = vmul.f32 %v2064, 1.442695
    %v2066 = vpow.pop %v2065
    %v2067 = vadd.f32 %v2066, 1.0
    %v2068 = vrcp.pop %v2067
    %v2069 = vmul.f32 1.0, %v2068
    %v2070 = vtanh.pop %v2059
    %v2072 = vrot.slane %v1931, 6
    %v2074 = vmul.f32 %v2069, %v2072
    %2076 = vrot.lane.b32.xlu0 %v2070, 64
    %v2077 = vpop.permute.xlu0 %2076
    %v2079 = vmul.f32 %v2069, %v2077
    %2081 = vrot.lane.b32.xlu0 %v2079, 32
    %v2082 = vpop.permute.xlu0 %2081
    %v2084 = vadd.f32 %v2074, %v2082
    %v2085 = vtanh.pop %v2084
    %2087 = vrot.lane.b32.xlu0 %v2085, 64
    %v2088 = vpop.permute.xlu0 %2087
    %v2090 = vmul.f32 %v2069, %v2088
    %v2091 = vmul.f32 %v2090, %v1751
    %v2093 = vrot.slane %v2091, 4
    %v2095 = vadd.f32 %v1927, %v2093
    %v2096 = vrot.slane %v1930, 6
    %v2098 = vsel %vm1760, %v2090, %v2096
    %v2099 = vsel %vm1760, %v2084, %v2072
    %v2100 = vxor.u32 %v2063, 2147483648
    %v2101 = vmul.f32 %v2100, 1.442695
    %v2102 = vpow.pop %v2101
    %v2103 = vadd.f32 %v2102, 1.0
    %v2104 = vrcp.pop %v2103
    %v2105 = vmul.f32 1.0, %v2104
    %v2106 = vtanh.pop %v2063
    %v2108 = vrot.slane %v1967, 2
    %v2110 = vmul.f32 %v2105, %v2108
    %2112 = vrot.lane.b32.xlu0 %v2106, 64
    %v2113 = vpop.permute.xlu0 %2112
    %v2115 = vmul.f32 %v2105, %v2113
    %2117 = vrot.lane.b32.xlu0 %v2115, 32
    %v2118 = vpop.permute.xlu0 %2117
    %v2120 = vadd.f32 %v2110, %v2118
    %v2121 = vtanh.pop %v2120
    %2123 = vrot.lane.b32.xlu0 %v2121, 64
    %v2124 = vpop.permute.xlu0 %2123
    %v2126 = vmul.f32 %v2105, %v2124
    %v2127 = vmul.f32 %v2126, %v1790
    %v2129 = vrot.slane %v2127, 4
    %v2131 = vadd.f32 %v1963, %v2129
    %v2133 = vsel %vm1799, %v2126, %v1976
    %v2134 = vsel %vm1799, %v2120, %v2108
    %v2135 = vrot.slane %v1506, 4
    %v2137 = vadd.f32 %v1970, %v2135
    %2139 = vrot.lane.b32.xlu0 %v2098, 32
    %v2140 = vpop.permute.xlu0 %2139
    %v2143 = vrot.slane %v2133, 6
    %2144 = vrot.lane.b32.xlu0 %v2143, 64
    %v2145 = vpop.permute.xlu0 %2144
    %v2147 = vsel %vm1812, %v2140, %v2145
    %v2149 = vrot.slane %v2147, 4
    %v2150 = vsel %vm175, %v2149, 0
    %2152 = vmatprep.subr.mxu0 0.0
    %2153 = vmatpush1.msra.mxu0 0.0
    %2154 = vmatprep.subr.mxu0 0.0
    %2155 = vmatpush1.msra.mxu0 0.0
    %2156 = vmatprep.subr.mxu0 0.0
    %2157 = vmatpush1.msra.mxu0 0.0
    %2158 = vmatprep.subr.mxu0 0.0
    %2159 = vmatpush1.msra.mxu0 0.0
    %2160 = vmatprep.subr.mxu0 0.0
    %2161 = vmatpush1.msra.mxu0 0.0
    %2162 = vmatprep.subr.mxu0 0.0
    %2163 = vmatpush1.msra.mxu0 0.0
    %2164 = vmatprep.subr.mxu0 0.0
    %2165 = vmatpush1.msra.mxu0 0.0
    %2166 = vmatprep.subr.mxu0 0.0
    %2167 = vmatpush1.msra.mxu0 0.0
    %2168 = vmatprep.subr.mxu0 %v1644
    %2169 = vmatpush1.msra.mxu0 %v1643
    %2170 = vmatprep.subr.mxu0 %v1642
    %2171 = vmatpush1.msra.mxu0 %v1641
    %2172 = vmatprep.subr.mxu0 %v1640
    %2173 = vmatpush1.msra.mxu0 %v1639
    %2174 = vmatprep.subr.mxu0 %v1638
    %2175 = vmatpush1.msra.mxu0 %v1637
    %2176 = vmatprep.subr.mxu0 %v1636
    %2177 = vmatpush1.msra.mxu0 %v1635
    %2178 = vmatprep.subr.mxu0 %v1634
    %2179 = vmatpush1.msra.mxu0 %v1633
    %2180 = vmatprep.subr.mxu0 %v1632
    %2181 = vmatpush1.msra.mxu0 %v1631
    %2182 = vmatprep.subr.mxu0 %v1630
    %2183 = vmatpush1.msra.mxu0 %v1629
    %2184 = vmatprep.subr.mxu0 0.0
    %2185 = vmatpush2.msra.mxu0 0.0
    %2186 = vmatprep.subr.mxu0 0.0
    %2187 = vmatpush2.msra.mxu0 0.0
    %2188 = vmatprep.subr.mxu0 0.0
    %2189 = vmatpush2.msra.mxu0 0.0
    %2190 = vmatprep.subr.mxu0 0.0
    %2191 = vmatpush2.msra.mxu0 0.0
    %2192 = vmatprep.subr.mxu0 0.0
    %2193 = vmatpush2.msra.mxu0 0.0
    %2194 = vmatprep.subr.mxu0 0.0
    %2195 = vmatpush2.msra.mxu0 0.0
    %2196 = vmatprep.subr.mxu0 0.0
    %2197 = vmatpush2.msra.mxu0 0.0
    %2198 = vmatprep.subr.mxu0 0.0
    %2199 = vmatpush2.msra.mxu0 0.0
    %2200 = vmatprep.subr.mxu0 0.0
    %2201 = vmatpush2.msra.mxu0 0.0
    %2202 = vmatprep.subr.mxu0 0.0
    %2203 = vmatpush2.msra.mxu0 0.0
    %2204 = vmatprep.subr.mxu0 0.0
    %2205 = vmatpush2.msra.mxu0 0.0
    %2206 = vmatprep.subr.mxu0 0.0
    %2207 = vmatpush2.msra.mxu0 0.0
    %2208 = vmatprep.subr.mxu0 0.0
    %2209 = vmatpush2.msra.mxu0 0.0
    %2210 = vmatprep.subr.mxu0 0.0
    %2211 = vmatpush2.msra.mxu0 0.0
    %2212 = vmatprep.subr.mxu0 0.0
    %2213 = vmatpush2.msra.mxu0 0.0
    %2214 = vmatprep.subr.mxu0 0.0
    %2215 = vmatpush2.msra.mxu0 0.0
    %2216 = vmatprep.mubr.f32.mxu0 0.0
    %2217 = vmatmul.mubr.f32.gmra.mxu0 %v2150
    %v2218 = vpop.f32.mrf.mxu0
    %v2219 = vadd.f32 0.0, %v2218
    %v2220 = vpop.f32.mrf.mxu0
    %v2221 = vadd.f32 0.0, %v2220
    %2222 = vdwg.mxu0
    %v2224 = vrot.slane %v2219, 2
    %v2226 = vadd.f32 %v1619, %v2224
    %v2227 = vadd.f32 %v1627, %v2221
    %v2228 = vxor.u32 %v2226, 2147483648
    %v2229 = vmul.f32 %v2228, 1.442695
    %v2230 = vpow.pop %v2229
    %v2231 = vadd.f32 %v2230, 1.0
    %v2232 = vrcp.pop %v2231
    %v2233 = vmul.f32 1.0, %v2232
    %v2234 = vtanh.pop %v2226
    %v2236 = vrot.slane %v2099, 6
    %v2238 = vmul.f32 %v2233, %v2236
    %2240 = vrot.lane.b32.xlu0 %v2234, 64
    %v2241 = vpop.permute.xlu0 %2240
    %v2243 = vmul.f32 %v2233, %v2241
    %2245 = vrot.lane.b32.xlu0 %v2243, 32
    %v2246 = vpop.permute.xlu0 %2245
    %v2248 = vadd.f32 %v2238, %v2246
    %v2249 = vtanh.pop %v2248
    %2251 = vrot.lane.b32.xlu0 %v2249, 64
    %v2252 = vpop.permute.xlu0 %2251
    %v2254 = vmul.f32 %v2233, %v2252
    %v2255 = vmul.f32 %v2254, %v1751
    %v2257 = vrot.slane %v2255, 6
    %v2259 = vadd.f32 %v2095, %v2257
    %v2260 = vrot.slane %v2098, 6
    %v2262 = vsel %vm1760, %v2254, %v2260
    %v2263 = vsel %vm1760, %v2248, %v2236
    %v2264 = vxor.u32 %v2227, 2147483648
    %v2265 = vmul.f32 %v2264, 1.442695
    %v2266 = vpow.pop %v2265
    %v2267 = vadd.f32 %v2266, 1.0
    %v2268 = vrcp.pop %v2267
    %v2269 = vmul.f32 1.0, %v2268
    %v2270 = vtanh.pop %v2227
    %v2272 = vrot.slane %v2134, 2
    %v2274 = vmul.f32 %v2269, %v2272
    %2276 = vrot.lane.b32.xlu0 %v2270, 64
    %v2277 = vpop.permute.xlu0 %2276
    %v2279 = vmul.f32 %v2269, %v2277
    %2281 = vrot.lane.b32.xlu0 %v2279, 32
    %v2282 = vpop.permute.xlu0 %2281
    %v2284 = vadd.f32 %v2274, %v2282
    %v2285 = vtanh.pop %v2284
    %2287 = vrot.lane.b32.xlu0 %v2285, 64
    %v2288 = vpop.permute.xlu0 %2287
    %v2290 = vmul.f32 %v2269, %v2288
    %v2291 = vmul.f32 %v2290, %v1790
    %v2293 = vrot.slane %v2291, 2
    %v2295 = vadd.f32 %v2131, %v2293
    %v2296 = vrot.slane %v2133, 2
    %v2298 = vsel %vm1799, %v2290, %v2296
    %v2299 = vsel %vm1799, %v2284, %v2272
    %v2300 = vrot.slane %v1506, 6
    %v2302 = vadd.f32 %v2137, %v2300
    %2304 = vrot.lane.b32.xlu0 %v2262, 32
    %v2305 = vpop.permute.xlu0 %2304
    %v2308 = vrot.slane %v2298, 2
    %2309 = vrot.lane.b32.xlu0 %v2308, 64
    %v2310 = vpop.permute.xlu0 %2309
    %v2312 = vsel %vm1812, %v2305, %v2310
    %v2314 = vrot.slane %v2312, 6
    %v2315 = vsel %vm175, %v2314, 0
    %2317 = vmatprep.subr.mxu0 0.0
    %2318 = vmatpush1.msra.mxu0 0.0
    %2319 = vmatprep.subr.mxu0 0.0
    %2320 = vmatpush1.msra.mxu0 0.0
    %2321 = vmatprep.subr.mxu0 0.0
    %2322 = vmatpush1.msra.mxu0 0.0
    %2323 = vmatprep.subr.mxu0 0.0
    %2324 = vmatpush1.msra.mxu0 0.0
    %2325 = vmatprep.subr.mxu0 0.0
    %2326 = vmatpush1.msra.mxu0 0.0
    %2327 = vmatprep.subr.mxu0 0.0
    %2328 = vmatpush1.msra.mxu0 0.0
    %2329 = vmatprep.subr.mxu0 0.0
    %2330 = vmatpush1.msra.mxu0 0.0
    %2331 = vmatprep.subr.mxu0 0.0
    %2332 = vmatpush1.msra.mxu0 0.0
    %2333 = vmatprep.subr.mxu0 %v1644
    %2334 = vmatpush1.msra.mxu0 %v1643
    %2335 = vmatprep.subr.mxu0 %v1642
    %2336 = vmatpush1.msra.mxu0 %v1641
    %2337 = vmatprep.subr.mxu0 %v1640
    %2338 = vmatpush1.msra.mxu0 %v1639
    %2339 = vmatprep.subr.mxu0 %v1638
    %2340 = vmatpush1.msra.mxu0 %v1637
    %2341 = vmatprep.subr.mxu0 %v1636
    %2342 = vmatpush1.msra.mxu0 %v1635
    %2343 = vmatprep.subr.mxu0 %v1634
    %2344 = vmatpush1.msra.mxu0 %v1633
    %2345 = vmatprep.subr.mxu0 %v1632
    %2346 = vmatpush1.msra.mxu0 %v1631
    %2347 = vmatprep.subr.mxu0 %v1630
    %2348 = vmatpush1.msra.mxu0 %v1629
    %2349 = vmatprep.subr.mxu0 0.0
    %2350 = vmatpush2.msra.mxu0 0.0
    %2351 = vmatprep.subr.mxu0 0.0
    %2352 = vmatpush2.msra.mxu0 0.0
    %2353 = vmatprep.subr.mxu0 0.0
    %2354 = vmatpush2.msra.mxu0 0.0
    %2355 = vmatprep.subr.mxu0 0.0
    %2356 = vmatpush2.msra.mxu0 0.0
    %2357 = vmatprep.subr.mxu0 0.0
    %2358 = vmatpush2.msra.mxu0 0.0
    %2359 = vmatprep.subr.mxu0 0.0
    %2360 = vmatpush2.msra.mxu0 0.0
    %2361 = vmatprep.subr.mxu0 0.0
    %2362 = vmatpush2.msra.mxu0 0.0
    %2363 = vmatprep.subr.mxu0 0.0
    %2364 = vmatpush2.msra.mxu0 0.0
    %2365 = vmatprep.subr.mxu0 0.0
    %2366 = vmatpush2.msra.mxu0 0.0
    %2367 = vmatprep.subr.mxu0 0.0
    %2368 = vmatpush2.msra.mxu0 0.0
    %2369 = vmatprep.subr.mxu0 0.0
    %2370 = vmatpush2.msra.mxu0 0.0
    %2371 = vmatprep.subr.mxu0 0.0
    %2372 = vmatpush2.msra.mxu0 0.0
    %2373 = vmatprep.subr.mxu0 0.0
    %2374 = vmatpush2.msra.mxu0 0.0
    %2375 = vmatprep.subr.mxu0 0.0
    %2376 = vmatpush2.msra.mxu0 0.0
    %2377 = vmatprep.subr.mxu0 0.0
    %2378 = vmatpush2.msra.mxu0 0.0
    %2379 = vmatprep.subr.mxu0 0.0
    %2380 = vmatpush2.msra.mxu0 0.0
    %2381 = vmatprep.mubr.f32.mxu0 0.0
    %2382 = vmatmul.mubr.f32.gmra.mxu0 %v2315
    %v2383 = vpop.f32.mrf.mxu0
    %v2384 = vadd.f32 0.0, %v2383
    %v2385 = vpop.f32.mrf.mxu0
    %v2386 = vadd.f32 0.0, %v2385
    %2387 = vdwg.mxu0
    %v2388 = vadd.f32 %v1625, %v2384
    %v2390 = vrot.slane %v2386, 2
    %v2392 = vadd.f32 %v1621, %v2390
    %v2393 = vxor.u32 %v2388, 2147483648
    %v2394 = vmul.f32 %v2393, 1.442695
    %v2395 = vpow.pop %v2394
    %v2396 = vadd.f32 %v2395, 1.0
    %v2397 = vrcp.pop %v2396
    %v2398 = vmul.f32 1.0, %v2397
    %v2399 = vtanh.pop %v2388
    %v2401 = vrot.slane %v2263, 6
    %v2403 = vmul.f32 %v2398, %v2401
    %2405 = vrot.lane.b32.xlu0 %v2399, 64
    %v2406 = vpop.permute.xlu0 %2405
    %v2408 = vmul.f32 %v2398, %v2406
    %2410 = vrot.lane.b32.xlu0 %v2408, 32
    %v2411 = vpop.permute.xlu0 %2410
    %v2413 = vadd.f32 %v2403, %v2411
    %v2414 = vtanh.pop %v2413
    %2416 = vrot.lane.b32.xlu0 %v2414, 64
    %v2417 = vpop.permute.xlu0 %2416
    %v2419 = vmul.f32 %v2398, %v2417
    %v2420 = vmul.f32 %v2419, %v1790
    %v2421 = vadd.f32 %v2259, %v2420
    %v2422 = vrot.slane %v2262, 6
    %v2424 = vsel %vm1799, %v2419, %v2422
    %v2425 = vsel %vm1799, %v2413, %v2401
    %v2426 = vxor.u32 %v2392, 2147483648
    %v2427 = vmul.f32 %v2426, 1.442695
    %v2428 = vpow.pop %v2427
    %v2429 = vadd.f32 %v2428, 1.0
    %v2430 = vrcp.pop %v2429
    %v2431 = vmul.f32 1.0, %v2430
    %v2432 = vtanh.pop %v2392
    %v2434 = vrot.slane %v2299, 2
    %v2436 = vmul.f32 %v2431, %v2434
    %2438 = vrot.lane.b32.xlu0 %v2432, 64
    %v2439 = vpop.permute.xlu0 %2438
    %v2441 = vmul.f32 %v2431, %v2439
    %2443 = vrot.lane.b32.xlu0 %v2441, 32
    %v2444 = vpop.permute.xlu0 %2443
    %v2446 = vadd.f32 %v2436, %v2444
    %v2447 = vtanh.pop %v2446
    %2449 = vrot.lane.b32.xlu0 %v2447, 64
    %v2450 = vpop.permute.xlu0 %2449
    %v2452 = vmul.f32 %v2431, %v2450
    %v2453 = vmul.f32 %v2452, %v1751
    %v2454 = vadd.f32 %v2295, %v2453
    %v2456 = vsel %vm1760, %v2452, %v2308
    %v2457 = vsel %vm1760, %v2446, %v2434
    %v2458 = vadd.f32 %v2302, %v1507
    %2460 = vrot.lane.b32.xlu0 %v2424, 32
    %v2461 = vpop.permute.xlu0 %2460
    %v2464 = vrot.slane %v2456, 6
    %2465 = vrot.lane.b32.xlu0 %v2464, 64
    %v2466 = vpop.permute.xlu0 %2465
    %v2468 = vsel %vm1812, %v2461, %v2466
    %v2470 = vsel %vm175, %v2468, 0
    %2472 = vmatprep.subr.mxu0 0.0
    %2473 = vmatpush1.msra.mxu0 0.0
    %2474 = vmatprep.subr.mxu0 0.0
    %2475 = vmatpush1.msra.mxu0 0.0
    %2476 = vmatprep.subr.mxu0 0.0
    %2477 = vmatpush1.msra.mxu0 0.0
    %2478 = vmatprep.subr.mxu0 0.0
    %2479 = vmatpush1.msra.mxu0 0.0
    %2480 = vmatprep.subr.mxu0 0.0
    %2481 = vmatpush1.msra.mxu0 0.0
    %2482 = vmatprep.subr.mxu0 0.0
    %2483 = vmatpush1.msra.mxu0 0.0
    %2484 = vmatprep.subr.mxu0 0.0
    %2485 = vmatpush1.msra.mxu0 0.0
    %2486 = vmatprep.subr.mxu0 0.0
    %2487 = vmatpush1.msra.mxu0 0.0
    %2488 = vmatprep.subr.mxu0 %v1644
    %2489 = vmatpush1.msra.mxu0 %v1643
    %2490 = vmatprep.subr.mxu0 %v1642
    %2491 = vmatpush1.msra.mxu0 %v1641
    %2492 = vmatprep.subr.mxu0 %v1640
    %2493 = vmatpush1.msra.mxu0 %v1639
    %2494 = vmatprep.subr.mxu0 %v1638
    %2495 = vmatpush1.msra.mxu0 %v1637
    %2496 = vmatprep.subr.mxu0 %v1636
    %2497 = vmatpush1.msra.mxu0 %v1635
    %2498 = vmatprep.subr.mxu0 %v1634
    %2499 = vmatpush1.msra.mxu0 %v1633
    %2500 = vmatprep.subr.mxu0 %v1632
    %2501 = vmatpush1.msra.mxu0 %v1631
    %2502 = vmatprep.subr.mxu0 %v1630
    %2503 = vmatpush1.msra.mxu0 %v1629
    %2504 = vmatprep.subr.mxu0 0.0
    %2505 = vmatpush2.msra.mxu0 0.0
    %2506 = vmatprep.subr.mxu0 0.0
    %2507 = vmatpush2.msra.mxu0 0.0
    %2508 = vmatprep.subr.mxu0 0.0
    %2509 = vmatpush2.msra.mxu0 0.0
    %2510 = vmatprep.subr.mxu0 0.0
    %2511 = vmatpush2.msra.mxu0 0.0
    %2512 = vmatprep.subr.mxu0 0.0
    %2513 = vmatpush2.msra.mxu0 0.0
    %2514 = vmatprep.subr.mxu0 0.0
    %2515 = vmatpush2.msra.mxu0 0.0
    %2516 = vmatprep.subr.mxu0 0.0
    %2517 = vmatpush2.msra.mxu0 0.0
    %2518 = vmatprep.subr.mxu0 0.0
    %2519 = vmatpush2.msra.mxu0 0.0
    %2520 = vmatprep.subr.mxu0 0.0
    %2521 = vmatpush2.msra.mxu0 0.0
    %2522 = vmatprep.subr.mxu0 0.0
    %2523 = vmatpush2.msra.mxu0 0.0
    %2524 = vmatprep.subr.mxu0 0.0
    %2525 = vmatpush2.msra.mxu0 0.0
    %2526 = vmatprep.subr.mxu0 0.0
    %2527 = vmatpush2.msra.mxu0 0.0
    %2528 = vmatprep.subr.mxu0 0.0
    %2529 = vmatpush2.msra.mxu0 0.0
    %2530 = vmatprep.subr.mxu0 0.0
    %2531 = vmatpush2.msra.mxu0 0.0
    %2532 = vmatprep.subr.mxu0 0.0
    %2533 = vmatpush2.msra.mxu0 0.0
    %2534 = vmatprep.subr.mxu0 0.0
    %2535 = vmatpush2.msra.mxu0 0.0
    %2536 = vmatprep.mubr.f32.mxu0 0.0
    %2537 = vmatmul.mubr.f32.gmra.mxu0 %v2470
    %v2538 = vpop.f32.mrf.mxu0
    %v2539 = vadd.f32 0.0, %v2538
    %v2540 = vpop.f32.mrf.mxu0
    %v2541 = vadd.f32 0.0, %v2540
    %2542 = vdwg.mxu0
    %v2544 = vrot.slane %v2539, 6
    %v2546 = vadd.f32 %v1625, %v2544
    %v2548 = vrot.slane %v2541, 4
    %v2550 = vadd.f32 %v1621, %v2548
    %v2551 = vxor.u32 %v2546, 2147483648
    %v2552 = vmul.f32 %v2551, 1.442695
    %v2553 = vpow.pop %v2552
    %v2554 = vadd.f32 %v2553, 1.0
    %v2555 = vrcp.pop %v2554
    %v2556 = vmul.f32 1.0, %v2555
    %v2557 = vtanh.pop %v2546
    %v2559 = vrot.slane %v2425, 6
    %v2561 = vmul.f32 %v2556, %v2559
    %2563 = vrot.lane.b32.xlu0 %v2557, 64
    %v2564 = vpop.permute.xlu0 %2563
    %v2566 = vmul.f32 %v2556, %v2564
    %2568 = vrot.lane.b32.xlu0 %v2566, 32
    %v2569 = vpop.permute.xlu0 %2568
    %v2571 = vadd.f32 %v2561, %v2569
    %v2572 = vtanh.pop %v2571
    %2574 = vrot.lane.b32.xlu0 %v2572, 64
    %v2575 = vpop.permute.xlu0 %2574
    %v2577 = vmul.f32 %v2556, %v2575
    %v2578 = vmul.f32 %v2577, %v1790
    %v2580 = vrot.slane %v2578, 2
    %v2582 = vadd.f32 %v2421, %v2580
    %v2583 = vrot.slane %v2424, 6
    %v2585 = vsel %vm1799, %v2577, %v2583
    %v2586 = vsel %vm1799, %v2571, %v2559
    %v2587 = vxor.u32 %v2550, 2147483648
    %v2588 = vmul.f32 %v2587, 1.442695
    %v2589 = vpow.pop %v2588
    %v2590 = vadd.f32 %v2589, 1.0
    %v2591 = vrcp.pop %v2590
    %v2592 = vmul.f32 1.0, %v2591
    %v2593 = vtanh.pop %v2550
    %v2595 = vrot.slane %v2457, 2
    %v2597 = vmul.f32 %v2592, %v2595
    %2599 = vrot.lane.b32.xlu0 %v2593, 64
    %v2600 = vpop.permute.xlu0 %2599
    %v2602 = vmul.f32 %v2592, %v2600
    %2604 = vrot.lane.b32.xlu0 %v2602, 32
    %v2605 = vpop.permute.xlu0 %2604
    %v2607 = vadd.f32 %v2597, %v2605
    %v2608 = vtanh.pop %v2607
    %2610 = vrot.lane.b32.xlu0 %v2608, 64
    %v2611 = vpop.permute.xlu0 %2610
    %v2613 = vmul.f32 %v2592, %v2611
    %v2614 = vmul.f32 %v2613, %v1751
    %v2616 = vrot.slane %v2614, 6
    %v2618 = vadd.f32 %v2454, %v2616
    %v2619 = vrot.slane %v2456, 2
    %v2621 = vsel %vm1760, %v2613, %v2619
    %v2622 = vsel %vm1760, %v2607, %v2595
    %v2623 = vrot.slane %v1507, 2
    %v2625 = vadd.f32 %v2458, %v2623
    %2627 = vrot.lane.b32.xlu0 %v2585, 32
    %v2628 = vpop.permute.xlu0 %2627
    %v2631 = vrot.slane %v2621, 2
    %2632 = vrot.lane.b32.xlu0 %v2631, 64
    %v2633 = vpop.permute.xlu0 %2632
    %v2635 = vsel %vm1812, %v2628, %v2633
    %v2637 = vrot.slane %v2635, 2
    %v2638 = vsel %vm175, %v2637, 0
    %2640 = vmatprep.subr.mxu0 0.0
    %2641 = vmatpush1.msra.mxu0 0.0
    %2642 = vmatprep.subr.mxu0 0.0
    %2643 = vmatpush1.msra.mxu0 0.0
    %2644 = vmatprep.subr.mxu0 0.0
    %2645 = vmatpush1.msra.mxu0 0.0
    %2646 = vmatprep.subr.mxu0 0.0
    %2647 = vmatpush1.msra.mxu0 0.0
    %2648 = vmatprep.subr.mxu0 0.0
    %2649 = vmatpush1.msra.mxu0 0.0
    %2650 = vmatprep.subr.mxu0 0.0
    %2651 = vmatpush1.msra.mxu0 0.0
    %2652 = vmatprep.subr.mxu0 0.0
    %2653 = vmatpush1.msra.mxu0 0.0
    %2654 = vmatprep.subr.mxu0 0.0
    %2655 = vmatpush1.msra.mxu0 0.0
    %2656 = vmatprep.subr.mxu0 %v1644
    %2657 = vmatpush1.msra.mxu0 %v1643
    %2658 = vmatprep.subr.mxu0 %v1642
    %2659 = vmatpush1.msra.mxu0 %v1641
    %2660 = vmatprep.subr.mxu0 %v1640
    %2661 = vmatpush1.msra.mxu0 %v1639
    %2662 = vmatprep.subr.mxu0 %v1638
    %2663 = vmatpush1.msra.mxu0 %v1637
    %2664 = vmatprep.subr.mxu0 %v1636
    %2665 = vmatpush1.msra.mxu0 %v1635
    %2666 = vmatprep.subr.mxu0 %v1634
    %2667 = vmatpush1.msra.mxu0 %v1633
    %2668 = vmatprep.subr.mxu0 %v1632
    %2669 = vmatpush1.msra.mxu0 %v1631
    %2670 = vmatprep.subr.mxu0 %v1630
    %2671 = vmatpush1.msra.mxu0 %v1629
    %2672 = vmatprep.subr.mxu0 0.0
    %2673 = vmatpush2.msra.mxu0 0.0
    %2674 = vmatprep.subr.mxu0 0.0
    %2675 = vmatpush2.msra.mxu0 0.0
    %2676 = vmatprep.subr.mxu0 0.0
    %2677 = vmatpush2.msra.mxu0 0.0
    %2678 = vmatprep.subr.mxu0 0.0
    %2679 = vmatpush2.msra.mxu0 0.0
    %2680 = vmatprep.subr.mxu0 0.0
    %2681 = vmatpush2.msra.mxu0 0.0
    %2682 = vmatprep.subr.mxu0 0.0
    %2683 = vmatpush2.msra.mxu0 0.0
    %2684 = vmatprep.subr.mxu0 0.0
    %2685 = vmatpush2.msra.mxu0 0.0
    %2686 = vmatprep.subr.mxu0 0.0
    %2687 = vmatpush2.msra.mxu0 0.0
    %2688 = vmatprep.subr.mxu0 0.0
    %2689 = vmatpush2.msra.mxu0 0.0
    %2690 = vmatprep.subr.mxu0 0.0
    %2691 = vmatpush2.msra.mxu0 0.0
    %2692 = vmatprep.subr.mxu0 0.0
    %2693 = vmatpush2.msra.mxu0 0.0
    %2694 = vmatprep.subr.mxu0 0.0
    %2695 = vmatpush2.msra.mxu0 0.0
    %2696 = vmatprep.subr.mxu0 0.0
    %2697 = vmatpush2.msra.mxu0 0.0
    %2698 = vmatprep.subr.mxu0 0.0
    %2699 = vmatpush2.msra.mxu0 0.0
    %2700 = vmatprep.subr.mxu0 0.0
    %2701 = vmatpush2.msra.mxu0 0.0
    %2702 = vmatprep.subr.mxu0 0.0
    %2703 = vmatpush2.msra.mxu0 0.0
    %2704 = vmatprep.mubr.f32.mxu0 0.0
    %2705 = vmatmul.mubr.f32.gmra.mxu0 %v2638
    %v2706 = vpop.f32.mrf.mxu0
    %v2707 = vadd.f32 0.0, %v2706
    %v2708 = vpop.f32.mrf.mxu0
    %v2709 = vadd.f32 0.0, %v2708
    %2710 = vdwg.mxu0
    %v2712 = vrot.slane %v2707, 4
    %v2714 = vadd.f32 %v1625, %v2712
    %v2716 = vrot.slane %v2709, 6
    %v2718 = vadd.f32 %v1621, %v2716
    %v2719 = vxor.u32 %v2714, 2147483648
    %v2720 = vmul.f32 %v2719, 1.442695
    %v2721 = vpow.pop %v2720
    %v2722 = vadd.f32 %v2721, 1.0
    %v2723 = vrcp.pop %v2722
    %v2724 = vmul.f32 1.0, %v2723
    %v2725 = vtanh.pop %v2714
    %v2727 = vrot.slane %v2586, 6
    %v2729 = vmul.f32 %v2724, %v2727
    %2731 = vrot.lane.b32.xlu0 %v2725, 64
    %v2732 = vpop.permute.xlu0 %2731
    %v2734 = vmul.f32 %v2724, %v2732
    %2736 = vrot.lane.b32.xlu0 %v2734, 32
    %v2737 = vpop.permute.xlu0 %2736
    %v2739 = vadd.f32 %v2729, %v2737
    %v2740 = vtanh.pop %v2739
    %2742 = vrot.lane.b32.xlu0 %v2740, 64
    %v2743 = vpop.permute.xlu0 %2742
    %v2745 = vmul.f32 %v2724, %v2743
    %v2746 = vmul.f32 %v2745, %v1790
    %v2748 = vrot.slane %v2746, 4
    %v2750 = vadd.f32 %v2582, %v2748
    %v2751 = vrot.slane %v2585, 6
    %v2753 = vsel %vm1799, %v2745, %v2751
    %v2754 = vsel %vm1799, %v2739, %v2727
    %v2755 = vxor.u32 %v2718, 2147483648
    %v2756 = vmul.f32 %v2755, 1.442695
    %v2757 = vpow.pop %v2756
    %v2758 = vadd.f32 %v2757, 1.0
    %v2759 = vrcp.pop %v2758
    %v2760 = vmul.f32 1.0, %v2759
    %v2761 = vtanh.pop %v2718
    %v2763 = vrot.slane %v2622, 2
    %v2765 = vmul.f32 %v2760, %v2763
    %2767 = vrot.lane.b32.xlu0 %v2761, 64
    %v2768 = vpop.permute.xlu0 %2767
    %v2770 = vmul.f32 %v2760, %v2768
    %2772 = vrot.lane.b32.xlu0 %v2770, 32
    %v2773 = vpop.permute.xlu0 %2772
    %v2775 = vadd.f32 %v2765, %v2773
    %v2776 = vtanh.pop %v2775
    %2778 = vrot.lane.b32.xlu0 %v2776, 64
    %v2779 = vpop.permute.xlu0 %2778
    %v2781 = vmul.f32 %v2760, %v2779
    %v2782 = vmul.f32 %v2781, %v1751
    %v2784 = vrot.slane %v2782, 4
    %v2786 = vadd.f32 %v2618, %v2784
    %v2788 = vsel %vm1760, %v2781, %v2631
    %v2789 = vsel %vm1760, %v2775, %v2763
    %v2790 = vrot.slane %v1507, 4
    %v2792 = vadd.f32 %v2625, %v2790
    %2794 = vrot.lane.b32.xlu0 %v2753, 32
    %v2795 = vpop.permute.xlu0 %2794
    %v2798 = vrot.slane %v2788, 6
    %2799 = vrot.lane.b32.xlu0 %v2798, 64
    %v2800 = vpop.permute.xlu0 %2799
    %v2802 = vsel %vm1812, %v2795, %v2800
    %v2804 = vrot.slane %v2802, 4
    %v2805 = vsel %vm175, %v2804, 0
    %2807 = vmatprep.subr.mxu0 0.0
    %2808 = vmatpush1.msra.mxu0 0.0
    %2809 = vmatprep.subr.mxu0 0.0
    %2810 = vmatpush1.msra.mxu0 0.0
    %2811 = vmatprep.subr.mxu0 0.0
    %2812 = vmatpush1.msra.mxu0 0.0
    %2813 = vmatprep.subr.mxu0 0.0
    %2814 = vmatpush1.msra.mxu0 0.0
    %2815 = vmatprep.subr.mxu0 0.0
    %2816 = vmatpush1.msra.mxu0 0.0
    %2817 = vmatprep.subr.mxu0 0.0
    %2818 = vmatpush1.msra.mxu0 0.0
    %2819 = vmatprep.subr.mxu0 0.0
    %2820 = vmatpush1.msra.mxu0 0.0
    %2821 = vmatprep.subr.mxu0 0.0
    %2822 = vmatpush1.msra.mxu0 0.0
    %2823 = vmatprep.subr.mxu0 %v1644
    %2824 = vmatpush1.msra.mxu0 %v1643
    %2825 = vmatprep.subr.mxu0 %v1642
    %2826 = vmatpush1.msra.mxu0 %v1641
    %2827 = vmatprep.subr.mxu0 %v1640
    %2828 = vmatpush1.msra.mxu0 %v1639
    %2829 = vmatprep.subr.mxu0 %v1638
    %2830 = vmatpush1.msra.mxu0 %v1637
    %2831 = vmatprep.subr.mxu0 %v1636
    %2832 = vmatpush1.msra.mxu0 %v1635
    %2833 = vmatprep.subr.mxu0 %v1634
    %2834 = vmatpush1.msra.mxu0 %v1633
    %2835 = vmatprep.subr.mxu0 %v1632
    %2836 = vmatpush1.msra.mxu0 %v1631
    %2837 = vmatprep.subr.mxu0 %v1630
    %2838 = vmatpush1.msra.mxu0 %v1629
    %2839 = vmatprep.subr.mxu0 0.0
    %2840 = vmatpush2.msra.mxu0 0.0
    %2841 = vmatprep.subr.mxu0 0.0
    %2842 = vmatpush2.msra.mxu0 0.0
    %2843 = vmatprep.subr.mxu0 0.0
    %2844 = vmatpush2.msra.mxu0 0.0
    %2845 = vmatprep.subr.mxu0 0.0
    %2846 = vmatpush2.msra.mxu0 0.0
    %2847 = vmatprep.subr.mxu0 0.0
    %2848 = vmatpush2.msra.mxu0 0.0
    %2849 = vmatprep.subr.mxu0 0.0
    %2850 = vmatpush2.msra.mxu0 0.0
    %2851 = vmatprep.subr.mxu0 0.0
    %2852 = vmatpush2.msra.mxu0 0.0
    %2853 = vmatprep.subr.mxu0 0.0
    %2854 = vmatpush2.msra.mxu0 0.0
    %2855 = vmatprep.subr.mxu0 0.0
    %2856 = vmatpush2.msra.mxu0 0.0
    %2857 = vmatprep.subr.mxu0 0.0
    %2858 = vmatpush2.msra.mxu0 0.0
    %2859 = vmatprep.subr.mxu0 0.0
    %2860 = vmatpush2.msra.mxu0 0.0
    %2861 = vmatprep.subr.mxu0 0.0
    %2862 = vmatpush2.msra.mxu0 0.0
    %2863 = vmatprep.subr.mxu0 0.0
    %2864 = vmatpush2.msra.mxu0 0.0
    %2865 = vmatprep.subr.mxu0 0.0
    %2866 = vmatpush2.msra.mxu0 0.0
    %2867 = vmatprep.subr.mxu0 0.0
    %2868 = vmatpush2.msra.mxu0 0.0
    %2869 = vmatprep.subr.mxu0 0.0
    %2870 = vmatpush2.msra.mxu0 0.0
    %2871 = vmatprep.mubr.f32.mxu0 0.0
    %2872 = vmatmul.mubr.f32.gmra.mxu0 %v2805
    %v2873 = vpop.f32.mrf.mxu0
    %v2874 = vadd.f32 0.0, %v2873
    %v2875 = vpop.f32.mrf.mxu0
    %v2876 = vadd.f32 0.0, %v2875
    %2877 = vdwg.mxu0
    %v2879 = vrot.slane %v2874, 2
    %v2881 = vadd.f32 %v1625, %v2879
    %v2882 = vadd.f32 %v1621, %v2876
    %v2883 = vxor.u32 %v2881, 2147483648
    %v2884 = vmul.f32 %v2883, 1.442695
    %v2885 = vpow.pop %v2884
    %v2886 = vadd.f32 %v2885, 1.0
    %v2887 = vrcp.pop %v2886
    %v2888 = vmul.f32 1.0, %v2887
    %v2889 = vtanh.pop %v2881
    %v2891 = vrot.slane %v2754, 6
    %v2893 = vmul.f32 %v2888, %v2891
    %2895 = vrot.lane.b32.xlu0 %v2889, 64
    %v2896 = vpop.permute.xlu0 %2895
    %v2898 = vmul.f32 %v2888, %v2896
    %2900 = vrot.lane.b32.xlu0 %v2898, 32
    %v2901 = vpop.permute.xlu0 %2900
    %v2903 = vadd.f32 %v2893, %v2901
    %v2904 = vtanh.pop %v2903
    %2906 = vrot.lane.b32.xlu0 %v2904, 64
    %v2907 = vpop.permute.xlu0 %2906
    %v2909 = vmul.f32 %v2888, %v2907
    %v2910 = vmul.f32 %v2909, %v1790
    %v2912 = vrot.slane %v2910, 6
    %v2914 = vadd.f32 %v2750, %v2912
    %v2915 = vxor.u32 %v2882, 2147483648
    %v2916 = vmul.f32 %v2915, 1.442695
    %v2917 = vpow.pop %v2916
    %v2918 = vadd.f32 %v2917, 1.0
    %v2919 = vrcp.pop %v2918
    %v2920 = vmul.f32 1.0, %v2919
    %v2921 = vtanh.pop %v2882
    %v2923 = vrot.slane %v2789, 2
    %v2925 = vmul.f32 %v2920, %v2923
    %2927 = vrot.lane.b32.xlu0 %v2921, 64
    %v2928 = vpop.permute.xlu0 %2927
    %v2930 = vmul.f32 %v2920, %v2928
    %2932 = vrot.lane.b32.xlu0 %v2930, 32
    %v2933 = vpop.permute.xlu0 %2932
    %v2935 = vadd.f32 %v2925, %v2933
    %v2936 = vtanh.pop %v2935
    %2938 = vrot.lane.b32.xlu0 %v2936, 64
    %v2939 = vpop.permute.xlu0 %2938
    %v2941 = vmul.f32 %v2920, %v2939
    %v2942 = vmul.f32 %v2941, %v1751
    %v2944 = vrot.slane %v2942, 2
    %v2946 = vadd.f32 %v2786, %v2944
    %v2947 = vrot.slane %v1507, 6
    %v2949 = vadd.f32 %v2792, %v2947
    %v2950 = vmax.f32 %v2949, 1.0
    %v2951 = vrcp.pop %v2950
    %v2952 = vmul.f32 1.0, %v2951
    %2954 = vset.pattern.permute.xlu0 0
    %2955 = vperm.xlu0 %2954, %v2952
    %v2956 = vpop.permute.xlu0 %2955
    %v2958 = vmul.f32 %v2914, %v2956
    %v2959 = vrot.slane %v2956, 2
    %v2961 = vmul.f32 %v2946, %v2959
    %v2964 = vrot.slane %v1450, 7
    %v2965 = vsel %vm536, %v2964, %v1449
    %2968 = vrot.lane.b32.xlu0 %v2958, 64
    %v2969 = vpop.permute.xlu0 %2968
    %v2972 = vrot.slane %v2961, 6
    %2973 = vrot.lane.b32.xlu0 %v2972, 80
    %v2974 = vpop.permute.xlu0 %2973
    %2976 = vrot.lane.b32.xlu0 %v2965, 32
    %v2977 = vpop.permute.xlu0 %2976
    %2979 = vrot.lane.b32.xlu0 %v2958, 112
    %v2980 = vpop.permute.xlu0 %2979
    %v2983 = vsel %vm1812, %v2965, %v2969
    %v2984 = vsel %vm77, %v2983, %v2974
    %v2985 = vsel %vm175, %v2984, %v2977
    %v2986 = vsel %vm1545, %v2985, %v2980
    %vm2987 = vcmask 916480
    %v2988 = vsel %vm2987, %v2986, %v2972
    %v2989 = vld [vmem:[#allocation2 + $0x700] sm:$0xff]
    %v2990 = vld [vmem:[#allocation2 + $0x710] sm:$0xff]
    %v2991 = vld [vmem:[#allocation2 + $0x720] sm:$0xff]
    %v2992 = vld [vmem:[#allocation2 + $0x730] sm:$0xff]
    %v2993 = vld [vmem:[#allocation2 + $0x740] sm:$0xff]
    %v2994 = vld [vmem:[#allocation2 + $0x750] sm:$0xff]
    %v2995 = vld [vmem:[#allocation2 + $0x760] sm:$0xff]
    %v2996 = vld [vmem:[#allocation2 + $0x770] sm:$0xff]
    %v2997 = vld [vmem:[#allocation2 + $0x780] sm:$0xff]
    %v2998 = vld [vmem:[#allocation2 + $0x790] sm:$0xff]
    %v2999 = vld [vmem:[#allocation2 + $0x7a0] sm:$0xff]
    %v3000 = vld [vmem:[#allocation2 + $0x7b0] sm:$0xff]
    %v3001 = vld [vmem:[#allocation2 + $0x7c0] sm:$0xff]
    %v3002 = vld [vmem:[#allocation2 + $0x7d0] sm:$0xff]
    %v3003 = vld [vmem:[#allocation2 + $0x7e0] sm:$0xff]
    %v3004 = vld [vmem:[#allocation2 + $0x7f0] sm:$0xff]
    %v3005 = vld [vmem:[#allocation2 + $0x800] ss:$0 sm:$0xff]
    %3006 = vmatprep.subr.mxu0 0.0
    %3007 = vmatpush1.msra.mxu0 %v3004
    %3008 = vmatprep.subr.mxu0 0.0
    %3009 = vmatpush1.msra.mxu0 %v3003
    %3010 = vmatprep.subr.mxu0 0.0
    %3011 = vmatpush1.msra.mxu0 %v3002
    %3012 = vmatprep.subr.mxu0 0.0
    %3013 = vmatpush1.msra.mxu0 %v3001
    %3014 = vmatprep.subr.mxu0 0.0
    %3015 = vmatpush1.msra.mxu0 %v3000
    %3016 = vmatprep.subr.mxu0 0.0
    %3017 = vmatpush1.msra.mxu0 %v2999
    %3018 = vmatprep.subr.mxu0 0.0
    %3019 = vmatpush1.msra.mxu0 %v2998
    %3020 = vmatprep.subr.mxu0 0.0
    %3021 = vmatpush1.msra.mxu0 %v2997
    %3022 = vmatprep.subr.mxu0 0.0
    %3023 = vmatpush1.msra.mxu0 %v2996
    %3024 = vmatprep.subr.mxu0 0.0
    %3025 = vmatpush1.msra.mxu0 %v2995
    %3026 = vmatprep.subr.mxu0 0.0
    %3027 = vmatpush1.msra.mxu0 %v2994
    %3028 = vmatprep.subr.mxu0 0.0
    %3029 = vmatpush1.msra.mxu0 %v2993
    %3030 = vmatprep.subr.mxu0 0.0
    %3031 = vmatpush1.msra.mxu0 %v2992
    %3032 = vmatprep.subr.mxu0 0.0
    %3033 = vmatpush1.msra.mxu0 %v2991
    %3034 = vmatprep.subr.mxu0 0.0
    %3035 = vmatpush1.msra.mxu0 %v2990
    %3036 = vmatprep.subr.mxu0 0.0
    %3037 = vmatpush1.msra.mxu0 %v2989
    %3038 = vmatprep.subr.mxu0 0.0
    %3039 = vmatpush2.msra.mxu0 0.0
    %3040 = vmatprep.subr.mxu0 0.0
    %3041 = vmatpush2.msra.mxu0 0.0
    %3042 = vmatprep.subr.mxu0 0.0
    %3043 = vmatpush2.msra.mxu0 0.0
    %3044 = vmatprep.subr.mxu0 0.0
    %3045 = vmatpush2.msra.mxu0 0.0
    %3046 = vmatprep.subr.mxu0 0.0
    %3047 = vmatpush2.msra.mxu0 0.0
    %3048 = vmatprep.subr.mxu0 0.0
    %3049 = vmatpush2.msra.mxu0 0.0
    %3050 = vmatprep.subr.mxu0 0.0
    %3051 = vmatpush2.msra.mxu0 0.0
    %3052 = vmatprep.subr.mxu0 0.0
    %3053 = vmatpush2.msra.mxu0 0.0
    %3054 = vmatprep.subr.mxu0 0.0
    %3055 = vmatpush2.msra.mxu0 0.0
    %3056 = vmatprep.subr.mxu0 0.0
    %3057 = vmatpush2.msra.mxu0 0.0
    %3058 = vmatprep.subr.mxu0 0.0
    %3059 = vmatpush2.msra.mxu0 0.0
    %3060 = vmatprep.subr.mxu0 0.0
    %3061 = vmatpush2.msra.mxu0 0.0
    %3062 = vmatprep.subr.mxu0 0.0
    %3063 = vmatpush2.msra.mxu0 0.0
    %3064 = vmatprep.subr.mxu0 0.0
    %3065 = vmatpush2.msra.mxu0 0.0
    %3066 = vmatprep.subr.mxu0 0.0
    %3067 = vmatpush2.msra.mxu0 0.0
    %3068 = vmatprep.subr.mxu0 0.0
    %3069 = vmatpush2.msra.mxu0 0.0
    %3070 = vmatprep.mubr.f32.mxu0 0.0
    %3071 = vmatmul.mubr.f32.gmra.mxu0 %v2988
    %v3072 = vpop.f32.mrf.mxu0
    %v3073 = vadd.f32 %v3005, %v3072
    %v3074 = vpop.f32.mrf.mxu0
    %3075 = vdwg.mxu0
    %v3076 = vmax.f32 %v3073, 0.0
    %v3077 = vld [vmem:[#allocation2 + $0x810] sm:$0xff]
    %v3078 = vld [vmem:[#allocation2 + $0x820] sm:$0xff]
    %v3079 = vld [vmem:[#allocation2 + $0x830] sm:$0xff]
    %v3080 = vld [vmem:[#allocation2 + $0x840] sm:$0xff]
    %v3081 = vld [vmem:[#allocation2 + $0x850] sm:$0xff]
    %v3082 = vld [vmem:[#allocation2 + $0x860] sm:$0xff]
    %v3083 = vld [vmem:[#allocation2 + $0x870] sm:$0xff]
    %v3084 = vld [vmem:[#allocation2 + $0x880] sm:$0xff]
    %v3085 = vld [vmem:[#allocation2 + $0x890] ss:$0 sm:$0xff]
    %v3087 = vsel %vm175, %v3076, 0
    %3089 = vmatprep.subr.mxu0 0.0
    %3090 = vmatpush1.msra.mxu0 0.0
    %3091 = vmatprep.subr.mxu0 0.0
    %3092 = vmatpush1.msra.mxu0 0.0
    %3093 = vmatprep.subr.mxu0 0.0
    %3094 = vmatpush1.msra.mxu0 0.0
    %3095 = vmatprep.subr.mxu0 0.0
    %3096 = vmatpush1.msra.mxu0 0.0
    %3097 = vmatprep.subr.mxu0 0.0
    %3098 = vmatpush1.msra.mxu0 0.0
    %3099 = vmatprep.subr.mxu0 0.0
    %3100 = vmatpush1.msra.mxu0 0.0
    %3101 = vmatprep.subr.mxu0 0.0
    %3102 = vmatpush1.msra.mxu0 0.0
    %3103 = vmatprep.subr.mxu0 0.0
    %3104 = vmatpush1.msra.mxu0 0.0
    %3105 = vmatprep.subr.mxu0 0.0
    %3106 = vmatpush1.msra.mxu0 %v3084
    %3107 = vmatprep.subr.mxu0 0.0
    %3108 = vmatpush1.msra.mxu0 %v3083
    %3109 = vmatprep.subr.mxu0 0.0
    %3110 = vmatpush1.msra.mxu0 %v3082
    %3111 = vmatprep.subr.mxu0 0.0
    %3112 = vmatpush1.msra.mxu0 %v3081
    %3113 = vmatprep.subr.mxu0 0.0
    %3114 = vmatpush1.msra.mxu0 %v3080
    %3115 = vmatprep.subr.mxu0 0.0
    %3116 = vmatpush1.msra.mxu0 %v3079
    %3117 = vmatprep.subr.mxu0 0.0
    %3118 = vmatpush1.msra.mxu0 %v3078
    %3119 = vmatprep.subr.mxu0 0.0
    %3120 = vmatpush1.msra.mxu0 %v3077
    %3121 = vmatprep.subr.mxu0 0.0
    %3122 = vmatpush2.msra.mxu0 0.0
    %3123 = vmatprep.subr.mxu0 0.0
    %3124 = vmatpush2.msra.mxu0 0.0
    %3125 = vmatprep.subr.mxu0 0.0
    %3126 = vmatpush2.msra.mxu0 0.0
    %3127 = vmatprep.subr.mxu0 0.0
    %3128 = vmatpush2.msra.mxu0 0.0
    %3129 = vmatprep.subr.mxu0 0.0
    %3130 = vmatpush2.msra.mxu0 0.0
    %3131 = vmatprep.subr.mxu0 0.0
    %3132 = vmatpush2.msra.mxu0 0.0
    %3133 = vmatprep.subr.mxu0 0.0
    %3134 = vmatpush2.msra.mxu0 0.0
    %3135 = vmatprep.subr.mxu0 0.0
    %3136 = vmatpush2.msra.mxu0 0.0
    %3137 = vmatprep.subr.mxu0 0.0
    %3138 = vmatpush2.msra.mxu0 0.0
    %3139 = vmatprep.subr.mxu0 0.0
    %3140 = vmatpush2.msra.mxu0 0.0
    %3141 = vmatprep.subr.mxu0 0.0
    %3142 = vmatpush2.msra.mxu0 0.0
    %3143 = vmatprep.subr.mxu0 0.0
    %3144 = vmatpush2.msra.mxu0 0.0
    %3145 = vmatprep.subr.mxu0 0.0
    %3146 = vmatpush2.msra.mxu0 0.0
    %3147 = vmatprep.subr.mxu0 0.0
    %3148 = vmatpush2.msra.mxu0 0.0
    %3149 = vmatprep.subr.mxu0 0.0
    %3150 = vmatpush2.msra.mxu0 0.0
    %3151 = vmatprep.subr.mxu0 0.0
    %3152 = vmatpush2.msra.mxu0 0.0
    %3153 = vmatprep.mubr.f32.mxu0 0.0
    %3154 = vmatmul.mubr.f32.gmra.mxu0 %v3087
    %v3155 = vpop.f32.mrf.mxu0
    %v3156 = vadd.f32 %v3085, %v3155
    %v3157 = vpop.f32.mrf.mxu0
    %3158 = vdwg.mxu0
    %vm3159 = vcmask 15360
    %v3160 = vsel %vm3159, %v3156, 0.0
    %v3163 = vcombine.low %v2988, %v3160
    %v3165 = vunpack.c.l.s4 1983009808
    %v3166 = vunpack.c.0.s8 %v3165
    %v3167 = vlaneseq
    %v3168 = vshrl.u32 %v3167, 7
    %v3169 = vsub.s32 %v3166, %v3168
    %v3170 = vrot.slane %v3163, %v3169
    %3172 = vst [vmem:[%s2] sm:$0xf] %v3170
    // Predicated region
    $region14: #{ensemble_forward.1} parent=1 // pred_check
      _
    $region15: #{ensemble_forward.1} parent=1 // pred_check_branch
      %3174 = sbr.rel (0) target = $region17
    $region16: #{ensemble_forward.1} parent=1 // pred_region
      _
    $region17: #{ensemble_forward.1} parent=1 // pred_fallthru
      _
    // Predicated region
    $region18: #{ensemble_forward.1} parent=1 // pred_check
      _
    $region19: #{ensemble_forward.1} parent=1 // pred_check_branch
      %3176 = sbr.rel (0) target = $region21
    $region20: #{ensemble_forward.1} parent=1 // pred_region
      _
    $region21: #{ensemble_forward.1} parent=1 // pred_fallthru
      _
    %3177 = vsyncpa [#allocation3], 1

</llo_original>
